<compile_context>
chip_gen: v5e
topology: v5e:2x2
jax: 0.10.0
libtpu: 0.0.40
codegen_flags: <defaults>
</compile_context>

<pallas_src>
from functools import partial

import jax
import jax.numpy as jnp
from jax.experimental import pallas as pl
from jax.experimental.pallas import tpu as pltpu


# ----------------------------- Pallas kernel -------------------------------

def _vae_fwd_kernel(
    x_ref,            # [TB, D_in]  bf16
    we_ref, be_ref,   # encoder:       [D_in, H] bf16, [1, H]    f32
    wh_ref, bh_ref,   # fused heads:   [H, 2Z]   bf16, [1, 2Z]   f32
    wd_ref, bd_ref,   # decoder:       [Z, D_in] bf16, [1, D_in] f32
    eps_ref,          # [TB, Z] bf16
    xhat_ref,         # out: [TB, D_in] bf16
    mlv_ref,          # out: [TB, 2Z]   f32   ([:, :Z]=mean, [:, Z:]=log_var)
    *,
    latent,
):
    # encoder: Linear + ReLU (bf16 MXU matmul, f32 accumulate; elementwise f32)
    xb = x_ref[...].astype(jnp.bfloat16)   # no-op cast: x streamed as bf16
    h = jnp.dot(xb, we_ref[...], preferred_element_type=jnp.float32) + be_ref[...]
    h = jnp.maximum(h, 0.0)

    # fused mean/logvar heads: one 128-lane-dense matmul + one dense store
    heads = jnp.dot(h.astype(jnp.bfloat16), wh_ref[...],
                    preferred_element_type=jnp.float32) + bh_ref[...]
    mean = heads[:, :latent]
    log_var = heads[:, latent:]

    # reparameterization: z = mean + var * eps   (var == log_var, as in spec)
    z = mean + log_var * eps_ref[...].astype(jnp.float32)

    # decoder: Linear + Sigmoid (f32 sigmoid, bf16 store)
    logits = jnp.dot(z.astype(jnp.bfloat16), wd_ref[...],
                     preferred_element_type=jnp.float32) + bd_ref[...]

    xhat_ref[...] = jax.nn.sigmoid(logits).astype(xhat_ref.dtype)
    mlv_ref[...] = heads.astype(mlv_ref.dtype)


# ------------------------------ wrapper ------------------------------------

def _vmem_budget_bytes(tb, d_in, h, z):
    """Double-buffered activation streams + resident weights + headroom."""
    # per-row streamed bytes: x bf16 + eps bf16 + x_hat bf16 + mlv f32
    stream_row = d_in * 2 + z * 2 + d_in * 2 + 2 * z * 4
    streams = 2 * tb * stream_row                      # 2 pipeline buffers
    weights = 2 * ((d_in * h + h * 2 * z + z * d_in) * 2   # bf16 weights
                   + (h + 2 * z + d_in) * 4)                # f32 biases
    return streams + weights + (2 << 20)               # ~2 MiB headroom


def vae_forward(x, params, eps, *, tb=512):
    """x: [B, D_in] bf16, eps: [B, Z] bf16. Returns (x_hat bf16, mean f32, log_var f32)."""
    B, D_in = x.shape
    H = params["we"].shape[1]
    two_z = params["wh"].shape[1]
    Z = two_z // 2
    tb = min(tb, B)
    assert B % tb == 0, "batch must be a multiple of the batch tile"
    assert eps.shape == (B, Z)

    grid = (B // tb,)

    def batch_spec(cols):
        return pl.BlockSpec((tb, cols), lambda i: (i, 0))

    def fixed_spec(shape):
        return pl.BlockSpec(shape, lambda i: (0, 0))

    out_shapes = (
        jax.ShapeDtypeStruct((B, D_in), jnp.bfloat16),   # x_hat (bf16 output)
        jax.ShapeDtypeStruct((B, two_z), jnp.float32),   # [mean | log_var]
    )

    in_specs = [
        batch_spec(D_in),                               # x
        fixed_spec((D_in, H)), fixed_spec((1, H)),      # encoder
        fixed_spec((H, two_z)), fixed_spec((1, two_z)), # fused heads
        fixed_spec((Z, D_in)), fixed_spec((1, D_in)),   # decoder
        batch_spec(Z),                                  # eps
    ]
    out_specs = (batch_spec(D_in), batch_spec(two_z))

    x_hat, mlv = pl.pallas_call(
        partial(_vae_fwd_kernel, latent=Z),
        out_shape=out_shapes,
        grid=grid,
        in_specs=in_specs,
        out_specs=out_specs,
        compiler_params=pltpu.CompilerParams(
            dimension_semantics=("parallel",),
            vmem_limit_bytes=_vmem_budget_bytes(tb, D_in, H, Z),
        ),
    )(
        x,
        params["we"], params["be"],
        params["wh"], params["bh"],
        params["wd"], params["bd"],
        eps,
    )

    return x_hat, mlv[:, :Z], mlv[:, Z:]


# --------------------------- deterministic init -----------------------------

def init_params(key, d_in, hidden, latent):
    ks = jax.random.split(key, 8)

    def linear(kw, kb, fan_in, fan_out):
        bound = 1.0 / jnp.sqrt(fan_in)
        w = jax.random.uniform(kw, (fan_in, fan_out), jnp.float32, -bound, bound)
        b = jax.random.uniform(kb, (1, fan_out), jnp.float32, -bound, bound)
        return w, b

    we, be = linear(ks[0], ks[1], d_in, hidden)
    wm, bm = linear(ks[2], ks[3], hidden, latent)
    wv, bv = linear(ks[4], ks[5], hidden, latent)
    wd, bd = linear(ks[6], ks[7], latent, d_in)

    # Fuse the two Z-wide heads into one lane-dense [H, 2Z] matmul.
    wh = jnp.concatenate([wm, wv], axis=1)
    bh = jnp.concatenate([bm, bv], axis=1)

    # Weights in bf16 for full MXU rate / half the weight bytes; biases f32.
    return dict(
        we=we.astype(jnp.bfloat16), be=be,
        wh=wh.astype(jnp.bfloat16), bh=bh,
        wd=wd.astype(jnp.bfloat16), bd=bd,
    )


# ------------------------------- reference ----------------------------------

def vae_forward_ref(x, p, eps):
    """Pure-JAX reference using identical bf16-dot / f32-elementwise math."""
    Z = p["wh"].shape[1] // 2
    h = jnp.dot(x.astype(jnp.bfloat16), p["we"],
                preferred_element_type=jnp.float32) + p["be"]
    h = jnp.maximum(h, 0.0)
    heads = jnp.dot(h.astype(jnp.bfloat16), p["wh"],
                    preferred_element_type=jnp.float32) + p["bh"]
    mean, log_var = heads[:, :Z], heads[:, Z:]
    z = mean + log_var * eps.astype(jnp.float32)
    logits = jnp.dot(z.astype(jnp.bfloat16), p["wd"],
                     preferred_element_type=jnp.float32) + p["bd"]
    return jax.nn.sigmoid(logits), mean, log_var


# --------------------------------- main --------------------------------------

if __name__ == "__main__":
    # Feature dims are small and VMEM-resident; batch is tiled at TB=512 so the
    # grid has B/TB = 8 steps -> >=4 per TensorCore on v7x for DMA overlap.
    B, D_in, H, Z = 4096, 256, 128, 64
    TB = 512

    key = jax.random.PRNGKey(0)
    k_params, k_x, k_eps = jax.random.split(key, 3)

    params = init_params(k_params, D_in, H, Z)
    # Producer-side bf16: x and eps live in HBM as bf16 (halves their streams).
    x = jax.random.uniform(k_x, (B, D_in), jnp.float32).astype(jnp.bfloat16)
    eps = jax.random.normal(k_eps, (B, Z), jnp.float32).astype(jnp.bfloat16)

    x_hat, mean, log_var = jax.block_until_ready(
        vae_forward(x, params, eps, tb=TB))

    # correctness check against a pure-JAX reference (same bf16-dot math)
    rh, rm, rv = vae_forward_ref(x, params, eps)
    assert jnp.allclose(x_hat.astype(jnp.float32), rh, atol=1e-2, rtol=1e-2)
    assert jnp.allclose(mean, rm, atol=1e-3, rtol=1e-3)
    assert jnp.allclose(log_var, rv, atol=1e-3, rtol=1e-3)

    print("KERNEL_OK")
</pallas_src>

<mosaic_0001>
module attributes {stable_mosaic.version = 11 : i64} {
  func.func @_vae_fwd_kernel(%arg0: i32, %arg1: memref<512x256xbf16, #tpu.memory_space<vmem>>, %arg2: memref<256x128xbf16, #tpu.memory_space<vmem>>, %arg3: memref<1x128xf32, #tpu.memory_space<vmem>>, %arg4: memref<128x128xbf16, #tpu.memory_space<vmem>>, %arg5: memref<1x128xf32, #tpu.memory_space<vmem>>, %arg6: memref<64x256xbf16, #tpu.memory_space<vmem>>, %arg7: memref<1x256xf32, #tpu.memory_space<vmem>>, %arg8: memref<512x64xbf16, #tpu.memory_space<vmem>>, %arg9: memref<512x256xbf16, #tpu.memory_space<vmem>>, %arg10: memref<512x128xf32, #tpu.memory_space<vmem>>) attributes {dimension_semantics = [#tpu.dimension_semantics<parallel>], iteration_bounds = array<i64: 8>, scalar_prefetch = 0 : i64, scratch_operands = 0 : i64, tpu.core_type = #tpu.core_type<tc>, window_params = [{transform_indices = @transform_0, window_bounds = array<i64: 512, 256>}, {pipeline_mode = #tpu.pipeline_mode<synchronous>, transform_indices = @transform_1, window_bounds = array<i64: 256, 128>}, {pipeline_mode = #tpu.pipeline_mode<synchronous>, transform_indices = @transform_2, window_bounds = array<i64: 1, 128>}, {pipeline_mode = #tpu.pipeline_mode<synchronous>, transform_indices = @transform_3, window_bounds = array<i64: 128, 128>}, {pipeline_mode = #tpu.pipeline_mode<synchronous>, transform_indices = @transform_4, window_bounds = array<i64: 1, 128>}, {pipeline_mode = #tpu.pipeline_mode<synchronous>, transform_indices = @transform_5, window_bounds = array<i64: 64, 256>}, {pipeline_mode = #tpu.pipeline_mode<synchronous>, transform_indices = @transform_6, window_bounds = array<i64: 1, 256>}, {transform_indices = @transform_7, window_bounds = array<i64: 512, 64>}, {transform_indices = @transform_8, window_bounds = array<i64: 512, 256>}, {transform_indices = @transform_9, window_bounds = array<i64: 512, 128>}]} {
    %c0 = arith.constant 0 : index
    %c0_0 = arith.constant 0 : index
    %0 = vector.load %arg1[%c0, %c0_0] : memref<512x256xbf16, #tpu.memory_space<vmem>>, vector<512x256xbf16>
    %c0_1 = arith.constant 0 : index
    %c0_2 = arith.constant 0 : index
    %1 = vector.load %arg2[%c0_1, %c0_2] : memref<256x128xbf16, #tpu.memory_space<vmem>>, vector<256x128xbf16>
    %cst = arith.constant dense<0.000000e+00> : vector<512x128xf32>
    %2 = tpu.matmul %0, %1, %cst {dimension_numbers = #tpu.dot_dimension_numbers<[1], [0], [0], [1], [0, 0, 1, 1], [], []>} : vector<512x256xbf16>, vector<256x128xbf16>, vector<512x128xf32> -> vector<512x128xf32>
    %c0_3 = arith.constant 0 : index
    %c0_4 = arith.constant 0 : index
    %3 = vector.load %arg3[%c0_3, %c0_4] : memref<1x128xf32, #tpu.memory_space<vmem>>, vector<1x128xf32>
    %4 = vector.broadcast %3 : vector<1x128xf32> to vector<512x128xf32>
    %5 = arith.addf %2, %4 : vector<512x128xf32>
    %cst_5 = arith.constant 0.000000e+00 : f32
    %6 = vector.broadcast %cst_5 : f32 to vector<512x128xf32>
    %7 = arith.maximumf %5, %6 : vector<512x128xf32>
    %8 = arith.truncf %7 : vector<512x128xf32> to vector<512x128xbf16>
    %c0_6 = arith.constant 0 : index
    %c0_7 = arith.constant 0 : index
    %9 = vector.load %arg4[%c0_6, %c0_7] : memref<128x128xbf16, #tpu.memory_space<vmem>>, vector<128x128xbf16>
    %cst_8 = arith.constant dense<0.000000e+00> : vector<512x128xf32>
    %10 = tpu.matmul %8, %9, %cst_8 {dimension_numbers = #tpu.dot_dimension_numbers<[1], [0], [0], [1], [0, 0, 1, 1], [], []>} : vector<512x128xbf16>, vector<128x128xbf16>, vector<512x128xf32> -> vector<512x128xf32>
    %c0_9 = arith.constant 0 : index
    %c0_10 = arith.constant 0 : index
    %11 = vector.load %arg5[%c0_9, %c0_10] : memref<1x128xf32, #tpu.memory_space<vmem>>, vector<1x128xf32>
    %12 = vector.broadcast %11 : vector<1x128xf32> to vector<512x128xf32>
    %13 = arith.addf %10, %12 : vector<512x128xf32>
    %14 = vector.extract_strided_slice %13 {offsets = [0, 0], sizes = [512, 64], strides = [1, 1]} : vector<512x128xf32> to vector<512x64xf32>
    %15 = vector.extract_strided_slice %13 {offsets = [0, 64], sizes = [512, 64], strides = [1, 1]} : vector<512x128xf32> to vector<512x64xf32>
    %c0_11 = arith.constant 0 : index
    %c0_12 = arith.constant 0 : index
    %16 = vector.load %arg8[%c0_11, %c0_12] : memref<512x64xbf16, #tpu.memory_space<vmem>>, vector<512x64xbf16>
    %17 = arith.extf %16 : vector<512x64xbf16> to vector<512x64xf32>
    %18 = arith.mulf %15, %17 : vector<512x64xf32>
    %19 = arith.addf %14, %18 : vector<512x64xf32>
    %20 = arith.truncf %19 : vector<512x64xf32> to vector<512x64xbf16>
    %c0_13 = arith.constant 0 : index
    %c0_14 = arith.constant 0 : index
    %21 = vector.load %arg6[%c0_13, %c0_14] : memref<64x256xbf16, #tpu.memory_space<vmem>>, vector<64x256xbf16>
    %cst_15 = arith.constant dense<0.000000e+00> : vector<512x256xf32>
    %22 = tpu.matmul %20, %21, %cst_15 {dimension_numbers = #tpu.dot_dimension_numbers<[1], [0], [0], [1], [0, 0, 1, 1], [], []>} : vector<512x64xbf16>, vector<64x256xbf16>, vector<512x256xf32> -> vector<512x256xf32>
    %c0_16 = arith.constant 0 : index
    %c0_17 = arith.constant 0 : index
    %23 = vector.load %arg7[%c0_16, %c0_17] : memref<1x256xf32, #tpu.memory_space<vmem>>, vector<1x256xf32>
    %24 = vector.broadcast %23 : vector<1x256xf32> to vector<512x256xf32>
    %25 = arith.addf %22, %24 : vector<512x256xf32>
    %26 = arith.negf %25 : vector<512x256xf32>
    %27 = math.exp %26 : vector<512x256xf32>
    %cst_18 = arith.constant 1.000000e+00 : f32
    %28 = vector.broadcast %cst_18 : f32 to vector<512x256xf32>
    %29 = arith.addf %28, %27 : vector<512x256xf32>
    %30 = arith.divf %28, %29 : vector<512x256xf32>
    %31 = arith.truncf %30 : vector<512x256xf32> to vector<512x256xbf16>
    %c0_19 = arith.constant 0 : index
    %c0_20 = arith.constant 0 : index
    %32 = vector.load %arg9[%c0_19, %c0_20] : memref<512x256xbf16, #tpu.memory_space<vmem>>, vector<512x256xbf16>
    tpu.vector_store %arg9[%c0_19, %c0_20], %31 {strides = array<i32>} : memref<512x256xbf16, #tpu.memory_space<vmem>>, vector<512x256xbf16>,
    %c0_21 = arith.constant 0 : index
    %c0_22 = arith.constant 0 : index
    %33 = vector.load %arg10[%c0_21, %c0_22] : memref<512x128xf32, #tpu.memory_space<vmem>>, vector<512x128xf32>
    tpu.vector_store %arg10[%c0_21, %c0_22], %13 {strides = array<i32>} : memref<512x128xf32, #tpu.memory_space<vmem>>, vector<512x128xf32>,
    return
  }
  func.func @transform_0(%arg0: i32) -> (i32, i32) {
    %c0_i32 = arith.constant 0 : i32
    %c0_i32_0 = arith.constant 0 : i32
    return %arg0, %c0_i32 : i32, i32
  }
  func.func @transform_1(%arg0: i32) -> (i32, i32) {
    %c0_i32 = arith.constant 0 : i32
    %c0_i32_0 = arith.constant 0 : i32
    %c0_i32_1 = arith.constant 0 : i32
    return %c0_i32, %c0_i32_0 : i32, i32
  }
  func.func @transform_2(%arg0: i32) -> (i32, i32) {
    %c0_i32 = arith.constant 0 : i32
    %c0_i32_0 = arith.constant 0 : i32
    %c0_i32_1 = arith.constant 0 : i32
    return %c0_i32, %c0_i32_0 : i32, i32
  }
  func.func @transform_3(%arg0: i32) -> (i32, i32) {
    %c0_i32 = arith.constant 0 : i32
    %c0_i32_0 = arith.constant 0 : i32
    %c0_i32_1 = arith.constant 0 : i32
    return %c0_i32, %c0_i32_0 : i32, i32
  }
  func.func @transform_4(%arg0: i32) -> (i32, i32) {
    %c0_i32 = arith.constant 0 : i32
    %c0_i32_0 = arith.constant 0 : i32
    %c0_i32_1 = arith.constant 0 : i32
    return %c0_i32, %c0_i32_0 : i32, i32
  }
  func.func @transform_5(%arg0: i32) -> (i32, i32) {
    %c0_i32 = arith.constant 0 : i32
    %c0_i32_0 = arith.constant 0 : i32
    %c0_i32_1 = arith.constant 0 : i32
    return %c0_i32, %c0_i32_0 : i32, i32
  }
  func.func @transform_6(%arg0: i32) -> (i32, i32) {
    %c0_i32 = arith.constant 0 : i32
    %c0_i32_0 = arith.constant 0 : i32
    %c0_i32_1 = arith.constant 0 : i32
    return %c0_i32, %c0_i32_0 : i32, i32
  }
  func.func @transform_7(%arg0: i32) -> (i32, i32) {
    %c0_i32 = arith.constant 0 : i32
    %c0_i32_0 = arith.constant 0 : i32
    return %arg0, %c0_i32 : i32, i32
  }
  func.func @transform_8(%arg0: i32) -> (i32, i32) {
    %c0_i32 = arith.constant 0 : i32
    %c0_i32_0 = arith.constant 0 : i32
    return %arg0, %c0_i32 : i32, i32
  }
  func.func @transform_9(%arg0: i32) -> (i32, i32) {
    %c0_i32 = arith.constant 0 : i32
    %c0_i32_0 = arith.constant 0 : i32
    return %arg0, %c0_i32 : i32, i32
  }
}

</mosaic_0001>

<llo_original>
// kernel: tpu_custom_call.1
$region0: #{tpu_custom_call.1}
  #allocation0 [shape = 'u32[]', space=smem, size = 0x4, offset = 0x4, fixed_abs, tag = 'smem constant byte address 0x4 - core index']
  #allocation1 [shape = 'u32[72,128]{1,0:T(1,128)}', space=vmem, size = 0x9000, scoped, tag = 'internal scratch']
  %s0 = inlined_call_operand.hbm [shape: bf16[4096,256], index: 0, kind: input, shape index: {}]
  %s1 = inlined_call_operand.hbm [shape: bf16[256,128], index: 1, kind: input, shape index: {}]
  %s2 = inlined_call_operand.hbm [shape: f32[1,128], index: 2, kind: input, shape index: {}]
  %s3 = inlined_call_operand.hbm [shape: bf16[128,128], index: 3, kind: input, shape index: {}]
  %s4 = inlined_call_operand.hbm [shape: f32[1,128], index: 4, kind: input, shape index: {}]
  %s5 = inlined_call_operand.hbm [shape: bf16[64,256], index: 5, kind: input, shape index: {}]
  %s6 = inlined_call_operand.hbm [shape: f32[1,256], index: 6, kind: input, shape index: {}]
  %s7 = inlined_call_operand.vmem [shape: bf16[4096,64], index: 7, kind: input, shape index: {}]
  %s8 = inlined_call_operand.hbm [shape: bf16[4096,256], index: 8, kind: output, shape index: {0}]
  %s9 = inlined_call_operand.hbm [shape: f32[4096,128], index: 9, kind: output, shape index: {1}]
  %10 = xla_tuple %s8, %s9
  %s11 = sld [smem:[#allocation0]]
  $region101: #{tpu_custom_call.1} parent=0
    _
  %s13 = ssub.s32 1, %s11
  %s14 = scalar_select 0, %s13, %s11
  $region1: #{tpu_custom_call.1} parent=0
    #allocation2 [shape = 'u8[524288]{0}', space=vmem, size = 0x80000, scoped, tag = 'input window, operand 0']
    #allocation3 [shape = 's32[2]{0}', space=sflag, size = 0x8, scoped, tag = 'scoped memory for tpu_custom_call.1']
    #allocation4 [shape = 's32[2]{0}', space=sflag, size = 0x8, scoped, tag = 'scoped memory for tpu_custom_call.1']
    #allocation5 [shape = 'u8[65536]{0}', space=vmem, size = 0x10000, scoped, tag = 'input window, operand 1, single buffered']
    #allocation6 [shape = 's32[1]{0}', space=sflag, size = 0x4, scoped, tag = 'scoped memory for tpu_custom_call.1']
    #allocation7 [shape = 'u8[512]{0}', space=vmem, size = 0x400, scoped, tag = 'input window, operand 2, single buffered']
    #allocation8 [shape = 'u8[32768]{0}', space=vmem, size = 0x8000, scoped, tag = 'input window, operand 3, single buffered']
    #allocation9 [shape = 's32[1]{0}', space=sflag, size = 0x4, scoped, tag = 'scoped memory for tpu_custom_call.1']
    #allocation10 [shape = 'u8[512]{0}', space=vmem, size = 0x400, scoped, tag = 'input window, operand 4, single buffered']
    #allocation11 [shape = 'u8[32768]{0}', space=vmem, size = 0x8000, scoped, tag = 'input window, operand 5, single buffered']
    #allocation12 [shape = 's32[1]{0}', space=sflag, size = 0x4, scoped, tag = 'scoped memory for tpu_custom_call.1']
    #allocation13 [shape = 'u8[1024]{0}', space=vmem, size = 0x400, scoped, tag = 'input window, operand 6, single buffered']
    #allocation14 [shape = 'u8[524288]{0}', space=vmem, size = 0x80000, scoped, tag = 'output window, operand 0']
    #allocation15 [shape = 'u8[524288]{0}', space=vmem, size = 0x80000, scoped, tag = 'output window, operand 1']
    #allocation16 [shape = 's32[2]{0}', space=sflag, size = 0x8, scoped, tag = 'scoped memory for tpu_custom_call.1']
    %15 = vsyncpa [#allocation3], 0
    %s16 = scalar_lea.sflag [#allocation3], 1
    %17 = vsyncpa %s16, 0
    %18 = vsyncpa [#allocation6], 0
    %19 = vsyncpa [#allocation9], 0
    %20 = vsyncpa [#allocation12], 0
    %21 = vsyncpa [#allocation4], 0
    %s22 = scalar_lea.sflag [#allocation4], 1
    %23 = vsyncpa %s22, 0
    %24 = vsyncpa [#allocation16], 0
    %s25 = scalar_lea.sflag [#allocation16], 1
    %26 = vsyncpa %s25, 0
    loop: start=0, step=1, limit=10
    $region2: #{tpu_custom_call.1} parent=1 // loop_pre_header
      _
    $region3: #{tpu_custom_call.1} parent=1 // loop_header
      %s28 = sphi 0, %s32
      %p29 = scmp.ge.s32.totalorder %s28, 10
      %s38 = sphi 0, %s40
      %s41 = sphi 0, %s38
      %s42 = sphi 0, %s41
      %s58 = sphi 0, %s42
      %s62 = sphi 0, %s62
      %s64 = sphi 0, %s62
      %s65 = sphi 0, %s64
      %s79 = sphi 0, %s65
      %s83 = sphi 0, %s83
      %s85 = sphi 0, %s83
      %s86 = sphi 0, %s85
      %s100 = sphi 0, %s86
      %s104 = sphi 0, %s104
      %s106 = sphi 0, %s104
      %s107 = sphi 0, %s106
      %s121 = sphi 0, %s107
      %s125 = sphi 0, %s125
      %s127 = sphi 0, %s125
      %s128 = sphi 0, %s127
      %s142 = sphi 0, %s128
      %s146 = sphi 0, %s146
      %s148 = sphi 0, %s146
      %s149 = sphi 0, %s148
      %s163 = sphi 0, %s149
      %s167 = sphi 0, %s167
      %s169 = sphi 0, %s167
      %s170 = sphi 0, %s169
      %s184 = sphi 0, %s170
      %s190 = sphi 0, %s192
      %s193 = sphi 0, %s190
      %s194 = sphi 0, %s193
      %s210 = sphi 0, %s194
      %s216 = sphi 0, %s218
      %s219 = sphi 0, %s216
      %s220 = sphi 0, %s219
      %s236 = sphi 0, %s220
      %s242 = sphi 0, %s244
      %s245 = sphi 0, %s242
      %s246 = sphi 0, %s245
      %s262 = sphi 0, %s246
    $region4: #{tpu_custom_call.1} parent=1 // loop_header_branch
      %31 = sbr.rel (%p29) target = $region8
    $region5: #{tpu_custom_call.1} parent=1 // loop_body
      %s33 = ssub.s32 %s28, 1
      %s34 = ssub.s32 %s28, 2
      %s35 = sadd.s32 %s28, 1
      %s36 = ssub.s32 %s28, %s35
      %p37 = scmp.eq.s32.totalorder %s36, 0
      %s39 = sadd.s32 %s38, 1
      %s40 = scalar_select %p37, %s38, %s39
      %p43 = pneg %p37
      %p44 = scmp.eq.s32.totalorder %s28, 7
      %p45 = por %p43, %p44
      %p46 = scmp.ne.s32.totalorder %s38, %s41
      %p47 = scmp.eq.s32.totalorder %s28, 0
      %p48 = por %p46, %p47
      %p49 = scmp.ne.s32.totalorder %s38, %s41
      %p50 = scmp.eq.s32.totalorder %s33, 7
      %p51 = por %p49, %p50
      %p52 = scmp.ne.s32.totalorder %s41, %s42
      %p53 = scmp.eq.s32.totalorder %s33, 0
      %p54 = por %p52, %p53
      %p55 = scmp.ne.s32.totalorder %s41, %s42
      %p56 = scmp.eq.s32.totalorder %s34, 7
      %p57 = por %p55, %p56
      %p59 = scmp.ne.s32.totalorder %s42, %s58
      %p60 = scmp.eq.s32.totalorder %s34, 0
      %p61 = por %p59, %p60
      %s63 = sadd.s32 %s62, 1
      %p66 = scmp.eq.s32.totalorder %s28, 7
      %p67 = scmp.ne.s32.totalorder %s62, %s64
      %p68 = scmp.eq.s32.totalorder %s28, 0
      %p69 = por %p67, %p68
      %p70 = scmp.ne.s32.totalorder %s62, %s64
      %p71 = scmp.eq.s32.totalorder %s33, 7
      %p72 = por %p70, %p71
      %p73 = scmp.ne.s32.totalorder %s64, %s65
      %p74 = scmp.eq.s32.totalorder %s33, 0
      %p75 = por %p73, %p74
      %p76 = scmp.ne.s32.totalorder %s64, %s65
      %p77 = scmp.eq.s32.totalorder %s34, 7
      %p78 = por %p76, %p77
      %p80 = scmp.ne.s32.totalorder %s65, %s79
      %p81 = scmp.eq.s32.totalorder %s34, 0
      %p82 = por %p80, %p81
      %s84 = sadd.s32 %s83, 1
      %p87 = scmp.eq.s32.totalorder %s28, 7
      %p88 = scmp.ne.s32.totalorder %s83, %s85
      %p89 = scmp.eq.s32.totalorder %s28, 0
      %p90 = por %p88, %p89
      %p91 = scmp.ne.s32.totalorder %s83, %s85
      %p92 = scmp.eq.s32.totalorder %s33, 7
      %p93 = por %p91, %p92
      %p94 = scmp.ne.s32.totalorder %s85, %s86
      %p95 = scmp.eq.s32.totalorder %s33, 0
      %p96 = por %p94, %p95
      %p97 = scmp.ne.s32.totalorder %s85, %s86
      %p98 = scmp.eq.s32.totalorder %s34, 7
      %p99 = por %p97, %p98
      %p101 = scmp.ne.s32.totalorder %s86, %s100
      %p102 = scmp.eq.s32.totalorder %s34, 0
      %p103 = por %p101, %p102
      %s105 = sadd.s32 %s104, 1
      %p108 = scmp.eq.s32.totalorder %s28, 7
      %p109 = scmp.ne.s32.totalorder %s104, %s106
      %p110 = scmp.eq.s32.totalorder %s28, 0
      %p111 = por %p109, %p110
      %p112 = scmp.ne.s32.totalorder %s104, %s106
      %p113 = scmp.eq.s32.totalorder %s33, 7
      %p114 = por %p112, %p113
      %p115 = scmp.ne.s32.totalorder %s106, %s107
      %p116 = scmp.eq.s32.totalorder %s33, 0
      %p117 = por %p115, %p116
      %p118 = scmp.ne.s32.totalorder %s106, %s107
      %p119 = scmp.eq.s32.totalorder %s34, 7
      %p120 = por %p118, %p119
      %p122 = scmp.ne.s32.totalorder %s107, %s121
      %p123 = scmp.eq.s32.totalorder %s34, 0
      %p124 = por %p122, %p123
      %s126 = sadd.s32 %s125, 1
      %p129 = scmp.eq.s32.totalorder %s28, 7
      %p130 = scmp.ne.s32.totalorder %s125, %s127
      %p131 = scmp.eq.s32.totalorder %s28, 0
      %p132 = por %p130, %p131
      %p133 = scmp.ne.s32.totalorder %s125, %s127
      %p134 = scmp.eq.s32.totalorder %s33, 7
      %p135 = por %p133, %p134
      %p136 = scmp.ne.s32.totalorder %s127, %s128
      %p137 = scmp.eq.s32.totalorder %s33, 0
      %p138 = por %p136, %p137
      %p139 = scmp.ne.s32.totalorder %s127, %s128
      %p140 = scmp.eq.s32.totalorder %s34, 7
      %p141 = por %p139, %p140
      %p143 = scmp.ne.s32.totalorder %s128, %s142
      %p144 = scmp.eq.s32.totalorder %s34, 0
      %p145 = por %p143, %p144
      %s147 = sadd.s32 %s146, 1
      %p150 = scmp.eq.s32.totalorder %s28, 7
      %p151 = scmp.ne.s32.totalorder %s146, %s148
      %p152 = scmp.eq.s32.totalorder %s28, 0
      %p153 = por %p151, %p152
      %p154 = scmp.ne.s32.totalorder %s146, %s148
      %p155 = scmp.eq.s32.totalorder %s33, 7
      %p156 = por %p154, %p155
      %p157 = scmp.ne.s32.totalorder %s148, %s149
      %p158 = scmp.eq.s32.totalorder %s33, 0
      %p159 = por %p157, %p158
      %p160 = scmp.ne.s32.totalorder %s148, %s149
      %p161 = scmp.eq.s32.totalorder %s34, 7
      %p162 = por %p160, %p161
      %p164 = scmp.ne.s32.totalorder %s149, %s163
      %p165 = scmp.eq.s32.totalorder %s34, 0
      %p166 = por %p164, %p165
      %s168 = sadd.s32 %s167, 1
      %p171 = scmp.eq.s32.totalorder %s28, 7
      %p172 = scmp.ne.s32.totalorder %s167, %s169
      %p173 = scmp.eq.s32.totalorder %s28, 0
      %p174 = por %p172, %p173
      %p175 = scmp.ne.s32.totalorder %s167, %s169
      %p176 = scmp.eq.s32.totalorder %s33, 7
      %p177 = por %p175, %p176
      %p178 = scmp.ne.s32.totalorder %s169, %s170
      %p179 = scmp.eq.s32.totalorder %s33, 0
      %p180 = por %p178, %p179
      %p181 = scmp.ne.s32.totalorder %s169, %s170
      %p182 = scmp.eq.s32.totalorder %s34, 7
      %p183 = por %p181, %p182
      %p185 = scmp.ne.s32.totalorder %s170, %s184
      %p186 = scmp.eq.s32.totalorder %s34, 0
      %p187 = por %p185, %p186
      %s188 = ssub.s32 %s28, %s35
      %p189 = scmp.eq.s32.totalorder %s188, 0
      %s191 = sadd.s32 %s190, 1
      %s192 = scalar_select %p189, %s190, %s191
      %p195 = pneg %p189
      %p196 = scmp.eq.s32.totalorder %s28, 7
      %p197 = por %p195, %p196
      %p198 = scmp.ne.s32.totalorder %s190, %s193
      %p199 = scmp.eq.s32.totalorder %s28, 0
      %p200 = por %p198, %p199
      %p201 = scmp.ne.s32.totalorder %s190, %s193
      %p202 = scmp.eq.s32.totalorder %s33, 7
      %p203 = por %p201, %p202
      %p204 = scmp.ne.s32.totalorder %s193, %s194
      %p205 = scmp.eq.s32.totalorder %s33, 0
      %p206 = por %p204, %p205
      %p207 = scmp.ne.s32.totalorder %s193, %s194
      %p208 = scmp.eq.s32.totalorder %s34, 7
      %p209 = por %p207, %p208
      %p211 = scmp.ne.s32.totalorder %s194, %s210
      %p212 = scmp.eq.s32.totalorder %s34, 0
      %p213 = por %p211, %p212
      %s214 = ssub.s32 %s28, %s35
      %p215 = scmp.eq.s32.totalorder %s214, 0
      %s217 = sadd.s32 %s216, 1
      %s218 = scalar_select %p215, %s216, %s217
      %p221 = pneg %p215
      %p222 = scmp.eq.s32.totalorder %s28, 7
      %p223 = por %p221, %p222
      %p224 = scmp.ne.s32.totalorder %s216, %s219
      %p225 = scmp.eq.s32.totalorder %s28, 0
      %p226 = por %p224, %p225
      %p227 = scmp.ne.s32.totalorder %s216, %s219
      %p228 = scmp.eq.s32.totalorder %s33, 7
      %p229 = por %p227, %p228
      %p230 = scmp.ne.s32.totalorder %s219, %s220
      %p231 = scmp.eq.s32.totalorder %s33, 0
      %p232 = por %p230, %p231
      %p233 = scmp.ne.s32.totalorder %s219, %s220
      %p234 = scmp.eq.s32.totalorder %s34, 7
      %p235 = por %p233, %p234
      %p237 = scmp.ne.s32.totalorder %s220, %s236
      %p238 = scmp.eq.s32.totalorder %s34, 0
      %p239 = por %p237, %p238
      %s240 = ssub.s32 %s28, %s35
      %p241 = scmp.eq.s32.totalorder %s240, 0
      %s243 = sadd.s32 %s242, 1
      %s244 = scalar_select %p241, %s242, %s243
      %p247 = pneg %p241
      %p248 = scmp.eq.s32.totalorder %s28, 7
      %p249 = por %p247, %p248
      %p250 = scmp.ne.s32.totalorder %s242, %s245
      %p251 = scmp.eq.s32.totalorder %s28, 0
      %p252 = por %p250, %p251
      %p253 = scmp.ne.s32.totalorder %s242, %s245
      %p254 = scmp.eq.s32.totalorder %s33, 7
      %p255 = por %p253, %p254
      %p256 = scmp.ne.s32.totalorder %s245, %s246
      %p257 = scmp.eq.s32.totalorder %s33, 0
      %p258 = por %p256, %p257
      %p259 = scmp.ne.s32.totalorder %s245, %s246
      %p260 = scmp.eq.s32.totalorder %s34, 7
      %p261 = por %p259, %p260
      %p263 = scmp.ne.s32.totalorder %s246, %s262
      %p264 = scmp.eq.s32.totalorder %s34, 0
      %p265 = por %p263, %p264
      %p266 = scmp.le.s32.totalorder 1, %s28
      %p267 = scmp.lt.s32.totalorder %s28, 9
      %p268 = pnand %p266, %p267
      %p269 = pneg %p268
      // Predicated region
      $region9: #{tpu_custom_call.1} parent=5 // pred_check
        _
      $region10: #{tpu_custom_call.1} parent=5 // pred_check_branch
        %271 = sbr.rel (%p268) target = $region12
      $region11: #{tpu_custom_call.1} parent=5 // pred_region
        %s272 = ssub.s32 %s28, 1
        // Predicated region
        $region13: #{tpu_custom_call.1} parent=11 // pred_check
          %p273 = pneg %p75
        $region14: #{tpu_custom_call.1} parent=11 // pred_check_branch
          %275 = sbr.rel (%p273) target = $region16
        $region15: #{tpu_custom_call.1} parent=11 // pred_region
          %277 = vsyncadd [#allocation6], 0
          %s278 = sshll.u32 %s1, 4
          %s279 = int_to_ptr.hbm [resolvable:$true] %s278
          %s280 = sshll.u32 [#allocation5], 4
          %s281 = int_to_ptr.vmem [resolvable:$true] %s280
          %286 = dma.hbm_to_vmem [thread:$0]  %s279, 2048, %s281, [#allocation6], 64, 64, 4
        $region16: #{tpu_custom_call.1} parent=11 // pred_fallthru
          _
        // Predicated region
        $region17: #{tpu_custom_call.1} parent=11 // pred_check
          %p287 = pneg %p96
        $region18: #{tpu_custom_call.1} parent=11 // pred_check_branch
          %289 = sbr.rel (%p287) target = $region20
        $region19: #{tpu_custom_call.1} parent=11 // pred_region
          %291 = vsyncadd [#allocation6], 0
          %s293 = sshll.u32 %s2, 4
          %s294 = int_to_ptr.hbm [resolvable:$true] %s293
          %s295 = sshll.u32 [#allocation7], 4
          %s296 = int_to_ptr.vmem [resolvable:$true] %s295
          %298 = dma.hbm_to_vmem [thread:$0]  %s294, 16, %s296, [#allocation6]
        $region20: #{tpu_custom_call.1} parent=11 // pred_fallthru
          _
        // Predicated region
        $region21: #{tpu_custom_call.1} parent=11 // pred_check
          %p299 = pneg %p117
        $region22: #{tpu_custom_call.1} parent=11 // pred_check_branch
          %301 = sbr.rel (%p299) target = $region24
        $region23: #{tpu_custom_call.1} parent=11 // pred_region
          %303 = vsyncadd [#allocation9], 0
          %s304 = sshll.u32 %s3, 4
          %s305 = int_to_ptr.hbm [resolvable:$true] %s304
          %s306 = sshll.u32 [#allocation8], 4
          %s307 = int_to_ptr.vmem [resolvable:$true] %s306
          %312 = dma.hbm_to_vmem [thread:$0]  %s305, 1024, %s307, [#allocation9], 64, 64, 4
        $region24: #{tpu_custom_call.1} parent=11 // pred_fallthru
          _
        // Predicated region
        $region25: #{tpu_custom_call.1} parent=11 // pred_check
          %p313 = pneg %p138
        $region26: #{tpu_custom_call.1} parent=11 // pred_check_branch
          %315 = sbr.rel (%p313) target = $region28
        $region27: #{tpu_custom_call.1} parent=11 // pred_region
          %317 = vsyncadd [#allocation9], 0
          %s319 = sshll.u32 %s4, 4
          %s320 = int_to_ptr.hbm [resolvable:$true] %s319
          %s321 = sshll.u32 [#allocation10], 4
          %s322 = int_to_ptr.vmem [resolvable:$true] %s321
          %324 = dma.hbm_to_vmem [thread:$0]  %s320, 16, %s322, [#allocation9]
        $region28: #{tpu_custom_call.1} parent=11 // pred_fallthru
          _
        // Predicated region
        $region29: #{tpu_custom_call.1} parent=11 // pred_check
          %p325 = pneg %p159
        $region30: #{tpu_custom_call.1} parent=11 // pred_check_branch
          %327 = sbr.rel (%p325) target = $region32
        $region31: #{tpu_custom_call.1} parent=11 // pred_region
          %329 = vsyncadd [#allocation12], 0
          %s330 = sshll.u32 %s5, 4
          %s331 = int_to_ptr.hbm [resolvable:$true] %s330
          %s332 = sshll.u32 [#allocation11], 4
          %s333 = int_to_ptr.vmem [resolvable:$true] %s332
          %338 = dma.hbm_to_vmem [thread:$0]  %s331, 1024, %s333, [#allocation12], 128, 128, 8
        $region32: #{tpu_custom_call.1} parent=11 // pred_fallthru
          _
        // Predicated region
        $region33: #{tpu_custom_call.1} parent=11 // pred_check
          %p339 = pneg %p180
        $region34: #{tpu_custom_call.1} parent=11 // pred_check_branch
          %341 = sbr.rel (%p339) target = $region36
        $region35: #{tpu_custom_call.1} parent=11 // pred_region
          %343 = vsyncadd [#allocation12], 0
          %s345 = sshll.u32 %s6, 4
          %s346 = int_to_ptr.hbm [resolvable:$true] %s345
          %s347 = sshll.u32 [#allocation13], 4
          %s348 = int_to_ptr.vmem [resolvable:$true] %s347
          %350 = dma.hbm_to_vmem [thread:$0]  %s346, 32, %s348, [#allocation12]
        $region36: #{tpu_custom_call.1} parent=11 // pred_fallthru
          _
      $region12: #{tpu_custom_call.1} parent=5 // pred_fallthru
        _
      %p351 = scmp.lt.s32.totalorder %s28, 8
      // Predicated region
      $region37: #{tpu_custom_call.1} parent=5 // pred_check
        %p352 = pneg %p351
      $region38: #{tpu_custom_call.1} parent=5 // pred_check_branch
        %354 = sbr.rel (%p352) target = $region40
      $region39: #{tpu_custom_call.1} parent=5 // pred_region
        // Predicated region
        $region41: #{tpu_custom_call.1} parent=39 // pred_check
          %p355 = pneg %p48
        $region42: #{tpu_custom_call.1} parent=39 // pred_check_branch
          %357 = sbr.rel (%p355) target = $region44
        $region43: #{tpu_custom_call.1} parent=39 // pred_region
          %s358 = sand.u32 %s38, 1
          %s359 = scalar_lea.sflag [#allocation3], %s358
          %s360 = sand.u32 %s38, 1
          %s361 = smul.addr %s360, 512
          %s362 = scalar_lea.vmem [#allocation2], %s361
          %s363 = smul.u32 64, %s28
          %365 = vsyncadd %s359, 0
          %s366 = smul.addr %s363, 2
          %s367 = smul.addr %s366, 4
          %s368 = scalar_lea.hbm %s0, %s367
          %s369 = sshll.u32 %s368, 4
          %s370 = int_to_ptr.hbm [resolvable:$true] %s369
          %s371 = sshll.u32 %s362, 4
          %s372 = int_to_ptr.vmem [resolvable:$true] %s371
          %377 = dma.hbm_to_vmem [thread:$0]  %s370, 8192, %s372, %s359, 128, 128, 8
        $region44: #{tpu_custom_call.1} parent=39 // pred_fallthru
          _
        // Predicated region
        $region45: #{tpu_custom_call.1} parent=39 // pred_check
          %p378 = pneg %p200
        $region46: #{tpu_custom_call.1} parent=39 // pred_check_branch
          %380 = sbr.rel (%p378) target = $region48
        $region47: #{tpu_custom_call.1} parent=39 // pred_region
          %s381 = smul.u32 64, %s28
          %p382 = scmp.lt.s32.totalorder %s381, 511
          %s383 = scalar_select %p382, %s381, 511
          %s384 = smul.addr %s383, 4
          %s385 = scalar_lea.vmem %s7, %s384
          %s386 = smul.u32 64, %s28
        $region48: #{tpu_custom_call.1} parent=39 // pred_fallthru
          _
      $region40: #{tpu_custom_call.1} parent=5 // pred_fallthru
        _
      %p387 = scmp.le.s32.totalorder 1, %s28
      %p388 = scmp.lt.s32.totalorder %s28, 9
      %p389 = pnand %p387, %p388
      %p390 = pneg %p389
      // Predicated region
      $region49: #{tpu_custom_call.1} parent=5 // pred_check
        _
      $region50: #{tpu_custom_call.1} parent=5 // pred_check_branch
        %392 = sbr.rel (%p389) target = $region52
      $region51: #{tpu_custom_call.1} parent=5 // pred_region
        %s393 = ssub.s32 %s28, 1
        %s394 = sand.u32 %s41, 1
        %s395 = scalar_lea.sflag [#allocation3], %s394
        %s396 = sand.u32 %s41, 1
        %s397 = smul.addr %s396, 512
        %s398 = scalar_lea.vmem [#allocation2], %s397
        // Predicated region
        $region53: #{tpu_custom_call.1} parent=51 // pred_check
          %p399 = pneg %p54
        $region54: #{tpu_custom_call.1} parent=51 // pred_check_branch
          %401 = sbr.rel (%p399) target = $region56
        $region55: #{tpu_custom_call.1} parent=51 // pred_region
          %403 = dma.done %s395, 8192
        $region56: #{tpu_custom_call.1} parent=51 // pred_fallthru
          _
        // Predicated region
        $region57: #{tpu_custom_call.1} parent=51 // pred_check
          %p404 = pneg %p75
        $region58: #{tpu_custom_call.1} parent=51 // pred_check_branch
          %406 = sbr.rel (%p404) target = $region60
        $region59: #{tpu_custom_call.1} parent=51 // pred_region
          %408 = dma.done [#allocation6], 2048
        $region60: #{tpu_custom_call.1} parent=51 // pred_fallthru
          _
        // Predicated region
        $region61: #{tpu_custom_call.1} parent=51 // pred_check
          %p409 = pneg %p96
        $region62: #{tpu_custom_call.1} parent=51 // pred_check_branch
          %411 = sbr.rel (%p409) target = $region64
        $region63: #{tpu_custom_call.1} parent=51 // pred_region
          %413 = dma.done [#allocation6], 16
        $region64: #{tpu_custom_call.1} parent=51 // pred_fallthru
          _
        // Predicated region
        $region65: #{tpu_custom_call.1} parent=51 // pred_check
          %p414 = pneg %p117
        $region66: #{tpu_custom_call.1} parent=51 // pred_check_branch
          %416 = sbr.rel (%p414) target = $region68
        $region67: #{tpu_custom_call.1} parent=51 // pred_region
          %418 = dma.done [#allocation9], 1024
        $region68: #{tpu_custom_call.1} parent=51 // pred_fallthru
          _
        // Predicated region
        $region69: #{tpu_custom_call.1} parent=51 // pred_check
          %p419 = pneg %p138
        $region70: #{tpu_custom_call.1} parent=51 // pred_check_branch
          %421 = sbr.rel (%p419) target = $region72
        $region71: #{tpu_custom_call.1} parent=51 // pred_region
          %423 = dma.done [#allocation9], 16
        $region72: #{tpu_custom_call.1} parent=51 // pred_fallthru
          _
        // Predicated region
        $region73: #{tpu_custom_call.1} parent=51 // pred_check
          %p424 = pneg %p159
        $region74: #{tpu_custom_call.1} parent=51 // pred_check_branch
          %426 = sbr.rel (%p424) target = $region76
        $region75: #{tpu_custom_call.1} parent=51 // pred_region
          %428 = dma.done [#allocation12], 1024
        $region76: #{tpu_custom_call.1} parent=51 // pred_fallthru
          _
        // Predicated region
        $region77: #{tpu_custom_call.1} parent=51 // pred_check
          %p429 = pneg %p180
        $region78: #{tpu_custom_call.1} parent=51 // pred_check_branch
          %431 = sbr.rel (%p429) target = $region80
        $region79: #{tpu_custom_call.1} parent=51 // pred_region
          %433 = dma.done [#allocation12], 32
        $region80: #{tpu_custom_call.1} parent=51 // pred_fallthru
          _
        %s434 = sand.u32 %s41, 1
        %s435 = scalar_lea.sflag [#allocation3], %s434
        %s436 = sand.u32 %s41, 1
        %s437 = smul.addr %s436, 512
        %s438 = scalar_lea.vmem [#allocation2], %s437
        %p439 = pneg %p54
        %p440 = pneg %p51
        %p441 = pneg %p75
        %p442 = pneg %p72
        %p443 = pneg %p96
        %p444 = pneg %p93
        %p445 = pneg %p117
        %p446 = pneg %p114
        %p447 = pneg %p138
        %p448 = pneg %p135
        %p449 = pneg %p159
        %p450 = pneg %p156
        %p451 = pneg %p180
        %p452 = pneg %p177
        %s453 = smul.u32 64, %s33
        %p454 = scmp.lt.s32.totalorder %s453, 511
        %s455 = scalar_select %p454, %s453, 511
        %s456 = smul.addr %s455, 4
        %s457 = scalar_lea.vmem %s7, %s456
        %p458 = pneg %p206
        %p459 = pneg %p203
        %p460 = pneg %p232
        %p461 = pneg %p229
        %s462 = sand.u32 %s219, 1
        %s463 = scalar_lea.sflag [#allocation4], %s462
        %s464 = sand.u32 %s219, 1
        %s465 = smul.addr %s464, 512
        %s466 = scalar_lea.vmem [#allocation14], %s465
        %p467 = pneg %p258
        %p468 = pneg %p255
        %s469 = sand.u32 %s245, 1
        %s470 = scalar_lea.sflag [#allocation16], %s469
        %s471 = sand.u32 %s245, 1
        %s472 = smul.addr %s471, 512
        %s473 = scalar_lea.vmem [#allocation15], %s472
        %s474 = smul.u32 64, %s33
        %s475 = smul.u32 64, %s33
        %p476 = scmp.lt.s32.totalorder %s475, 511
        %s477 = scalar_select %p476, %s475, 511
        %s478 = smul.addr %s477, 4
        %s479 = scalar_lea.vmem %s7, %s478
        %s480 = smul.u32 64, %s33
        %s481 = smul.u32 64, %s33
        %s482 = smul.u32 64, %s33
        %v484 = vld [vmem:[%s398] sm:$0xff]
        %v485 = vld [vmem:[%s398 + $0x8] sm:$0xff]
        %v486 = vld [vmem:[%s398 + $0x10] sm:$0xff]
        %v487 = vld [vmem:[%s398 + $0x18] sm:$0xff]
        %v488 = vld [vmem:[%s398 + $0x20] sm:$0xff]
        %v489 = vld [vmem:[%s398 + $0x28] sm:$0xff]
        %v490 = vld [vmem:[%s398 + $0x30] sm:$0xff]
        %v491 = vld [vmem:[%s398 + $0x38] sm:$0xff]
        %v492 = vld [vmem:[%s398 + $0x40] sm:$0xff]
        %v493 = vld [vmem:[%s398 + $0x48] sm:$0xff]
        %v494 = vld [vmem:[%s398 + $0x50] sm:$0xff]
        %v495 = vld [vmem:[%s398 + $0x58] sm:$0xff]
        %v496 = vld [vmem:[%s398 + $0x60] sm:$0xff]
        %v497 = vld [vmem:[%s398 + $0x68] sm:$0xff]
        %v498 = vld [vmem:[%s398 + $0x70] sm:$0xff]
        %v499 = vld [vmem:[%s398 + $0x78] sm:$0xff]
        %v500 = vld [vmem:[%s398 + $0x80] sm:$0xff]
        %v501 = vld [vmem:[%s398 + $0x88] sm:$0xff]
        %v502 = vld [vmem:[%s398 + $0x90] sm:$0xff]
        %v503 = vld [vmem:[%s398 + $0x98] sm:$0xff]
        %v504 = vld [vmem:[%s398 + $0xa0] sm:$0xff]
        %v505 = vld [vmem:[%s398 + $0xa8] sm:$0xff]
        %v506 = vld [vmem:[%s398 + $0xb0] sm:$0xff]
        %v507 = vld [vmem:[%s398 + $0xb8] sm:$0xff]
        %v508 = vld [vmem:[%s398 + $0xc0] sm:$0xff]
        %v509 = vld [vmem:[%s398 + $0xc8] sm:$0xff]
        %v510 = vld [vmem:[%s398 + $0xd0] sm:$0xff]
        %v511 = vld [vmem:[%s398 + $0xd8] sm:$0xff]
        %v512 = vld [vmem:[%s398 + $0xe0] sm:$0xff]
        %v513 = vld [vmem:[%s398 + $0xe8] sm:$0xff]
        %v514 = vld [vmem:[%s398 + $0xf0] sm:$0xff]
        %v515 = vld [vmem:[%s398 + $0xf8] sm:$0xff]
        %v516 = vld [vmem:[%s398 + $0x100] sm:$0xff]
        %v517 = vld [vmem:[%s398 + $0x108] sm:$0xff]
        %v518 = vld [vmem:[%s398 + $0x110] sm:$0xff]
        %v519 = vld [vmem:[%s398 + $0x118] sm:$0xff]
        %v520 = vld [vmem:[%s398 + $0x120] sm:$0xff]
        %v521 = vld [vmem:[%s398 + $0x128] sm:$0xff]
        %v522 = vld [vmem:[%s398 + $0x130] sm:$0xff]
        %v523 = vld [vmem:[%s398 + $0x138] sm:$0xff]
        %v524 = vld [vmem:[%s398 + $0x140] sm:$0xff]
        %v525 = vld [vmem:[%s398 + $0x148] sm:$0xff]
        %v526 = vld [vmem:[%s398 + $0x150] sm:$0xff]
        %v527 = vld [vmem:[%s398 + $0x158] sm:$0xff]
        %v528 = vld [vmem:[%s398 + $0x160] sm:$0xff]
        %v529 = vld [vmem:[%s398 + $0x168] sm:$0xff]
        %v530 = vld [vmem:[%s398 + $0x170] sm:$0xff]
        %v531 = vld [vmem:[%s398 + $0x178] sm:$0xff]
        %v532 = vld [vmem:[%s398 + $0x180] sm:$0xff]
        %v533 = vld [vmem:[%s398 + $0x188] sm:$0xff]
        %v534 = vld [vmem:[%s398 + $0x190] sm:$0xff]
        %v535 = vld [vmem:[%s398 + $0x198] sm:$0xff]
        %v536 = vld [vmem:[%s398 + $0x1a0] sm:$0xff]
        %v537 = vld [vmem:[%s398 + $0x1a8] sm:$0xff]
        %v538 = vld [vmem:[%s398 + $0x1b0] sm:$0xff]
        %v539 = vld [vmem:[%s398 + $0x1b8] sm:$0xff]
        %v540 = vld [vmem:[%s398 + $0x1c0] sm:$0xff]
        %v541 = vld [vmem:[%s398 + $0x1c8] sm:$0xff]
        %v542 = vld [vmem:[%s398 + $0x1d0] sm:$0xff]
        %v543 = vld [vmem:[%s398 + $0x1d8] sm:$0xff]
        %v544 = vld [vmem:[%s398 + $0x1e0] sm:$0xff]
        %v545 = vld [vmem:[%s398 + $0x1e8] sm:$0xff]
        %v546 = vld [vmem:[%s398 + $0x1f0] sm:$0xff]
        %v547 = vld [vmem:[%s398 + $0x1f8] sm:$0xff]
        %v548 = vld [vmem:[#allocation5] sm:$0xf]
        %v549 = vld [vmem:[#allocation5 + $0x4] sm:$0xf]
        %v550 = vld [vmem:[#allocation5 + $0x8] sm:$0xf]
        %v551 = vld [vmem:[#allocation5 + $0xc] sm:$0xf]
        %v552 = vld [vmem:[#allocation5 + $0x10] sm:$0xf]
        %v553 = vld [vmem:[#allocation5 + $0x14] sm:$0xf]
        %v554 = vld [vmem:[#allocation5 + $0x18] sm:$0xf]
        %v555 = vld [vmem:[#allocation5 + $0x1c] sm:$0xf]
        %v556 = vld [vmem:[#allocation5 + $0x20] sm:$0xf]
        %v557 = vld [vmem:[#allocation5 + $0x24] sm:$0xf]
        %v558 = vld [vmem:[#allocation5 + $0x28] sm:$0xf]
        %v559 = vld [vmem:[#allocation5 + $0x2c] sm:$0xf]
        %v560 = vld [vmem:[#allocation5 + $0x30] sm:$0xf]
        %v561 = vld [vmem:[#allocation5 + $0x34] sm:$0xf]
        %v562 = vld [vmem:[#allocation5 + $0x38] sm:$0xf]
        %v563 = vld [vmem:[#allocation5 + $0x3c] sm:$0xf]
        %v564 = vld [vmem:[#allocation5 + $0x40] sm:$0xf]
        %v565 = vld [vmem:[#allocation5 + $0x44] sm:$0xf]
        %v566 = vld [vmem:[#allocation5 + $0x48] sm:$0xf]
        %v567 = vld [vmem:[#allocation5 + $0x4c] sm:$0xf]
        %v568 = vld [vmem:[#allocation5 + $0x50] sm:$0xf]
        %v569 = vld [vmem:[#allocation5 + $0x54] sm:$0xf]
        %v570 = vld [vmem:[#allocation5 + $0x58] sm:$0xf]
        %v571 = vld [vmem:[#allocation5 + $0x5c] sm:$0xf]
        %v572 = vld [vmem:[#allocation5 + $0x60] sm:$0xf]
        %v573 = vld [vmem:[#allocation5 + $0x64] sm:$0xf]
        %v574 = vld [vmem:[#allocation5 + $0x68] sm:$0xf]
        %v575 = vld [vmem:[#allocation5 + $0x6c] sm:$0xf]
        %v576 = vld [vmem:[#allocation5 + $0x70] sm:$0xf]
        %v577 = vld [vmem:[#allocation5 + $0x74] sm:$0xf]
        %v578 = vld [vmem:[#allocation5 + $0x78] sm:$0xf]
        %v579 = vld [vmem:[#allocation5 + $0x7c] sm:$0xf]
        %v580 = vld [vmem:[#allocation7] sm:$0x1]
        %v582 = vperm.slane %v580, 0
        %v648 = vunpack.c.l.b16 %v484
        %v649 = vunpack.c.h.b16 %v484
        %v650 = vunpack.c.l.b16 %v485
        %v651 = vunpack.c.h.b16 %v485
        %v652 = vunpack.c.l.b16 %v486
        %v653 = vunpack.c.h.b16 %v486
        %v654 = vunpack.c.l.b16 %v487
        %v655 = vunpack.c.h.b16 %v487
        %v656 = vunpack.c.l.b16 %v488
        %v657 = vunpack.c.h.b16 %v488
        %v658 = vunpack.c.l.b16 %v489
        %v659 = vunpack.c.h.b16 %v489
        %v660 = vunpack.c.l.b16 %v490
        %v661 = vunpack.c.h.b16 %v490
        %v662 = vunpack.c.l.b16 %v491
        %v663 = vunpack.c.h.b16 %v491
        %v664 = vunpack.c.l.b16 %v492
        %v665 = vunpack.c.h.b16 %v492
        %v666 = vunpack.c.l.b16 %v493
        %v667 = vunpack.c.h.b16 %v493
        %v668 = vunpack.c.l.b16 %v494
        %v669 = vunpack.c.h.b16 %v494
        %v670 = vunpack.c.l.b16 %v495
        %v671 = vunpack.c.h.b16 %v495
        %v672 = vunpack.c.l.b16 %v496
        %v673 = vunpack.c.h.b16 %v496
        %v674 = vunpack.c.l.b16 %v497
        %v675 = vunpack.c.h.b16 %v497
        %v676 = vunpack.c.l.b16 %v498
        %v677 = vunpack.c.h.b16 %v498
        %v678 = vunpack.c.l.b16 %v499
        %v679 = vunpack.c.h.b16 %v499
        %v680 = vunpack.c.l.b16 %v500
        %v681 = vunpack.c.h.b16 %v500
        %v682 = vunpack.c.l.b16 %v501
        %v683 = vunpack.c.h.b16 %v501
        %v684 = vunpack.c.l.b16 %v502
        %v685 = vunpack.c.h.b16 %v502
        %v686 = vunpack.c.l.b16 %v503
        %v687 = vunpack.c.h.b16 %v503
        %v688 = vunpack.c.l.b16 %v504
        %v689 = vunpack.c.h.b16 %v504
        %v690 = vunpack.c.l.b16 %v505
        %v691 = vunpack.c.h.b16 %v505
        %v692 = vunpack.c.l.b16 %v506
        %v693 = vunpack.c.h.b16 %v506
        %v694 = vunpack.c.l.b16 %v507
        %v695 = vunpack.c.h.b16 %v507
        %v696 = vunpack.c.l.b16 %v508
        %v697 = vunpack.c.h.b16 %v508
        %v698 = vunpack.c.l.b16 %v509
        %v699 = vunpack.c.h.b16 %v509
        %v700 = vunpack.c.l.b16 %v510
        %v701 = vunpack.c.h.b16 %v510
        %v702 = vunpack.c.l.b16 %v511
        %v703 = vunpack.c.h.b16 %v511
        %v704 = vunpack.c.l.b16 %v512
        %v705 = vunpack.c.h.b16 %v512
        %v706 = vunpack.c.l.b16 %v513
        %v707 = vunpack.c.h.b16 %v513
        %v708 = vunpack.c.l.b16 %v514
        %v709 = vunpack.c.h.b16 %v514
        %v710 = vunpack.c.l.b16 %v515
        %v711 = vunpack.c.h.b16 %v515
        %v712 = vunpack.c.l.b16 %v516
        %v713 = vunpack.c.h.b16 %v516
        %v714 = vunpack.c.l.b16 %v517
        %v715 = vunpack.c.h.b16 %v517
        %v716 = vunpack.c.l.b16 %v518
        %v717 = vunpack.c.h.b16 %v518
        %v718 = vunpack.c.l.b16 %v519
        %v719 = vunpack.c.h.b16 %v519
        %v720 = vunpack.c.l.b16 %v520
        %v721 = vunpack.c.h.b16 %v520
        %v722 = vunpack.c.l.b16 %v521
        %v723 = vunpack.c.h.b16 %v521
        %v724 = vunpack.c.l.b16 %v522
        %v725 = vunpack.c.h.b16 %v522
        %v726 = vunpack.c.l.b16 %v523
        %v727 = vunpack.c.h.b16 %v523
        %v728 = vunpack.c.l.b16 %v524
        %v729 = vunpack.c.h.b16 %v524
        %v730 = vunpack.c.l.b16 %v525
        %v731 = vunpack.c.h.b16 %v525
        %v732 = vunpack.c.l.b16 %v526
        %v733 = vunpack.c.h.b16 %v526
        %v734 = vunpack.c.l.b16 %v527
        %v735 = vunpack.c.h.b16 %v527
        %v736 = vunpack.c.l.b16 %v528
        %v737 = vunpack.c.h.b16 %v528
        %v738 = vunpack.c.l.b16 %v529
        %v739 = vunpack.c.h.b16 %v529
        %v740 = vunpack.c.l.b16 %v530
        %v741 = vunpack.c.h.b16 %v530
        %v742 = vunpack.c.l.b16 %v531
        %v743 = vunpack.c.h.b16 %v531
        %v744 = vunpack.c.l.b16 %v532
        %v745 = vunpack.c.h.b16 %v532
        %v746 = vunpack.c.l.b16 %v533
        %v747 = vunpack.c.h.b16 %v533
        %v748 = vunpack.c.l.b16 %v534
        %v749 = vunpack.c.h.b16 %v534
        %v750 = vunpack.c.l.b16 %v535
        %v751 = vunpack.c.h.b16 %v535
        %v752 = vunpack.c.l.b16 %v536
        %v753 = vunpack.c.h.b16 %v536
        %v754 = vunpack.c.l.b16 %v537
        %v755 = vunpack.c.h.b16 %v537
        %v756 = vunpack.c.l.b16 %v538
        %v757 = vunpack.c.h.b16 %v538
        %v758 = vunpack.c.l.b16 %v539
        %v759 = vunpack.c.h.b16 %v539
        %v760 = vunpack.c.l.b16 %v540
        %v761 = vunpack.c.h.b16 %v540
        %v762 = vunpack.c.l.b16 %v541
        %v763 = vunpack.c.h.b16 %v541
        %v764 = vunpack.c.l.b16 %v542
        %v765 = vunpack.c.h.b16 %v542
        %v766 = vunpack.c.l.b16 %v543
        %v767 = vunpack.c.h.b16 %v543
        %v768 = vunpack.c.l.b16 %v544
        %v769 = vunpack.c.h.b16 %v544
        %v770 = vunpack.c.l.b16 %v545
        %v771 = vunpack.c.h.b16 %v545
        %v772 = vunpack.c.l.b16 %v546
        %v773 = vunpack.c.h.b16 %v546
        %v774 = vunpack.c.l.b16 %v547
        %v775 = vunpack.c.h.b16 %v547
        %v776 = vpack.c.b16 %v650, %v648
        %v777 = vpack.c.b16 %v651, %v649
        %v778 = vpack.c.b16 %v654, %v652
        %v779 = vpack.c.b16 %v655, %v653
        %v780 = vpack.c.b16 %v658, %v656
        %v781 = vpack.c.b16 %v659, %v657
        %v782 = vpack.c.b16 %v662, %v660
        %v783 = vpack.c.b16 %v663, %v661
        %v784 = vpack.c.b16 %v666, %v664
        %v785 = vpack.c.b16 %v667, %v665
        %v786 = vpack.c.b16 %v670, %v668
        %v787 = vpack.c.b16 %v671, %v669
        %v788 = vpack.c.b16 %v674, %v672
        %v789 = vpack.c.b16 %v675, %v673
        %v790 = vpack.c.b16 %v678, %v676
        %v791 = vpack.c.b16 %v679, %v677
        %v792 = vpack.c.b16 %v682, %v680
        %v793 = vpack.c.b16 %v683, %v681
        %v794 = vpack.c.b16 %v686, %v684
        %v795 = vpack.c.b16 %v687, %v685
        %v796 = vpack.c.b16 %v690, %v688
        %v797 = vpack.c.b16 %v691, %v689
        %v798 = vpack.c.b16 %v694, %v692
        %v799 = vpack.c.b16 %v695, %v693
        %v800 = vpack.c.b16 %v698, %v696
        %v801 = vpack.c.b16 %v699, %v697
        %v802 = vpack.c.b16 %v702, %v700
        %v803 = vpack.c.b16 %v703, %v701
        %v804 = vpack.c.b16 %v706, %v704
        %v805 = vpack.c.b16 %v707, %v705
        %v806 = vpack.c.b16 %v710, %v708
        %v807 = vpack.c.b16 %v711, %v709
        %v808 = vpack.c.b16 %v714, %v712
        %v809 = vpack.c.b16 %v715, %v713
        %v810 = vpack.c.b16 %v718, %v716
        %v811 = vpack.c.b16 %v719, %v717
        %v812 = vpack.c.b16 %v722, %v720
        %v813 = vpack.c.b16 %v723, %v721
        %v814 = vpack.c.b16 %v726, %v724
        %v815 = vpack.c.b16 %v727, %v725
        %v816 = vpack.c.b16 %v730, %v728
        %v817 = vpack.c.b16 %v731, %v729
        %v818 = vpack.c.b16 %v734, %v732
        %v819 = vpack.c.b16 %v735, %v733
        %v820 = vpack.c.b16 %v738, %v736
        %v821 = vpack.c.b16 %v739, %v737
        %v822 = vpack.c.b16 %v742, %v740
        %v823 = vpack.c.b16 %v743, %v741
        %v824 = vpack.c.b16 %v746, %v744
        %v825 = vpack.c.b16 %v747, %v745
        %v826 = vpack.c.b16 %v750, %v748
        %v827 = vpack.c.b16 %v751, %v749
        %v828 = vpack.c.b16 %v754, %v752
        %v829 = vpack.c.b16 %v755, %v753
        %v830 = vpack.c.b16 %v758, %v756
        %v831 = vpack.c.b16 %v759, %v757
        %v832 = vpack.c.b16 %v762, %v760
        %v833 = vpack.c.b16 %v763, %v761
        %v834 = vpack.c.b16 %v766, %v764
        %v835 = vpack.c.b16 %v767, %v765
        %v836 = vpack.c.b16 %v770, %v768
        %v837 = vpack.c.b16 %v771, %v769
        %v838 = vpack.c.b16 %v774, %v772
        %v839 = vpack.c.b16 %v775, %v773
        %v936 = vunpack.c.l.b16 %v548
        %v937 = vunpack.c.l.b16 %v549
        %v938 = vunpack.c.l.b16 %v550
        %v939 = vunpack.c.l.b16 %v551
        %v940 = vunpack.c.l.b16 %v552
        %v941 = vunpack.c.l.b16 %v553
        %v942 = vunpack.c.l.b16 %v554
        %v943 = vunpack.c.l.b16 %v555
        %v944 = vunpack.c.l.b16 %v556
        %v945 = vunpack.c.l.b16 %v557
        %v946 = vunpack.c.l.b16 %v558
        %v947 = vunpack.c.l.b16 %v559
        %v948 = vunpack.c.l.b16 %v560
        %v949 = vunpack.c.l.b16 %v561
        %v950 = vunpack.c.l.b16 %v562
        %v951 = vunpack.c.l.b16 %v563
        %v952 = vunpack.c.l.b16 %v564
        %v953 = vunpack.c.l.b16 %v565
        %v954 = vunpack.c.l.b16 %v566
        %v955 = vunpack.c.l.b16 %v567
        %v956 = vunpack.c.l.b16 %v568
        %v957 = vunpack.c.l.b16 %v569
        %v958 = vunpack.c.l.b16 %v570
        %v959 = vunpack.c.l.b16 %v571
        %v960 = vunpack.c.l.b16 %v572
        %v961 = vunpack.c.l.b16 %v573
        %v962 = vunpack.c.l.b16 %v574
        %v963 = vunpack.c.l.b16 %v575
        %v964 = vunpack.c.l.b16 %v576
        %v965 = vunpack.c.l.b16 %v577
        %v966 = vunpack.c.l.b16 %v578
        %v967 = vunpack.c.l.b16 %v579
        %v968 = vpack.c.b16 %v937, %v936
        %v969 = vpack.c.b16 %v939, %v938
        %v970 = vpack.c.b16 %v941, %v940
        %v971 = vpack.c.b16 %v943, %v942
        %v972 = vpack.c.b16 %v945, %v944
        %v973 = vpack.c.b16 %v947, %v946
        %v974 = vpack.c.b16 %v949, %v948
        %v975 = vpack.c.b16 %v951, %v950
        %v976 = vpack.c.b16 %v953, %v952
        %v977 = vpack.c.b16 %v955, %v954
        %v978 = vpack.c.b16 %v957, %v956
        %v979 = vpack.c.b16 %v959, %v958
        %v980 = vpack.c.b16 %v961, %v960
        %v981 = vpack.c.b16 %v963, %v962
        %v982 = vpack.c.b16 %v965, %v964
        %v983 = vpack.c.b16 %v967, %v966
        %1000 = vmatpush.bf16.msra.mxu0 %v975
        %1001 = vmatpush.bf16.msra.mxu0 %v974
        %1002 = vmatpush.bf16.msra.mxu0 %v973
        %1003 = vmatpush.bf16.msra.mxu0 %v972
        %1004 = vmatpush.bf16.msra.mxu0 %v971
        %1005 = vmatpush.bf16.msra.mxu0 %v970
        %1006 = vmatpush.bf16.msra.mxu0 %v969
        %1007 = vmatpush.bf16.msra.mxu0 %v968
        %1008 = vmatmul.bf16.gmra.mxu0 %v776
        %v1009 = vpop.f32.mrf.mxu0
        %v1010 = vadd.f32 %v582, %v1009
        %v1011 = vpop.f32.mrf.mxu0
        %v1012 = vadd.f32 %v582, %v1011
        %1013 = vmatmul.bf16.gmra.mxu0 %v778
        %v1014 = vpop.f32.mrf.mxu0
        %v1015 = vadd.f32 %v582, %v1014
        %v1016 = vpop.f32.mrf.mxu0
        %v1017 = vadd.f32 %v582, %v1016
        %1018 = vmatmul.bf16.gmra.mxu0 %v780
        %v1019 = vpop.f32.mrf.mxu0
        %v1020 = vadd.f32 %v582, %v1019
        %v1021 = vpop.f32.mrf.mxu0
        %v1022 = vadd.f32 %v582, %v1021
        %1023 = vmatmul.bf16.gmra.mxu0 %v782
        %v1024 = vpop.f32.mrf.mxu0
        %v1025 = vadd.f32 %v582, %v1024
        %v1026 = vpop.f32.mrf.mxu0
        %v1027 = vadd.f32 %v582, %v1026
        %1028 = vmatmul.bf16.gmra.mxu0 %v784
        %v1029 = vpop.f32.mrf.mxu0
        %v1030 = vadd.f32 %v582, %v1029
        %v1031 = vpop.f32.mrf.mxu0
        %v1032 = vadd.f32 %v582, %v1031
        %1033 = vmatmul.bf16.gmra.mxu0 %v786
        %v1034 = vpop.f32.mrf.mxu0
        %v1035 = vadd.f32 %v582, %v1034
        %v1036 = vpop.f32.mrf.mxu0
        %v1037 = vadd.f32 %v582, %v1036
        %1038 = vmatmul.bf16.gmra.mxu0 %v788
        %v1039 = vpop.f32.mrf.mxu0
        %v1040 = vadd.f32 %v582, %v1039
        %v1041 = vpop.f32.mrf.mxu0
        %v1042 = vadd.f32 %v582, %v1041
        %1043 = vmatmul.bf16.gmra.mxu0 %v790
        %v1044 = vpop.f32.mrf.mxu0
        %v1045 = vadd.f32 %v582, %v1044
        %v1046 = vpop.f32.mrf.mxu0
        %v1047 = vadd.f32 %v582, %v1046
        %1048 = vmatmul.bf16.gmra.mxu0 %v792
        %v1049 = vpop.f32.mrf.mxu0
        %v1050 = vadd.f32 %v582, %v1049
        %v1051 = vpop.f32.mrf.mxu0
        %v1052 = vadd.f32 %v582, %v1051
        %1053 = vmatmul.bf16.gmra.mxu0 %v794
        %v1054 = vpop.f32.mrf.mxu0
        %v1055 = vadd.f32 %v582, %v1054
        %v1056 = vpop.f32.mrf.mxu0
        %v1057 = vadd.f32 %v582, %v1056
        %1058 = vmatmul.bf16.gmra.mxu0 %v796
        %v1059 = vpop.f32.mrf.mxu0
        %v1060 = vadd.f32 %v582, %v1059
        %v1061 = vpop.f32.mrf.mxu0
        %v1062 = vadd.f32 %v582, %v1061
        %1063 = vmatmul.bf16.gmra.mxu0 %v798
        %v1064 = vpop.f32.mrf.mxu0
        %v1065 = vadd.f32 %v582, %v1064
        %v1066 = vpop.f32.mrf.mxu0
        %v1067 = vadd.f32 %v582, %v1066
        %1068 = vmatmul.bf16.gmra.mxu0 %v800
        %v1069 = vpop.f32.mrf.mxu0
        %v1070 = vadd.f32 %v582, %v1069
        %v1071 = vpop.f32.mrf.mxu0
        %v1072 = vadd.f32 %v582, %v1071
        %1073 = vmatmul.bf16.gmra.mxu0 %v802
        %v1074 = vpop.f32.mrf.mxu0
        %v1075 = vadd.f32 %v582, %v1074
        %v1076 = vpop.f32.mrf.mxu0
        %v1077 = vadd.f32 %v582, %v1076
        %1078 = vmatmul.bf16.gmra.mxu0 %v804
        %v1079 = vpop.f32.mrf.mxu0
        %v1080 = vadd.f32 %v582, %v1079
        %v1081 = vpop.f32.mrf.mxu0
        %v1082 = vadd.f32 %v582, %v1081
        %1083 = vmatmul.bf16.gmra.mxu0 %v806
        %v1084 = vpop.f32.mrf.mxu0
        %v1085 = vadd.f32 %v582, %v1084
        %v1086 = vpop.f32.mrf.mxu0
        %v1087 = vadd.f32 %v582, %v1086
        %1088 = vmatmul.bf16.gmra.mxu0 %v808
        %v1089 = vpop.f32.mrf.mxu0
        %v1090 = vadd.f32 %v582, %v1089
        %v1091 = vpop.f32.mrf.mxu0
        %v1092 = vadd.f32 %v582, %v1091
        %1093 = vmatmul.bf16.gmra.mxu0 %v810
        %v1094 = vpop.f32.mrf.mxu0
        %v1095 = vadd.f32 %v582, %v1094
        %v1096 = vpop.f32.mrf.mxu0
        %v1097 = vadd.f32 %v582, %v1096
        %1098 = vmatmul.bf16.gmra.mxu0 %v812
        %v1099 = vpop.f32.mrf.mxu0
        %v1100 = vadd.f32 %v582, %v1099
        %v1101 = vpop.f32.mrf.mxu0
        %v1102 = vadd.f32 %v582, %v1101
        %1103 = vmatmul.bf16.gmra.mxu0 %v814
        %v1104 = vpop.f32.mrf.mxu0
        %v1105 = vadd.f32 %v582, %v1104
        %v1106 = vpop.f32.mrf.mxu0
        %v1107 = vadd.f32 %v582, %v1106
        %1108 = vmatmul.bf16.gmra.mxu0 %v816
        %v1109 = vpop.f32.mrf.mxu0
        %v1110 = vadd.f32 %v582, %v1109
        %v1111 = vpop.f32.mrf.mxu0
        %v1112 = vadd.f32 %v582, %v1111
        %1113 = vmatmul.bf16.gmra.mxu0 %v818
        %v1114 = vpop.f32.mrf.mxu0
        %v1115 = vadd.f32 %v582, %v1114
        %v1116 = vpop.f32.mrf.mxu0
        %v1117 = vadd.f32 %v582, %v1116
        %1118 = vmatmul.bf16.gmra.mxu0 %v820
        %v1119 = vpop.f32.mrf.mxu0
        %v1120 = vadd.f32 %v582, %v1119
        %v1121 = vpop.f32.mrf.mxu0
        %v1122 = vadd.f32 %v582, %v1121
        %1123 = vmatmul.bf16.gmra.mxu0 %v822
        %v1124 = vpop.f32.mrf.mxu0
        %v1125 = vadd.f32 %v582, %v1124
        %v1126 = vpop.f32.mrf.mxu0
        %v1127 = vadd.f32 %v582, %v1126
        %1128 = vmatmul.bf16.gmra.mxu0 %v824
        %v1129 = vpop.f32.mrf.mxu0
        %v1130 = vadd.f32 %v582, %v1129
        %v1131 = vpop.f32.mrf.mxu0
        %v1132 = vadd.f32 %v582, %v1131
        %1133 = vmatmul.bf16.gmra.mxu0 %v826
        %v1134 = vpop.f32.mrf.mxu0
        %v1135 = vadd.f32 %v582, %v1134
        %v1136 = vpop.f32.mrf.mxu0
        %v1137 = vadd.f32 %v582, %v1136
        %1138 = vmatmul.bf16.gmra.mxu0 %v828
        %v1139 = vpop.f32.mrf.mxu0
        %v1140 = vadd.f32 %v582, %v1139
        %v1141 = vpop.f32.mrf.mxu0
        %v1142 = vadd.f32 %v582, %v1141
        %1143 = vmatmul.bf16.gmra.mxu0 %v830
        %v1144 = vpop.f32.mrf.mxu0
        %v1145 = vadd.f32 %v582, %v1144
        %v1146 = vpop.f32.mrf.mxu0
        %v1147 = vadd.f32 %v582, %v1146
        %1148 = vmatmul.bf16.gmra.mxu0 %v832
        %v1149 = vpop.f32.mrf.mxu0
        %v1150 = vadd.f32 %v582, %v1149
        %v1151 = vpop.f32.mrf.mxu0
        %v1152 = vadd.f32 %v582, %v1151
        %1153 = vmatmul.bf16.gmra.mxu0 %v834
        %v1154 = vpop.f32.mrf.mxu0
        %v1155 = vadd.f32 %v582, %v1154
        %v1156 = vpop.f32.mrf.mxu0
        %v1157 = vadd.f32 %v582, %v1156
        %1158 = vmatmul.bf16.gmra.mxu0 %v836
        %v1159 = vpop.f32.mrf.mxu0
        %v1160 = vadd.f32 %v582, %v1159
        %v1161 = vpop.f32.mrf.mxu0
        %v1162 = vadd.f32 %v582, %v1161
        %1163 = vmatmul.bf16.gmra.mxu0 %v838
        %v1164 = vpop.f32.mrf.mxu0
        %v1165 = vadd.f32 %v582, %v1164
        %v1166 = vpop.f32.mrf.mxu0
        %v1167 = vadd.f32 %v582, %v1166
        %1168 = vdwg.mxu0
        %1169 = vmatpush.bf16.msra.mxu0 %v983
        %1170 = vmatpush.bf16.msra.mxu0 %v982
        %1171 = vmatpush.bf16.msra.mxu0 %v981
        %1172 = vmatpush.bf16.msra.mxu0 %v980
        %1173 = vmatpush.bf16.msra.mxu0 %v979
        %1174 = vmatpush.bf16.msra.mxu0 %v978
        %1175 = vmatpush.bf16.msra.mxu0 %v977
        %1176 = vmatpush.bf16.msra.mxu0 %v976
        %1177 = vmatmul.bf16.gmra.mxu0 %v777
        %v1178 = vpop.f32.mrf.mxu0
        %v1179 = vadd.f32 %v1010, %v1178
        %v1180 = vpop.f32.mrf.mxu0
        %v1181 = vadd.f32 %v1012, %v1180
        %1182 = vmatmul.bf16.gmra.mxu0 %v779
        %v1183 = vpop.f32.mrf.mxu0
        %v1184 = vadd.f32 %v1015, %v1183
        %v1185 = vpop.f32.mrf.mxu0
        %v1186 = vadd.f32 %v1017, %v1185
        %1187 = vmatmul.bf16.gmra.mxu0 %v781
        %v1188 = vpop.f32.mrf.mxu0
        %v1189 = vadd.f32 %v1020, %v1188
        %v1190 = vpop.f32.mrf.mxu0
        %v1191 = vadd.f32 %v1022, %v1190
        %1192 = vmatmul.bf16.gmra.mxu0 %v783
        %v1193 = vpop.f32.mrf.mxu0
        %v1194 = vadd.f32 %v1025, %v1193
        %v1195 = vpop.f32.mrf.mxu0
        %v1196 = vadd.f32 %v1027, %v1195
        %1197 = vmatmul.bf16.gmra.mxu0 %v785
        %v1198 = vpop.f32.mrf.mxu0
        %v1199 = vadd.f32 %v1030, %v1198
        %v1200 = vpop.f32.mrf.mxu0
        %v1201 = vadd.f32 %v1032, %v1200
        %1202 = vmatmul.bf16.gmra.mxu0 %v787
        %v1203 = vpop.f32.mrf.mxu0
        %v1204 = vadd.f32 %v1035, %v1203
        %v1205 = vpop.f32.mrf.mxu0
        %v1206 = vadd.f32 %v1037, %v1205
        %1207 = vmatmul.bf16.gmra.mxu0 %v789
        %v1208 = vpop.f32.mrf.mxu0
        %v1209 = vadd.f32 %v1040, %v1208
        %v1210 = vpop.f32.mrf.mxu0
        %v1211 = vadd.f32 %v1042, %v1210
        %1212 = vmatmul.bf16.gmra.mxu0 %v791
        %v1213 = vpop.f32.mrf.mxu0
        %v1214 = vadd.f32 %v1045, %v1213
        %v1215 = vpop.f32.mrf.mxu0
        %v1216 = vadd.f32 %v1047, %v1215
        %1217 = vmatmul.bf16.gmra.mxu0 %v793
        %v1218 = vpop.f32.mrf.mxu0
        %v1219 = vadd.f32 %v1050, %v1218
        %v1220 = vpop.f32.mrf.mxu0
        %v1221 = vadd.f32 %v1052, %v1220
        %1222 = vmatmul.bf16.gmra.mxu0 %v795
        %v1223 = vpop.f32.mrf.mxu0
        %v1224 = vadd.f32 %v1055, %v1223
        %v1225 = vpop.f32.mrf.mxu0
        %v1226 = vadd.f32 %v1057, %v1225
        %1227 = vmatmul.bf16.gmra.mxu0 %v797
        %v1228 = vpop.f32.mrf.mxu0
        %v1229 = vadd.f32 %v1060, %v1228
        %v1230 = vpop.f32.mrf.mxu0
        %v1231 = vadd.f32 %v1062, %v1230
        %1232 = vmatmul.bf16.gmra.mxu0 %v799
        %v1233 = vpop.f32.mrf.mxu0
        %v1234 = vadd.f32 %v1065, %v1233
        %v1235 = vpop.f32.mrf.mxu0
        %v1236 = vadd.f32 %v1067, %v1235
        %1237 = vmatmul.bf16.gmra.mxu0 %v801
        %v1238 = vpop.f32.mrf.mxu0
        %v1239 = vadd.f32 %v1070, %v1238
        %v1240 = vpop.f32.mrf.mxu0
        %v1241 = vadd.f32 %v1072, %v1240
        %1242 = vmatmul.bf16.gmra.mxu0 %v803
        %v1243 = vpop.f32.mrf.mxu0
        %v1244 = vadd.f32 %v1075, %v1243
        %v1245 = vpop.f32.mrf.mxu0
        %v1246 = vadd.f32 %v1077, %v1245
        %1247 = vmatmul.bf16.gmra.mxu0 %v805
        %v1248 = vpop.f32.mrf.mxu0
        %v1249 = vadd.f32 %v1080, %v1248
        %v1250 = vpop.f32.mrf.mxu0
        %v1251 = vadd.f32 %v1082, %v1250
        %1252 = vmatmul.bf16.gmra.mxu0 %v807
        %v1253 = vpop.f32.mrf.mxu0
        %v1254 = vadd.f32 %v1085, %v1253
        %v1255 = vpop.f32.mrf.mxu0
        %v1256 = vadd.f32 %v1087, %v1255
        %1257 = vmatmul.bf16.gmra.mxu0 %v809
        %v1258 = vpop.f32.mrf.mxu0
        %v1259 = vadd.f32 %v1090, %v1258
        %v1260 = vpop.f32.mrf.mxu0
        %v1261 = vadd.f32 %v1092, %v1260
        %1262 = vmatmul.bf16.gmra.mxu0 %v811
        %v1263 = vpop.f32.mrf.mxu0
        %v1264 = vadd.f32 %v1095, %v1263
        %v1265 = vpop.f32.mrf.mxu0
        %v1266 = vadd.f32 %v1097, %v1265
        %1267 = vmatmul.bf16.gmra.mxu0 %v813
        %v1268 = vpop.f32.mrf.mxu0
        %v1269 = vadd.f32 %v1100, %v1268
        %v1270 = vpop.f32.mrf.mxu0
        %v1271 = vadd.f32 %v1102, %v1270
        %1272 = vmatmul.bf16.gmra.mxu0 %v815
        %v1273 = vpop.f32.mrf.mxu0
        %v1274 = vadd.f32 %v1105, %v1273
        %v1275 = vpop.f32.mrf.mxu0
        %v1276 = vadd.f32 %v1107, %v1275
        %1277 = vmatmul.bf16.gmra.mxu0 %v817
        %v1278 = vpop.f32.mrf.mxu0
        %v1279 = vadd.f32 %v1110, %v1278
        %v1280 = vpop.f32.mrf.mxu0
        %v1281 = vadd.f32 %v1112, %v1280
        %1282 = vmatmul.bf16.gmra.mxu0 %v819
        %v1283 = vpop.f32.mrf.mxu0
        %v1284 = vadd.f32 %v1115, %v1283
        %v1285 = vpop.f32.mrf.mxu0
        %v1286 = vadd.f32 %v1117, %v1285
        %1287 = vmatmul.bf16.gmra.mxu0 %v821
        %v1288 = vpop.f32.mrf.mxu0
        %v1289 = vadd.f32 %v1120, %v1288
        %v1290 = vpop.f32.mrf.mxu0
        %v1291 = vadd.f32 %v1122, %v1290
        %1292 = vmatmul.bf16.gmra.mxu0 %v823
        %v1293 = vpop.f32.mrf.mxu0
        %v1294 = vadd.f32 %v1125, %v1293
        %v1295 = vpop.f32.mrf.mxu0
        %v1296 = vadd.f32 %v1127, %v1295
        %1297 = vmatmul.bf16.gmra.mxu0 %v825
        %v1298 = vpop.f32.mrf.mxu0
        %v1299 = vadd.f32 %v1130, %v1298
        %v1300 = vpop.f32.mrf.mxu0
        %v1301 = vadd.f32 %v1132, %v1300
        %1302 = vmatmul.bf16.gmra.mxu0 %v827
        %v1303 = vpop.f32.mrf.mxu0
        %v1304 = vadd.f32 %v1135, %v1303
        %v1305 = vpop.f32.mrf.mxu0
        %v1306 = vadd.f32 %v1137, %v1305
        %1307 = vmatmul.bf16.gmra.mxu0 %v829
        %v1308 = vpop.f32.mrf.mxu0
        %v1309 = vadd.f32 %v1140, %v1308
        %v1310 = vpop.f32.mrf.mxu0
        %v1311 = vadd.f32 %v1142, %v1310
        %1312 = vmatmul.bf16.gmra.mxu0 %v831
        %v1313 = vpop.f32.mrf.mxu0
        %v1314 = vadd.f32 %v1145, %v1313
        %v1315 = vpop.f32.mrf.mxu0
        %v1316 = vadd.f32 %v1147, %v1315
        %1317 = vmatmul.bf16.gmra.mxu0 %v833
        %v1318 = vpop.f32.mrf.mxu0
        %v1319 = vadd.f32 %v1150, %v1318
        %v1320 = vpop.f32.mrf.mxu0
        %v1321 = vadd.f32 %v1152, %v1320
        %1322 = vmatmul.bf16.gmra.mxu0 %v835
        %v1323 = vpop.f32.mrf.mxu0
        %v1324 = vadd.f32 %v1155, %v1323
        %v1325 = vpop.f32.mrf.mxu0
        %v1326 = vadd.f32 %v1157, %v1325
        %1327 = vmatmul.bf16.gmra.mxu0 %v837
        %v1328 = vpop.f32.mrf.mxu0
        %v1329 = vadd.f32 %v1160, %v1328
        %v1330 = vpop.f32.mrf.mxu0
        %v1331 = vadd.f32 %v1162, %v1330
        %1332 = vmatmul.bf16.gmra.mxu0 %v839
        %v1333 = vpop.f32.mrf.mxu0
        %v1334 = vadd.f32 %v1165, %v1333
        %v1335 = vpop.f32.mrf.mxu0
        %v1336 = vadd.f32 %v1167, %v1335
        %1337 = vdwg.mxu0
        %v1338 = vmax.f32 %v1179, 0.0
        %v1339 = vmax.f32 %v1181, 0.0
        %v1340 = vmax.f32 %v1184, 0.0
        %v1341 = vmax.f32 %v1186, 0.0
        %v1342 = vmax.f32 %v1189, 0.0
        %v1343 = vmax.f32 %v1191, 0.0
        %v1344 = vmax.f32 %v1194, 0.0
        %v1345 = vmax.f32 %v1196, 0.0
        %v1346 = vmax.f32 %v1199, 0.0
        %v1347 = vmax.f32 %v1201, 0.0
        %v1348 = vmax.f32 %v1204, 0.0
        %v1349 = vmax.f32 %v1206, 0.0
        %v1350 = vmax.f32 %v1209, 0.0
        %v1351 = vmax.f32 %v1211, 0.0
        %v1352 = vmax.f32 %v1214, 0.0
        %v1353 = vmax.f32 %v1216, 0.0
        %v1354 = vmax.f32 %v1219, 0.0
        %v1355 = vmax.f32 %v1221, 0.0
        %v1356 = vmax.f32 %v1224, 0.0
        %v1357 = vmax.f32 %v1226, 0.0
        %v1358 = vmax.f32 %v1229, 0.0
        %v1359 = vmax.f32 %v1231, 0.0
        %v1360 = vmax.f32 %v1234, 0.0
        %v1361 = vmax.f32 %v1236, 0.0
        %v1362 = vmax.f32 %v1239, 0.0
        %v1363 = vmax.f32 %v1241, 0.0
        %v1364 = vmax.f32 %v1244, 0.0
        %v1365 = vmax.f32 %v1246, 0.0
        %v1366 = vmax.f32 %v1249, 0.0
        %v1367 = vmax.f32 %v1251, 0.0
        %v1368 = vmax.f32 %v1254, 0.0
        %v1369 = vmax.f32 %v1256, 0.0
        %v1370 = vmax.f32 %v1259, 0.0
        %v1371 = vmax.f32 %v1261, 0.0
        %v1372 = vmax.f32 %v1264, 0.0
        %v1373 = vmax.f32 %v1266, 0.0
        %v1374 = vmax.f32 %v1269, 0.0
        %v1375 = vmax.f32 %v1271, 0.0
        %v1376 = vmax.f32 %v1274, 0.0
        %v1377 = vmax.f32 %v1276, 0.0
        %v1378 = vmax.f32 %v1279, 0.0
        %v1379 = vmax.f32 %v1281, 0.0
        %v1380 = vmax.f32 %v1284, 0.0
        %v1381 = vmax.f32 %v1286, 0.0
        %v1382 = vmax.f32 %v1289, 0.0
        %v1383 = vmax.f32 %v1291, 0.0
        %v1384 = vmax.f32 %v1294, 0.0
        %v1385 = vmax.f32 %v1296, 0.0
        %v1386 = vmax.f32 %v1299, 0.0
        %v1387 = vmax.f32 %v1301, 0.0
        %v1388 = vmax.f32 %v1304, 0.0
        %v1389 = vmax.f32 %v1306, 0.0
        %v1390 = vmax.f32 %v1309, 0.0
        %v1391 = vmax.f32 %v1311, 0.0
        %v1392 = vmax.f32 %v1314, 0.0
        %v1393 = vmax.f32 %v1316, 0.0
        %v1394 = vmax.f32 %v1319, 0.0
        %v1395 = vmax.f32 %v1321, 0.0
        %v1396 = vmax.f32 %v1324, 0.0
        %v1397 = vmax.f32 %v1326, 0.0
        %v1398 = vmax.f32 %v1329, 0.0
        %v1399 = vmax.f32 %v1331, 0.0
        %v1400 = vmax.f32 %v1334, 0.0
        %v1401 = vmax.f32 %v1336, 0.0
        %v1402 = vpack.c.bf16 %v1339, %v1338
        %v1403 = vpack.c.bf16 %v1341, %v1340
        %v1404 = vpack.c.bf16 %v1343, %v1342
        %v1405 = vpack.c.bf16 %v1345, %v1344
        %v1406 = vpack.c.bf16 %v1347, %v1346
        %v1407 = vpack.c.bf16 %v1349, %v1348
        %v1408 = vpack.c.bf16 %v1351, %v1350
        %v1409 = vpack.c.bf16 %v1353, %v1352
        %v1410 = vpack.c.bf16 %v1355, %v1354
        %v1411 = vpack.c.bf16 %v1357, %v1356
        %v1412 = vpack.c.bf16 %v1359, %v1358
        %v1413 = vpack.c.bf16 %v1361, %v1360
        %v1414 = vpack.c.bf16 %v1363, %v1362
        %v1415 = vpack.c.bf16 %v1365, %v1364
        %v1416 = vpack.c.bf16 %v1367, %v1366
        %v1417 = vpack.c.bf16 %v1369, %v1368
        %v1418 = vpack.c.bf16 %v1371, %v1370
        %v1419 = vpack.c.bf16 %v1373, %v1372
        %v1420 = vpack.c.bf16 %v1375, %v1374
        %v1421 = vpack.c.bf16 %v1377, %v1376
        %v1422 = vpack.c.bf16 %v1379, %v1378
        %v1423 = vpack.c.bf16 %v1381, %v1380
        %v1424 = vpack.c.bf16 %v1383, %v1382
        %v1425 = vpack.c.bf16 %v1385, %v1384
        %v1426 = vpack.c.bf16 %v1387, %v1386
        %v1427 = vpack.c.bf16 %v1389, %v1388
        %v1428 = vpack.c.bf16 %v1391, %v1390
        %v1429 = vpack.c.bf16 %v1393, %v1392
        %v1430 = vpack.c.bf16 %v1395, %v1394
        %v1431 = vpack.c.bf16 %v1397, %v1396
        %v1432 = vpack.c.bf16 %v1399, %v1398
        %v1433 = vpack.c.bf16 %v1401, %v1400
        %v1434 = vld [vmem:[#allocation8] sm:$0xf]
        %v1435 = vld [vmem:[#allocation8 + $0x4] sm:$0xf]
        %v1436 = vld [vmem:[#allocation8 + $0x8] sm:$0xf]
        %v1437 = vld [vmem:[#allocation8 + $0xc] sm:$0xf]
        %v1438 = vld [vmem:[#allocation8 + $0x10] sm:$0xf]
        %v1439 = vld [vmem:[#allocation8 + $0x14] sm:$0xf]
        %v1440 = vld [vmem:[#allocation8 + $0x18] sm:$0xf]
        %v1441 = vld [vmem:[#allocation8 + $0x1c] sm:$0xf]
        %v1442 = vld [vmem:[#allocation8 + $0x20] sm:$0xf]
        %v1443 = vld [vmem:[#allocation8 + $0x24] sm:$0xf]
        %v1444 = vld [vmem:[#allocation8 + $0x28] sm:$0xf]
        %v1445 = vld [vmem:[#allocation8 + $0x2c] sm:$0xf]
        %v1446 = vld [vmem:[#allocation8 + $0x30] sm:$0xf]
        %v1447 = vld [vmem:[#allocation8 + $0x34] sm:$0xf]
        %v1448 = vld [vmem:[#allocation8 + $0x38] sm:$0xf]
        %v1449 = vld [vmem:[#allocation8 + $0x3c] sm:$0xf]
        %v1450 = vld [vmem:[#allocation10] sm:$0x1]
        %v1452 = vperm.slane %v1450, 0
        %v1470 = vunpack.c.l.b16 %v1434
        %v1471 = vunpack.c.l.b16 %v1435
        %v1472 = vunpack.c.l.b16 %v1436
        %v1473 = vunpack.c.l.b16 %v1437
        %v1474 = vunpack.c.l.b16 %v1438
        %v1475 = vunpack.c.l.b16 %v1439
        %v1476 = vunpack.c.l.b16 %v1440
        %v1477 = vunpack.c.l.b16 %v1441
        %v1478 = vunpack.c.l.b16 %v1442
        %v1479 = vunpack.c.l.b16 %v1443
        %v1480 = vunpack.c.l.b16 %v1444
        %v1481 = vunpack.c.l.b16 %v1445
        %v1482 = vunpack.c.l.b16 %v1446
        %v1483 = vunpack.c.l.b16 %v1447
        %v1484 = vunpack.c.l.b16 %v1448
        %v1485 = vunpack.c.l.b16 %v1449
        %v1486 = vpack.c.b16 %v1471, %v1470
        %v1487 = vpack.c.b16 %v1473, %v1472
        %v1488 = vpack.c.b16 %v1475, %v1474
        %v1489 = vpack.c.b16 %v1477, %v1476
        %v1490 = vpack.c.b16 %v1479, %v1478
        %v1491 = vpack.c.b16 %v1481, %v1480
        %v1492 = vpack.c.b16 %v1483, %v1482
        %v1493 = vpack.c.b16 %v1485, %v1484
        %1502 = vmatpush.bf16.msra.mxu0 %v1493
        %1503 = vmatpush.bf16.msra.mxu0 %v1492
        %1504 = vmatpush.bf16.msra.mxu0 %v1491
        %1505 = vmatpush.bf16.msra.mxu0 %v1490
        %1506 = vmatpush.bf16.msra.mxu0 %v1489
        %1507 = vmatpush.bf16.msra.mxu0 %v1488
        %1508 = vmatpush.bf16.msra.mxu0 %v1487
        %1509 = vmatpush.bf16.msra.mxu0 %v1486
        %1510 = vmatmul.bf16.gmra.mxu0 %v1402
        %v1511 = vpop.f32.mrf.mxu0
        %v1512 = vadd.f32 %v1452, %v1511
        %v1513 = vpop.f32.mrf.mxu0
        %v1514 = vadd.f32 %v1452, %v1513
        %1515 = vmatmul.bf16.gmra.mxu0 %v1403
        %v1516 = vpop.f32.mrf.mxu0
        %v1517 = vadd.f32 %v1452, %v1516
        %v1518 = vpop.f32.mrf.mxu0
        %v1519 = vadd.f32 %v1452, %v1518
        %1520 = vmatmul.bf16.gmra.mxu0 %v1404
        %v1521 = vpop.f32.mrf.mxu0
        %v1522 = vadd.f32 %v1452, %v1521
        %v1523 = vpop.f32.mrf.mxu0
        %v1524 = vadd.f32 %v1452, %v1523
        %1525 = vmatmul.bf16.gmra.mxu0 %v1405
        %v1526 = vpop.f32.mrf.mxu0
        %v1527 = vadd.f32 %v1452, %v1526
        %v1528 = vpop.f32.mrf.mxu0
        %v1529 = vadd.f32 %v1452, %v1528
        %1530 = vmatmul.bf16.gmra.mxu0 %v1406
        %v1531 = vpop.f32.mrf.mxu0
        %v1532 = vadd.f32 %v1452, %v1531
        %v1533 = vpop.f32.mrf.mxu0
        %v1534 = vadd.f32 %v1452, %v1533
        %1535 = vmatmul.bf16.gmra.mxu0 %v1407
        %v1536 = vpop.f32.mrf.mxu0
        %v1537 = vadd.f32 %v1452, %v1536
        %v1538 = vpop.f32.mrf.mxu0
        %v1539 = vadd.f32 %v1452, %v1538
        %1540 = vmatmul.bf16.gmra.mxu0 %v1408
        %v1541 = vpop.f32.mrf.mxu0
        %v1542 = vadd.f32 %v1452, %v1541
        %v1543 = vpop.f32.mrf.mxu0
        %v1544 = vadd.f32 %v1452, %v1543
        %1545 = vmatmul.bf16.gmra.mxu0 %v1409
        %v1546 = vpop.f32.mrf.mxu0
        %v1547 = vadd.f32 %v1452, %v1546
        %v1548 = vpop.f32.mrf.mxu0
        %v1549 = vadd.f32 %v1452, %v1548
        %1550 = vmatmul.bf16.gmra.mxu0 %v1410
        %v1551 = vpop.f32.mrf.mxu0
        %v1552 = vadd.f32 %v1452, %v1551
        %v1553 = vpop.f32.mrf.mxu0
        %v1554 = vadd.f32 %v1452, %v1553
        %1555 = vmatmul.bf16.gmra.mxu0 %v1411
        %v1556 = vpop.f32.mrf.mxu0
        %v1557 = vadd.f32 %v1452, %v1556
        %v1558 = vpop.f32.mrf.mxu0
        %v1559 = vadd.f32 %v1452, %v1558
        %1560 = vmatmul.bf16.gmra.mxu0 %v1412
        %v1561 = vpop.f32.mrf.mxu0
        %v1562 = vadd.f32 %v1452, %v1561
        %v1563 = vpop.f32.mrf.mxu0
        %v1564 = vadd.f32 %v1452, %v1563
        %1565 = vmatmul.bf16.gmra.mxu0 %v1413
        %v1566 = vpop.f32.mrf.mxu0
        %v1567 = vadd.f32 %v1452, %v1566
        %v1568 = vpop.f32.mrf.mxu0
        %v1569 = vadd.f32 %v1452, %v1568
        %1570 = vmatmul.bf16.gmra.mxu0 %v1414
        %v1571 = vpop.f32.mrf.mxu0
        %v1572 = vadd.f32 %v1452, %v1571
        %v1573 = vpop.f32.mrf.mxu0
        %v1574 = vadd.f32 %v1452, %v1573
        %1575 = vmatmul.bf16.gmra.mxu0 %v1415
        %v1576 = vpop.f32.mrf.mxu0
        %v1577 = vadd.f32 %v1452, %v1576
        %v1578 = vpop.f32.mrf.mxu0
        %v1579 = vadd.f32 %v1452, %v1578
        %1580 = vmatmul.bf16.gmra.mxu0 %v1416
        %v1581 = vpop.f32.mrf.mxu0
        %v1582 = vadd.f32 %v1452, %v1581
        %v1583 = vpop.f32.mrf.mxu0
        %v1584 = vadd.f32 %v1452, %v1583
        %1585 = vmatmul.bf16.gmra.mxu0 %v1417
        %v1586 = vpop.f32.mrf.mxu0
        %v1587 = vadd.f32 %v1452, %v1586
        %v1588 = vpop.f32.mrf.mxu0
        %v1589 = vadd.f32 %v1452, %v1588
        %1590 = vmatmul.bf16.gmra.mxu0 %v1418
        %v1591 = vpop.f32.mrf.mxu0
        %v1592 = vadd.f32 %v1452, %v1591
        %v1593 = vpop.f32.mrf.mxu0
        %v1594 = vadd.f32 %v1452, %v1593
        %1595 = vmatmul.bf16.gmra.mxu0 %v1419
        %v1596 = vpop.f32.mrf.mxu0
        %v1597 = vadd.f32 %v1452, %v1596
        %v1598 = vpop.f32.mrf.mxu0
        %v1599 = vadd.f32 %v1452, %v1598
        %1600 = vmatmul.bf16.gmra.mxu0 %v1420
        %v1601 = vpop.f32.mrf.mxu0
        %v1602 = vadd.f32 %v1452, %v1601
        %v1603 = vpop.f32.mrf.mxu0
        %v1604 = vadd.f32 %v1452, %v1603
        %1605 = vmatmul.bf16.gmra.mxu0 %v1421
        %v1606 = vpop.f32.mrf.mxu0
        %v1607 = vadd.f32 %v1452, %v1606
        %v1608 = vpop.f32.mrf.mxu0
        %v1609 = vadd.f32 %v1452, %v1608
        %1610 = vmatmul.bf16.gmra.mxu0 %v1422
        %v1611 = vpop.f32.mrf.mxu0
        %v1612 = vadd.f32 %v1452, %v1611
        %v1613 = vpop.f32.mrf.mxu0
        %v1614 = vadd.f32 %v1452, %v1613
        %1615 = vmatmul.bf16.gmra.mxu0 %v1423
        %v1616 = vpop.f32.mrf.mxu0
        %v1617 = vadd.f32 %v1452, %v1616
        %v1618 = vpop.f32.mrf.mxu0
        %v1619 = vadd.f32 %v1452, %v1618
        %1620 = vmatmul.bf16.gmra.mxu0 %v1424
        %v1621 = vpop.f32.mrf.mxu0
        %v1622 = vadd.f32 %v1452, %v1621
        %v1623 = vpop.f32.mrf.mxu0
        %v1624 = vadd.f32 %v1452, %v1623
        %1625 = vmatmul.bf16.gmra.mxu0 %v1425
        %v1626 = vpop.f32.mrf.mxu0
        %v1627 = vadd.f32 %v1452, %v1626
        %v1628 = vpop.f32.mrf.mxu0
        %v1629 = vadd.f32 %v1452, %v1628
        %1630 = vmatmul.bf16.gmra.mxu0 %v1426
        %v1631 = vpop.f32.mrf.mxu0
        %v1632 = vadd.f32 %v1452, %v1631
        %v1633 = vpop.f32.mrf.mxu0
        %v1634 = vadd.f32 %v1452, %v1633
        %1635 = vmatmul.bf16.gmra.mxu0 %v1427
        %v1636 = vpop.f32.mrf.mxu0
        %v1637 = vadd.f32 %v1452, %v1636
        %v1638 = vpop.f32.mrf.mxu0
        %v1639 = vadd.f32 %v1452, %v1638
        %1640 = vmatmul.bf16.gmra.mxu0 %v1428
        %v1641 = vpop.f32.mrf.mxu0
        %v1642 = vadd.f32 %v1452, %v1641
        %v1643 = vpop.f32.mrf.mxu0
        %v1644 = vadd.f32 %v1452, %v1643
        %1645 = vmatmul.bf16.gmra.mxu0 %v1429
        %v1646 = vpop.f32.mrf.mxu0
        %v1647 = vadd.f32 %v1452, %v1646
        %v1648 = vpop.f32.mrf.mxu0
        %v1649 = vadd.f32 %v1452, %v1648
        %1650 = vmatmul.bf16.gmra.mxu0 %v1430
        %v1651 = vpop.f32.mrf.mxu0
        %v1652 = vadd.f32 %v1452, %v1651
        %v1653 = vpop.f32.mrf.mxu0
        %v1654 = vadd.f32 %v1452, %v1653
        %1655 = vmatmul.bf16.gmra.mxu0 %v1431
        %v1656 = vpop.f32.mrf.mxu0
        %v1657 = vadd.f32 %v1452, %v1656
        %v1658 = vpop.f32.mrf.mxu0
        %v1659 = vadd.f32 %v1452, %v1658
        %1660 = vmatmul.bf16.gmra.mxu0 %v1432
        %v1661 = vpop.f32.mrf.mxu0
        %v1662 = vadd.f32 %v1452, %v1661
        %v1663 = vpop.f32.mrf.mxu0
        %v1664 = vadd.f32 %v1452, %v1663
        %1665 = vmatmul.bf16.gmra.mxu0 %v1433
        %v1666 = vpop.f32.mrf.mxu0
        %v1667 = vadd.f32 %v1452, %v1666
        %v1668 = vpop.f32.mrf.mxu0
        %v1669 = vadd.f32 %v1452, %v1668
        %1670 = vdwg.mxu0
        %v1671 = vld [vmem:[%s479] sm:$0xf]
        %v1672 = vld [vmem:[%s479 + $0x4] sm:$0xf]
        %v1673 = vld [vmem:[%s479 + $0x8] sm:$0xf]
        %v1674 = vld [vmem:[%s479 + $0xc] sm:$0xf]
        %v1675 = vld [vmem:[%s479 + $0x10] sm:$0xf]
        %v1676 = vld [vmem:[%s479 + $0x14] sm:$0xf]
        %v1677 = vld [vmem:[%s479 + $0x18] sm:$0xf]
        %v1678 = vld [vmem:[%s479 + $0x1c] sm:$0xf]
        %v1679 = vld [vmem:[%s479 + $0x20] sm:$0xf]
        %v1680 = vld [vmem:[%s479 + $0x24] sm:$0xf]
        %v1681 = vld [vmem:[%s479 + $0x28] sm:$0xf]
        %v1682 = vld [vmem:[%s479 + $0x2c] sm:$0xf]
        %v1683 = vld [vmem:[%s479 + $0x30] sm:$0xf]
        %v1684 = vld [vmem:[%s479 + $0x34] sm:$0xf]
        %v1685 = vld [vmem:[%s479 + $0x38] sm:$0xf]
        %v1686 = vld [vmem:[%s479 + $0x3c] sm:$0xf]
        %v1687 = vld [vmem:[%s479 + $0x40] sm:$0xf]
        %v1688 = vld [vmem:[%s479 + $0x44] sm:$0xf]
        %v1689 = vld [vmem:[%s479 + $0x48] sm:$0xf]
        %v1690 = vld [vmem:[%s479 + $0x4c] sm:$0xf]
        %v1691 = vld [vmem:[%s479 + $0x50] sm:$0xf]
        %v1692 = vld [vmem:[%s479 + $0x54] sm:$0xf]
        %v1693 = vld [vmem:[%s479 + $0x58] sm:$0xf]
        %v1694 = vld [vmem:[%s479 + $0x5c] sm:$0xf]
        %v1695 = vld [vmem:[%s479 + $0x60] sm:$0xf]
        %v1696 = vld [vmem:[%s479 + $0x64] sm:$0xf]
        %v1697 = vld [vmem:[%s479 + $0x68] sm:$0xf]
        %v1698 = vld [vmem:[%s479 + $0x6c] sm:$0xf]
        %v1699 = vld [vmem:[%s479 + $0x70] sm:$0xf]
        %v1700 = vld [vmem:[%s479 + $0x74] sm:$0xf]
        %v1701 = vld [vmem:[%s479 + $0x78] sm:$0xf]
        %v1702 = vld [vmem:[%s479 + $0x7c] sm:$0xf]
        %v1703 = vld [vmem:[%s479 + $0x80] sm:$0xf]
        %v1704 = vld [vmem:[%s479 + $0x84] sm:$0xf]
        %v1705 = vld [vmem:[%s479 + $0x88] sm:$0xf]
        %v1706 = vld [vmem:[%s479 + $0x8c] sm:$0xf]
        %v1707 = vld [vmem:[%s479 + $0x90] sm:$0xf]
        %v1708 = vld [vmem:[%s479 + $0x94] sm:$0xf]
        %v1709 = vld [vmem:[%s479 + $0x98] sm:$0xf]
        %v1710 = vld [vmem:[%s479 + $0x9c] sm:$0xf]
        %v1711 = vld [vmem:[%s479 + $0xa0] sm:$0xf]
        %v1712 = vld [vmem:[%s479 + $0xa4] sm:$0xf]
        %v1713 = vld [vmem:[%s479 + $0xa8] sm:$0xf]
        %v1714 = vld [vmem:[%s479 + $0xac] sm:$0xf]
        %v1715 = vld [vmem:[%s479 + $0xb0] sm:$0xf]
        %v1716 = vld [vmem:[%s479 + $0xb4] sm:$0xf]
        %v1717 = vld [vmem:[%s479 + $0xb8] sm:$0xf]
        %v1718 = vld [vmem:[%s479 + $0xbc] sm:$0xf]
        %v1719 = vld [vmem:[%s479 + $0xc0] sm:$0xf]
        %v1720 = vld [vmem:[%s479 + $0xc4] sm:$0xf]
        %v1721 = vld [vmem:[%s479 + $0xc8] sm:$0xf]
        %v1722 = vld [vmem:[%s479 + $0xcc] sm:$0xf]
        %v1723 = vld [vmem:[%s479 + $0xd0] sm:$0xf]
        %v1724 = vld [vmem:[%s479 + $0xd4] sm:$0xf]
        %v1725 = vld [vmem:[%s479 + $0xd8] sm:$0xf]
        %v1726 = vld [vmem:[%s479 + $0xdc] sm:$0xf]
        %v1727 = vld [vmem:[%s479 + $0xe0] sm:$0xf]
        %v1728 = vld [vmem:[%s479 + $0xe4] sm:$0xf]
        %v1729 = vld [vmem:[%s479 + $0xe8] sm:$0xf]
        %v1730 = vld [vmem:[%s479 + $0xec] sm:$0xf]
        %v1731 = vld [vmem:[%s479 + $0xf0] sm:$0xf]
        %v1732 = vld [vmem:[%s479 + $0xf4] sm:$0xf]
        %v1733 = vld [vmem:[%s479 + $0xf8] sm:$0xf]
        %v1734 = vld [vmem:[%s479 + $0xfc] sm:$0xf]
        %v1735 = vunpack.c.l.bf16 %v1671
        %v1736 = vunpack.c.l.bf16 %v1672
        %v1737 = vunpack.c.l.bf16 %v1673
        %v1738 = vunpack.c.l.bf16 %v1674
        %v1739 = vunpack.c.l.bf16 %v1675
        %v1740 = vunpack.c.l.bf16 %v1676
        %v1741 = vunpack.c.l.bf16 %v1677
        %v1742 = vunpack.c.l.bf16 %v1678
        %v1743 = vunpack.c.l.bf16 %v1679
        %v1744 = vunpack.c.l.bf16 %v1680
        %v1745 = vunpack.c.l.bf16 %v1681
        %v1746 = vunpack.c.l.bf16 %v1682
        %v1747 = vunpack.c.l.bf16 %v1683
        %v1748 = vunpack.c.l.bf16 %v1684
        %v1749 = vunpack.c.l.bf16 %v1685
        %v1750 = vunpack.c.l.bf16 %v1686
        %v1751 = vunpack.c.l.bf16 %v1687
        %v1752 = vunpack.c.l.bf16 %v1688
        %v1753 = vunpack.c.l.bf16 %v1689
        %v1754 = vunpack.c.l.bf16 %v1690
        %v1755 = vunpack.c.l.bf16 %v1691
        %v1756 = vunpack.c.l.bf16 %v1692
        %v1757 = vunpack.c.l.bf16 %v1693
        %v1758 = vunpack.c.l.bf16 %v1694
        %v1759 = vunpack.c.l.bf16 %v1695
        %v1760 = vunpack.c.l.bf16 %v1696
        %v1761 = vunpack.c.l.bf16 %v1697
        %v1762 = vunpack.c.l.bf16 %v1698
        %v1763 = vunpack.c.l.bf16 %v1699
        %v1764 = vunpack.c.l.bf16 %v1700
        %v1765 = vunpack.c.l.bf16 %v1701
        %v1766 = vunpack.c.l.bf16 %v1702
        %v1767 = vunpack.c.l.bf16 %v1703
        %v1768 = vunpack.c.l.bf16 %v1704
        %v1769 = vunpack.c.l.bf16 %v1705
        %v1770 = vunpack.c.l.bf16 %v1706
        %v1771 = vunpack.c.l.bf16 %v1707
        %v1772 = vunpack.c.l.bf16 %v1708
        %v1773 = vunpack.c.l.bf16 %v1709
        %v1774 = vunpack.c.l.bf16 %v1710
        %v1775 = vunpack.c.l.bf16 %v1711
        %v1776 = vunpack.c.l.bf16 %v1712
        %v1777 = vunpack.c.l.bf16 %v1713
        %v1778 = vunpack.c.l.bf16 %v1714
        %v1779 = vunpack.c.l.bf16 %v1715
        %v1780 = vunpack.c.l.bf16 %v1716
        %v1781 = vunpack.c.l.bf16 %v1717
        %v1782 = vunpack.c.l.bf16 %v1718
        %v1783 = vunpack.c.l.bf16 %v1719
        %v1784 = vunpack.c.l.bf16 %v1720
        %v1785 = vunpack.c.l.bf16 %v1721
        %v1786 = vunpack.c.l.bf16 %v1722
        %v1787 = vunpack.c.l.bf16 %v1723
        %v1788 = vunpack.c.l.bf16 %v1724
        %v1789 = vunpack.c.l.bf16 %v1725
        %v1790 = vunpack.c.l.bf16 %v1726
        %v1791 = vunpack.c.l.bf16 %v1727
        %v1792 = vunpack.c.l.bf16 %v1728
        %v1793 = vunpack.c.l.bf16 %v1729
        %v1794 = vunpack.c.l.bf16 %v1730
        %v1795 = vunpack.c.l.bf16 %v1731
        %v1796 = vunpack.c.l.bf16 %v1732
        %v1797 = vunpack.c.l.bf16 %v1733
        %v1798 = vunpack.c.l.bf16 %v1734
        %1863 = vrot.lane.b32.xlu0 %v1735, 64
        %v1864 = vpop.permute.xlu0 %1863
        %1865 = vrot.lane.b32.xlu0 %v1736, 64
        %v1866 = vpop.permute.xlu0 %1865
        %1867 = vrot.lane.b32.xlu0 %v1737, 64
        %v1868 = vpop.permute.xlu0 %1867
        %1869 = vrot.lane.b32.xlu0 %v1738, 64
        %v1870 = vpop.permute.xlu0 %1869
        %1871 = vrot.lane.b32.xlu0 %v1739, 64
        %v1872 = vpop.permute.xlu0 %1871
        %1873 = vrot.lane.b32.xlu0 %v1740, 64
        %v1874 = vpop.permute.xlu0 %1873
        %1875 = vrot.lane.b32.xlu0 %v1741, 64
        %v1876 = vpop.permute.xlu0 %1875
        %1877 = vrot.lane.b32.xlu0 %v1742, 64
        %v1878 = vpop.permute.xlu0 %1877
        %1879 = vrot.lane.b32.xlu0 %v1743, 64
        %v1880 = vpop.permute.xlu0 %1879
        %1881 = vrot.lane.b32.xlu0 %v1744, 64
        %v1882 = vpop.permute.xlu0 %1881
        %1883 = vrot.lane.b32.xlu0 %v1745, 64
        %v1884 = vpop.permute.xlu0 %1883
        %1885 = vrot.lane.b32.xlu0 %v1746, 64
        %v1886 = vpop.permute.xlu0 %1885
        %1887 = vrot.lane.b32.xlu0 %v1747, 64
        %v1888 = vpop.permute.xlu0 %1887
        %1889 = vrot.lane.b32.xlu0 %v1748, 64
        %v1890 = vpop.permute.xlu0 %1889
        %1891 = vrot.lane.b32.xlu0 %v1749, 64
        %v1892 = vpop.permute.xlu0 %1891
        %1893 = vrot.lane.b32.xlu0 %v1750, 64
        %v1894 = vpop.permute.xlu0 %1893
        %1895 = vrot.lane.b32.xlu0 %v1751, 64
        %v1896 = vpop.permute.xlu0 %1895
        %1897 = vrot.lane.b32.xlu0 %v1752, 64
        %v1898 = vpop.permute.xlu0 %1897
        %1899 = vrot.lane.b32.xlu0 %v1753, 64
        %v1900 = vpop.permute.xlu0 %1899
        %1901 = vrot.lane.b32.xlu0 %v1754, 64
        %v1902 = vpop.permute.xlu0 %1901
        %1903 = vrot.lane.b32.xlu0 %v1755, 64
        %v1904 = vpop.permute.xlu0 %1903
        %1905 = vrot.lane.b32.xlu0 %v1756, 64
        %v1906 = vpop.permute.xlu0 %1905
        %1907 = vrot.lane.b32.xlu0 %v1757, 64
        %v1908 = vpop.permute.xlu0 %1907
        %1909 = vrot.lane.b32.xlu0 %v1758, 64
        %v1910 = vpop.permute.xlu0 %1909
        %1911 = vrot.lane.b32.xlu0 %v1759, 64
        %v1912 = vpop.permute.xlu0 %1911
        %1913 = vrot.lane.b32.xlu0 %v1760, 64
        %v1914 = vpop.permute.xlu0 %1913
        %1915 = vrot.lane.b32.xlu0 %v1761, 64
        %v1916 = vpop.permute.xlu0 %1915
        %1917 = vrot.lane.b32.xlu0 %v1762, 64
        %v1918 = vpop.permute.xlu0 %1917
        %1919 = vrot.lane.b32.xlu0 %v1763, 64
        %v1920 = vpop.permute.xlu0 %1919
        %1921 = vrot.lane.b32.xlu0 %v1764, 64
        %v1922 = vpop.permute.xlu0 %1921
        %1923 = vrot.lane.b32.xlu0 %v1765, 64
        %v1924 = vpop.permute.xlu0 %1923
        %1925 = vrot.lane.b32.xlu0 %v1766, 64
        %v1926 = vpop.permute.xlu0 %1925
        %1927 = vrot.lane.b32.xlu0 %v1767, 64
        %v1928 = vpop.permute.xlu0 %1927
        %1929 = vrot.lane.b32.xlu0 %v1768, 64
        %v1930 = vpop.permute.xlu0 %1929
        %1931 = vrot.lane.b32.xlu0 %v1769, 64
        %v1932 = vpop.permute.xlu0 %1931
        %1933 = vrot.lane.b32.xlu0 %v1770, 64
        %v1934 = vpop.permute.xlu0 %1933
        %1935 = vrot.lane.b32.xlu0 %v1771, 64
        %v1936 = vpop.permute.xlu0 %1935
        %1937 = vrot.lane.b32.xlu0 %v1772, 64
        %v1938 = vpop.permute.xlu0 %1937
        %1939 = vrot.lane.b32.xlu0 %v1773, 64
        %v1940 = vpop.permute.xlu0 %1939
        %1941 = vrot.lane.b32.xlu0 %v1774, 64
        %v1942 = vpop.permute.xlu0 %1941
        %1943 = vrot.lane.b32.xlu0 %v1775, 64
        %v1944 = vpop.permute.xlu0 %1943
        %1945 = vrot.lane.b32.xlu0 %v1776, 64
        %v1946 = vpop.permute.xlu0 %1945
        %1947 = vrot.lane.b32.xlu0 %v1777, 64
        %v1948 = vpop.permute.xlu0 %1947
        %1949 = vrot.lane.b32.xlu0 %v1778, 64
        %v1950 = vpop.permute.xlu0 %1949
        %1951 = vrot.lane.b32.xlu0 %v1779, 64
        %v1952 = vpop.permute.xlu0 %1951
        %1953 = vrot.lane.b32.xlu0 %v1780, 64
        %v1954 = vpop.permute.xlu0 %1953
        %1955 = vrot.lane.b32.xlu0 %v1781, 64
        %v1956 = vpop.permute.xlu0 %1955
        %1957 = vrot.lane.b32.xlu0 %v1782, 64
        %v1958 = vpop.permute.xlu0 %1957
        %1959 = vrot.lane.b32.xlu0 %v1783, 64
        %v1960 = vpop.permute.xlu0 %1959
        %1961 = vrot.lane.b32.xlu0 %v1784, 64
        %v1962 = vpop.permute.xlu0 %1961
        %1963 = vrot.lane.b32.xlu0 %v1785, 64
        %v1964 = vpop.permute.xlu0 %1963
        %1965 = vrot.lane.b32.xlu0 %v1786, 64
        %v1966 = vpop.permute.xlu0 %1965
        %1967 = vrot.lane.b32.xlu0 %v1787, 64
        %v1968 = vpop.permute.xlu0 %1967
        %1969 = vrot.lane.b32.xlu0 %v1788, 64
        %v1970 = vpop.permute.xlu0 %1969
        %1971 = vrot.lane.b32.xlu0 %v1789, 64
        %v1972 = vpop.permute.xlu0 %1971
        %1973 = vrot.lane.b32.xlu0 %v1790, 64
        %v1974 = vpop.permute.xlu0 %1973
        %1975 = vrot.lane.b32.xlu0 %v1791, 64
        %v1976 = vpop.permute.xlu0 %1975
        %1977 = vrot.lane.b32.xlu0 %v1792, 64
        %v1978 = vpop.permute.xlu0 %1977
        %1979 = vrot.lane.b32.xlu0 %v1793, 64
        %v1980 = vpop.permute.xlu0 %1979
        %1981 = vrot.lane.b32.xlu0 %v1794, 64
        %v1982 = vpop.permute.xlu0 %1981
        %1983 = vrot.lane.b32.xlu0 %v1795, 64
        %v1984 = vpop.permute.xlu0 %1983
        %1985 = vrot.lane.b32.xlu0 %v1796, 64
        %v1986 = vpop.permute.xlu0 %1985
        %1987 = vrot.lane.b32.xlu0 %v1797, 64
        %v1988 = vpop.permute.xlu0 %1987
        %1989 = vrot.lane.b32.xlu0 %v1798, 64
        %v1990 = vpop.permute.xlu0 %1989
        %v2055 = vmul.f32 %v1512, %v1864
        %v2056 = vmul.f32 %v1514, %v1866
        %v2057 = vmul.f32 %v1517, %v1868
        %v2058 = vmul.f32 %v1519, %v1870
        %v2059 = vmul.f32 %v1522, %v1872
        %v2060 = vmul.f32 %v1524, %v1874
        %v2061 = vmul.f32 %v1527, %v1876
        %v2062 = vmul.f32 %v1529, %v1878
        %v2063 = vmul.f32 %v1532, %v1880
        %v2064 = vmul.f32 %v1534, %v1882
        %v2065 = vmul.f32 %v1537, %v1884
        %v2066 = vmul.f32 %v1539, %v1886
        %v2067 = vmul.f32 %v1542, %v1888
        %v2068 = vmul.f32 %v1544, %v1890
        %v2069 = vmul.f32 %v1547, %v1892
        %v2070 = vmul.f32 %v1549, %v1894
        %v2071 = vmul.f32 %v1552, %v1896
        %v2072 = vmul.f32 %v1554, %v1898
        %v2073 = vmul.f32 %v1557, %v1900
        %v2074 = vmul.f32 %v1559, %v1902
        %v2075 = vmul.f32 %v1562, %v1904
        %v2076 = vmul.f32 %v1564, %v1906
        %v2077 = vmul.f32 %v1567, %v1908
        %v2078 = vmul.f32 %v1569, %v1910
        %v2079 = vmul.f32 %v1572, %v1912
        %v2080 = vmul.f32 %v1574, %v1914
        %v2081 = vmul.f32 %v1577, %v1916
        %v2082 = vmul.f32 %v1579, %v1918
        %v2083 = vmul.f32 %v1582, %v1920
        %v2084 = vmul.f32 %v1584, %v1922
        %v2085 = vmul.f32 %v1587, %v1924
        %v2086 = vmul.f32 %v1589, %v1926
        %v2087 = vmul.f32 %v1592, %v1928
        %v2088 = vmul.f32 %v1594, %v1930
        %v2089 = vmul.f32 %v1597, %v1932
        %v2090 = vmul.f32 %v1599, %v1934
        %v2091 = vmul.f32 %v1602, %v1936
        %v2092 = vmul.f32 %v1604, %v1938
        %v2093 = vmul.f32 %v1607, %v1940
        %v2094 = vmul.f32 %v1609, %v1942
        %v2095 = vmul.f32 %v1612, %v1944
        %v2096 = vmul.f32 %v1614, %v1946
        %v2097 = vmul.f32 %v1617, %v1948
        %v2098 = vmul.f32 %v1619, %v1950
        %v2099 = vmul.f32 %v1622, %v1952
        %v2100 = vmul.f32 %v1624, %v1954
        %v2101 = vmul.f32 %v1627, %v1956
        %v2102 = vmul.f32 %v1629, %v1958
        %v2103 = vmul.f32 %v1632, %v1960
        %v2104 = vmul.f32 %v1634, %v1962
        %v2105 = vmul.f32 %v1637, %v1964
        %v2106 = vmul.f32 %v1639, %v1966
        %v2107 = vmul.f32 %v1642, %v1968
        %v2108 = vmul.f32 %v1644, %v1970
        %v2109 = vmul.f32 %v1647, %v1972
        %v2110 = vmul.f32 %v1649, %v1974
        %v2111 = vmul.f32 %v1652, %v1976
        %v2112 = vmul.f32 %v1654, %v1978
        %v2113 = vmul.f32 %v1657, %v1980
        %v2114 = vmul.f32 %v1659, %v1982
        %v2115 = vmul.f32 %v1662, %v1984
        %v2116 = vmul.f32 %v1664, %v1986
        %v2117 = vmul.f32 %v1667, %v1988
        %v2118 = vmul.f32 %v1669, %v1990
        %2183 = vrot.lane.b32.xlu0 %v2055, 64
        %v2184 = vpop.permute.xlu0 %2183
        %2185 = vrot.lane.b32.xlu0 %v2056, 64
        %v2186 = vpop.permute.xlu0 %2185
        %2187 = vrot.lane.b32.xlu0 %v2057, 64
        %v2188 = vpop.permute.xlu0 %2187
        %2189 = vrot.lane.b32.xlu0 %v2058, 64
        %v2190 = vpop.permute.xlu0 %2189
        %2191 = vrot.lane.b32.xlu0 %v2059, 64
        %v2192 = vpop.permute.xlu0 %2191
        %2193 = vrot.lane.b32.xlu0 %v2060, 64
        %v2194 = vpop.permute.xlu0 %2193
        %2195 = vrot.lane.b32.xlu0 %v2061, 64
        %v2196 = vpop.permute.xlu0 %2195
        %2197 = vrot.lane.b32.xlu0 %v2062, 64
        %v2198 = vpop.permute.xlu0 %2197
        %2199 = vrot.lane.b32.xlu0 %v2063, 64
        %v2200 = vpop.permute.xlu0 %2199
        %2201 = vrot.lane.b32.xlu0 %v2064, 64
        %v2202 = vpop.permute.xlu0 %2201
        %2203 = vrot.lane.b32.xlu0 %v2065, 64
        %v2204 = vpop.permute.xlu0 %2203
        %2205 = vrot.lane.b32.xlu0 %v2066, 64
        %v2206 = vpop.permute.xlu0 %2205
        %2207 = vrot.lane.b32.xlu0 %v2067, 64
        %v2208 = vpop.permute.xlu0 %2207
        %2209 = vrot.lane.b32.xlu0 %v2068, 64
        %v2210 = vpop.permute.xlu0 %2209
        %2211 = vrot.lane.b32.xlu0 %v2069, 64
        %v2212 = vpop.permute.xlu0 %2211
        %2213 = vrot.lane.b32.xlu0 %v2070, 64
        %v2214 = vpop.permute.xlu0 %2213
        %2215 = vrot.lane.b32.xlu0 %v2071, 64
        %v2216 = vpop.permute.xlu0 %2215
        %2217 = vrot.lane.b32.xlu0 %v2072, 64
        %v2218 = vpop.permute.xlu0 %2217
        %2219 = vrot.lane.b32.xlu0 %v2073, 64
        %v2220 = vpop.permute.xlu0 %2219
        %2221 = vrot.lane.b32.xlu0 %v2074, 64
        %v2222 = vpop.permute.xlu0 %2221
        %2223 = vrot.lane.b32.xlu0 %v2075, 64
        %v2224 = vpop.permute.xlu0 %2223
        %2225 = vrot.lane.b32.xlu0 %v2076, 64
        %v2226 = vpop.permute.xlu0 %2225
        %2227 = vrot.lane.b32.xlu0 %v2077, 64
        %v2228 = vpop.permute.xlu0 %2227
        %2229 = vrot.lane.b32.xlu0 %v2078, 64
        %v2230 = vpop.permute.xlu0 %2229
        %2231 = vrot.lane.b32.xlu0 %v2079, 64
        %v2232 = vpop.permute.xlu0 %2231
        %2233 = vrot.lane.b32.xlu0 %v2080, 64
        %v2234 = vpop.permute.xlu0 %2233
        %2235 = vrot.lane.b32.xlu0 %v2081, 64
        %v2236 = vpop.permute.xlu0 %2235
        %2237 = vrot.lane.b32.xlu0 %v2082, 64
        %v2238 = vpop.permute.xlu0 %2237
        %2239 = vrot.lane.b32.xlu0 %v2083, 64
        %v2240 = vpop.permute.xlu0 %2239
        %2241 = vrot.lane.b32.xlu0 %v2084, 64
        %v2242 = vpop.permute.xlu0 %2241
        %2243 = vrot.lane.b32.xlu0 %v2085, 64
        %v2244 = vpop.permute.xlu0 %2243
        %2245 = vrot.lane.b32.xlu0 %v2086, 64
        %v2246 = vpop.permute.xlu0 %2245
        %2247 = vrot.lane.b32.xlu0 %v2087, 64
        %v2248 = vpop.permute.xlu0 %2247
        %2249 = vrot.lane.b32.xlu0 %v2088, 64
        %v2250 = vpop.permute.xlu0 %2249
        %2251 = vrot.lane.b32.xlu0 %v2089, 64
        %v2252 = vpop.permute.xlu0 %2251
        %2253 = vrot.lane.b32.xlu0 %v2090, 64
        %v2254 = vpop.permute.xlu0 %2253
        %2255 = vrot.lane.b32.xlu0 %v2091, 64
        %v2256 = vpop.permute.xlu0 %2255
        %2257 = vrot.lane.b32.xlu0 %v2092, 64
        %v2258 = vpop.permute.xlu0 %2257
        %2259 = vrot.lane.b32.xlu0 %v2093, 64
        %v2260 = vpop.permute.xlu0 %2259
        %2261 = vrot.lane.b32.xlu0 %v2094, 64
        %v2262 = vpop.permute.xlu0 %2261
        %2263 = vrot.lane.b32.xlu0 %v2095, 64
        %v2264 = vpop.permute.xlu0 %2263
        %2265 = vrot.lane.b32.xlu0 %v2096, 64
        %v2266 = vpop.permute.xlu0 %2265
        %2267 = vrot.lane.b32.xlu0 %v2097, 64
        %v2268 = vpop.permute.xlu0 %2267
        %2269 = vrot.lane.b32.xlu0 %v2098, 64
        %v2270 = vpop.permute.xlu0 %2269
        %2271 = vrot.lane.b32.xlu0 %v2099, 64
        %v2272 = vpop.permute.xlu0 %2271
        %2273 = vrot.lane.b32.xlu0 %v2100, 64
        %v2274 = vpop.permute.xlu0 %2273
        %2275 = vrot.lane.b32.xlu0 %v2101, 64
        %v2276 = vpop.permute.xlu0 %2275
        %2277 = vrot.lane.b32.xlu0 %v2102, 64
        %v2278 = vpop.permute.xlu0 %2277
        %2279 = vrot.lane.b32.xlu0 %v2103, 64
        %v2280 = vpop.permute.xlu0 %2279
        %2281 = vrot.lane.b32.xlu0 %v2104, 64
        %v2282 = vpop.permute.xlu0 %2281
        %2283 = vrot.lane.b32.xlu0 %v2105, 64
        %v2284 = vpop.permute.xlu0 %2283
        %2285 = vrot.lane.b32.xlu0 %v2106, 64
        %v2286 = vpop.permute.xlu0 %2285
        %2287 = vrot.lane.b32.xlu0 %v2107, 64
        %v2288 = vpop.permute.xlu0 %2287
        %2289 = vrot.lane.b32.xlu0 %v2108, 64
        %v2290 = vpop.permute.xlu0 %2289
        %2291 = vrot.lane.b32.xlu0 %v2109, 64
        %v2292 = vpop.permute.xlu0 %2291
        %2293 = vrot.lane.b32.xlu0 %v2110, 64
        %v2294 = vpop.permute.xlu0 %2293
        %2295 = vrot.lane.b32.xlu0 %v2111, 64
        %v2296 = vpop.permute.xlu0 %2295
        %2297 = vrot.lane.b32.xlu0 %v2112, 64
        %v2298 = vpop.permute.xlu0 %2297
        %2299 = vrot.lane.b32.xlu0 %v2113, 64
        %v2300 = vpop.permute.xlu0 %2299
        %2301 = vrot.lane.b32.xlu0 %v2114, 64
        %v2302 = vpop.permute.xlu0 %2301
        %2303 = vrot.lane.b32.xlu0 %v2115, 64
        %v2304 = vpop.permute.xlu0 %2303
        %2305 = vrot.lane.b32.xlu0 %v2116, 64
        %v2306 = vpop.permute.xlu0 %2305
        %2307 = vrot.lane.b32.xlu0 %v2117, 64
        %v2308 = vpop.permute.xlu0 %2307
        %2309 = vrot.lane.b32.xlu0 %v2118, 64
        %v2310 = vpop.permute.xlu0 %2309
        %v2375 = vadd.f32 %v1512, %v2184
        %v2376 = vadd.f32 %v1514, %v2186
        %v2377 = vadd.f32 %v1517, %v2188
        %v2378 = vadd.f32 %v1519, %v2190
        %v2379 = vadd.f32 %v1522, %v2192
        %v2380 = vadd.f32 %v1524, %v2194
        %v2381 = vadd.f32 %v1527, %v2196
        %v2382 = vadd.f32 %v1529, %v2198
        %v2383 = vadd.f32 %v1532, %v2200
        %v2384 = vadd.f32 %v1534, %v2202
        %v2385 = vadd.f32 %v1537, %v2204
        %v2386 = vadd.f32 %v1539, %v2206
        %v2387 = vadd.f32 %v1542, %v2208
        %v2388 = vadd.f32 %v1544, %v2210
        %v2389 = vadd.f32 %v1547, %v2212
        %v2390 = vadd.f32 %v1549, %v2214
        %v2391 = vadd.f32 %v1552, %v2216
        %v2392 = vadd.f32 %v1554, %v2218
        %v2393 = vadd.f32 %v1557, %v2220
        %v2394 = vadd.f32 %v1559, %v2222
        %v2395 = vadd.f32 %v1562, %v2224
        %v2396 = vadd.f32 %v1564, %v2226
        %v2397 = vadd.f32 %v1567, %v2228
        %v2398 = vadd.f32 %v1569, %v2230
        %v2399 = vadd.f32 %v1572, %v2232
        %v2400 = vadd.f32 %v1574, %v2234
        %v2401 = vadd.f32 %v1577, %v2236
        %v2402 = vadd.f32 %v1579, %v2238
        %v2403 = vadd.f32 %v1582, %v2240
        %v2404 = vadd.f32 %v1584, %v2242
        %v2405 = vadd.f32 %v1587, %v2244
        %v2406 = vadd.f32 %v1589, %v2246
        %v2407 = vadd.f32 %v1592, %v2248
        %v2408 = vadd.f32 %v1594, %v2250
        %v2409 = vadd.f32 %v1597, %v2252
        %v2410 = vadd.f32 %v1599, %v2254
        %v2411 = vadd.f32 %v1602, %v2256
        %v2412 = vadd.f32 %v1604, %v2258
        %v2413 = vadd.f32 %v1607, %v2260
        %v2414 = vadd.f32 %v1609, %v2262
        %v2415 = vadd.f32 %v1612, %v2264
        %v2416 = vadd.f32 %v1614, %v2266
        %v2417 = vadd.f32 %v1617, %v2268
        %v2418 = vadd.f32 %v1619, %v2270
        %v2419 = vadd.f32 %v1622, %v2272
        %v2420 = vadd.f32 %v1624, %v2274
        %v2421 = vadd.f32 %v1627, %v2276
        %v2422 = vadd.f32 %v1629, %v2278
        %v2423 = vadd.f32 %v1632, %v2280
        %v2424 = vadd.f32 %v1634, %v2282
        %v2425 = vadd.f32 %v1637, %v2284
        %v2426 = vadd.f32 %v1639, %v2286
        %v2427 = vadd.f32 %v1642, %v2288
        %v2428 = vadd.f32 %v1644, %v2290
        %v2429 = vadd.f32 %v1647, %v2292
        %v2430 = vadd.f32 %v1649, %v2294
        %v2431 = vadd.f32 %v1652, %v2296
        %v2432 = vadd.f32 %v1654, %v2298
        %v2433 = vadd.f32 %v1657, %v2300
        %v2434 = vadd.f32 %v1659, %v2302
        %v2435 = vadd.f32 %v1662, %v2304
        %v2436 = vadd.f32 %v1664, %v2306
        %v2437 = vadd.f32 %v1667, %v2308
        %v2438 = vadd.f32 %v1669, %v2310
        %v2439 = vpack.c.bf16 %v2376, %v2375
        %v2440 = vpack.c.bf16 %v2378, %v2377
        %v2441 = vpack.c.bf16 %v2380, %v2379
        %v2442 = vpack.c.bf16 %v2382, %v2381
        %v2443 = vpack.c.bf16 %v2384, %v2383
        %v2444 = vpack.c.bf16 %v2386, %v2385
        %v2445 = vpack.c.bf16 %v2388, %v2387
        %v2446 = vpack.c.bf16 %v2390, %v2389
        %v2447 = vpack.c.bf16 %v2392, %v2391
        %v2448 = vpack.c.bf16 %v2394, %v2393
        %v2449 = vpack.c.bf16 %v2396, %v2395
        %v2450 = vpack.c.bf16 %v2398, %v2397
        %v2451 = vpack.c.bf16 %v2400, %v2399
        %v2452 = vpack.c.bf16 %v2402, %v2401
        %v2453 = vpack.c.bf16 %v2404, %v2403
        %v2454 = vpack.c.bf16 %v2406, %v2405
        %v2455 = vpack.c.bf16 %v2408, %v2407
        %v2456 = vpack.c.bf16 %v2410, %v2409
        %v2457 = vpack.c.bf16 %v2412, %v2411
        %v2458 = vpack.c.bf16 %v2414, %v2413
        %v2459 = vpack.c.bf16 %v2416, %v2415
        %v2460 = vpack.c.bf16 %v2418, %v2417
        %v2461 = vpack.c.bf16 %v2420, %v2419
        %v2462 = vpack.c.bf16 %v2422, %v2421
        %v2463 = vpack.c.bf16 %v2424, %v2423
        %v2464 = vpack.c.bf16 %v2426, %v2425
        %v2465 = vpack.c.bf16 %v2428, %v2427
        %v2466 = vpack.c.bf16 %v2430, %v2429
        %v2467 = vpack.c.bf16 %v2432, %v2431
        %v2468 = vpack.c.bf16 %v2434, %v2433
        %v2469 = vpack.c.bf16 %v2436, %v2435
        %v2470 = vpack.c.bf16 %v2438, %v2437
        %v2471 = vld [vmem:[#allocation11] sm:$0xff]
        %v2472 = vld [vmem:[#allocation11 + $0x8] sm:$0xff]
        %v2473 = vld [vmem:[#allocation11 + $0x10] sm:$0xff]
        %v2474 = vld [vmem:[#allocation11 + $0x18] sm:$0xff]
        %v2475 = vld [vmem:[#allocation11 + $0x20] sm:$0xff]
        %v2476 = vld [vmem:[#allocation11 + $0x28] sm:$0xff]
        %v2477 = vld [vmem:[#allocation11 + $0x30] sm:$0xff]
        %v2478 = vld [vmem:[#allocation11 + $0x38] sm:$0xff]
        %v2479 = vld [vmem:[#allocation13] sm:$0x3]
        %v2481 = vperm.slane %v2479, 0
        %v2482 = vperm.slane %v2479, 1
        %v2493 = vunpack.c.l.b16 %v2471
        %v2494 = vunpack.c.h.b16 %v2471
        %v2495 = vunpack.c.l.b16 %v2472
        %v2496 = vunpack.c.h.b16 %v2472
        %v2497 = vunpack.c.l.b16 %v2473
        %v2498 = vunpack.c.h.b16 %v2473
        %v2499 = vunpack.c.l.b16 %v2474
        %v2500 = vunpack.c.h.b16 %v2474
        %v2501 = vunpack.c.l.b16 %v2475
        %v2502 = vunpack.c.h.b16 %v2475
        %v2503 = vunpack.c.l.b16 %v2476
        %v2504 = vunpack.c.h.b16 %v2476
        %v2505 = vunpack.c.l.b16 %v2477
        %v2506 = vunpack.c.h.b16 %v2477
        %v2507 = vunpack.c.l.b16 %v2478
        %v2508 = vunpack.c.h.b16 %v2478
        %v2509 = vpack.c.b16 %v2495, %v2493
        %v2510 = vpack.c.b16 %v2496, %v2494
        %v2511 = vpack.c.b16 %v2499, %v2497
        %v2512 = vpack.c.b16 %v2500, %v2498
        %v2513 = vpack.c.b16 %v2503, %v2501
        %v2514 = vpack.c.b16 %v2504, %v2502
        %v2515 = vpack.c.b16 %v2507, %v2505
        %v2516 = vpack.c.b16 %v2508, %v2506
        %vm2525 = vcmask 523264
        %v2527 = vsel %vm2525, %v2439, 0
        %v2530 = vsel %vm2525, %v2440, 0
        %v2533 = vsel %vm2525, %v2441, 0
        %v2536 = vsel %vm2525, %v2442, 0
        %v2539 = vsel %vm2525, %v2443, 0
        %v2542 = vsel %vm2525, %v2444, 0
        %v2545 = vsel %vm2525, %v2445, 0
        %v2548 = vsel %vm2525, %v2446, 0
        %v2551 = vsel %vm2525, %v2447, 0
        %v2554 = vsel %vm2525, %v2448, 0
        %v2557 = vsel %vm2525, %v2449, 0
        %v2560 = vsel %vm2525, %v2450, 0
        %v2563 = vsel %vm2525, %v2451, 0
        %v2566 = vsel %vm2525, %v2452, 0
        %v2569 = vsel %vm2525, %v2453, 0
        %v2572 = vsel %vm2525, %v2454, 0
        %v2575 = vsel %vm2525, %v2455, 0
        %v2578 = vsel %vm2525, %v2456, 0
        %v2581 = vsel %vm2525, %v2457, 0
        %v2584 = vsel %vm2525, %v2458, 0
        %v2587 = vsel %vm2525, %v2459, 0
        %v2590 = vsel %vm2525, %v2460, 0
        %v2593 = vsel %vm2525, %v2461, 0
        %v2596 = vsel %vm2525, %v2462, 0
        %v2599 = vsel %vm2525, %v2463, 0
        %v2602 = vsel %vm2525, %v2464, 0
        %v2605 = vsel %vm2525, %v2465, 0
        %v2608 = vsel %vm2525, %v2466, 0
        %v2611 = vsel %vm2525, %v2467, 0
        %v2614 = vsel %vm2525, %v2468, 0
        %v2617 = vsel %vm2525, %v2469, 0
        %v2620 = vsel %vm2525, %v2470, 0
        %2622 = vmatpush.bf16.msra.mxu0 0
        %2623 = vmatpush.bf16.msra.mxu0 0
        %2624 = vmatpush.bf16.msra.mxu0 0
        %2625 = vmatpush.bf16.msra.mxu0 0
        %2626 = vmatpush.bf16.msra.mxu0 %v2515
        %2627 = vmatpush.bf16.msra.mxu0 %v2513
        %2628 = vmatpush.bf16.msra.mxu0 %v2511
        %2629 = vmatpush.bf16.msra.mxu0 %v2509
        %2630 = vmatmul.bf16.gmra.mxu0 %v2527
        %v2631 = vpop.f32.mrf.mxu0
        %v2632 = vadd.f32 %v2481, %v2631
        %v2633 = vpop.f32.mrf.mxu0
        %v2634 = vadd.f32 %v2481, %v2633
        %2635 = vmatmul.bf16.gmra.mxu0 %v2530
        %v2636 = vpop.f32.mrf.mxu0
        %v2637 = vadd.f32 %v2481, %v2636
        %v2638 = vpop.f32.mrf.mxu0
        %v2639 = vadd.f32 %v2481, %v2638
        %2640 = vmatmul.bf16.gmra.mxu0 %v2533
        %v2641 = vpop.f32.mrf.mxu0
        %v2642 = vadd.f32 %v2481, %v2641
        %v2643 = vpop.f32.mrf.mxu0
        %v2644 = vadd.f32 %v2481, %v2643
        %2645 = vmatmul.bf16.gmra.mxu0 %v2536
        %v2646 = vpop.f32.mrf.mxu0
        %v2647 = vadd.f32 %v2481, %v2646
        %v2648 = vpop.f32.mrf.mxu0
        %v2649 = vadd.f32 %v2481, %v2648
        %2650 = vmatmul.bf16.gmra.mxu0 %v2539
        %v2651 = vpop.f32.mrf.mxu0
        %v2652 = vadd.f32 %v2481, %v2651
        %v2653 = vpop.f32.mrf.mxu0
        %v2654 = vadd.f32 %v2481, %v2653
        %2655 = vmatmul.bf16.gmra.mxu0 %v2542
        %v2656 = vpop.f32.mrf.mxu0
        %v2657 = vadd.f32 %v2481, %v2656
        %v2658 = vpop.f32.mrf.mxu0
        %v2659 = vadd.f32 %v2481, %v2658
        %2660 = vmatmul.bf16.gmra.mxu0 %v2545
        %v2661 = vpop.f32.mrf.mxu0
        %v2662 = vadd.f32 %v2481, %v2661
        %v2663 = vpop.f32.mrf.mxu0
        %v2664 = vadd.f32 %v2481, %v2663
        %2665 = vmatmul.bf16.gmra.mxu0 %v2548
        %v2666 = vpop.f32.mrf.mxu0
        %v2667 = vadd.f32 %v2481, %v2666
        %v2668 = vpop.f32.mrf.mxu0
        %v2669 = vadd.f32 %v2481, %v2668
        %2670 = vmatmul.bf16.gmra.mxu0 %v2551
        %v2671 = vpop.f32.mrf.mxu0
        %v2672 = vadd.f32 %v2481, %v2671
        %v2673 = vpop.f32.mrf.mxu0
        %v2674 = vadd.f32 %v2481, %v2673
        %2675 = vmatmul.bf16.gmra.mxu0 %v2554
        %v2676 = vpop.f32.mrf.mxu0
        %v2677 = vadd.f32 %v2481, %v2676
        %v2678 = vpop.f32.mrf.mxu0
        %v2679 = vadd.f32 %v2481, %v2678
        %2680 = vmatmul.bf16.gmra.mxu0 %v2557
        %v2681 = vpop.f32.mrf.mxu0
        %v2682 = vadd.f32 %v2481, %v2681
        %v2683 = vpop.f32.mrf.mxu0
        %v2684 = vadd.f32 %v2481, %v2683
        %2685 = vmatmul.bf16.gmra.mxu0 %v2560
        %v2686 = vpop.f32.mrf.mxu0
        %v2687 = vadd.f32 %v2481, %v2686
        %v2688 = vpop.f32.mrf.mxu0
        %v2689 = vadd.f32 %v2481, %v2688
        %2690 = vmatmul.bf16.gmra.mxu0 %v2563
        %v2691 = vpop.f32.mrf.mxu0
        %v2692 = vadd.f32 %v2481, %v2691
        %v2693 = vpop.f32.mrf.mxu0
        %v2694 = vadd.f32 %v2481, %v2693
        %2695 = vmatmul.bf16.gmra.mxu0 %v2566
        %v2696 = vpop.f32.mrf.mxu0
        %v2697 = vadd.f32 %v2481, %v2696
        %v2698 = vpop.f32.mrf.mxu0
        %v2699 = vadd.f32 %v2481, %v2698
        %2700 = vmatmul.bf16.gmra.mxu0 %v2569
        %v2701 = vpop.f32.mrf.mxu0
        %v2702 = vadd.f32 %v2481, %v2701
        %v2703 = vpop.f32.mrf.mxu0
        %v2704 = vadd.f32 %v2481, %v2703
        %2705 = vmatmul.bf16.gmra.mxu0 %v2572
        %v2706 = vpop.f32.mrf.mxu0
        %v2707 = vadd.f32 %v2481, %v2706
        %v2708 = vpop.f32.mrf.mxu0
        %v2709 = vadd.f32 %v2481, %v2708
        %2710 = vmatmul.bf16.gmra.mxu0 %v2575
        %v2711 = vpop.f32.mrf.mxu0
        %v2712 = vadd.f32 %v2481, %v2711
        %v2713 = vpop.f32.mrf.mxu0
        %v2714 = vadd.f32 %v2481, %v2713
        %2715 = vmatmul.bf16.gmra.mxu0 %v2578
        %v2716 = vpop.f32.mrf.mxu0
        %v2717 = vadd.f32 %v2481, %v2716
        %v2718 = vpop.f32.mrf.mxu0
        %v2719 = vadd.f32 %v2481, %v2718
        %2720 = vmatmul.bf16.gmra.mxu0 %v2581
        %v2721 = vpop.f32.mrf.mxu0
        %v2722 = vadd.f32 %v2481, %v2721
        %v2723 = vpop.f32.mrf.mxu0
        %v2724 = vadd.f32 %v2481, %v2723
        %2725 = vmatmul.bf16.gmra.mxu0 %v2584
        %v2726 = vpop.f32.mrf.mxu0
        %v2727 = vadd.f32 %v2481, %v2726
        %v2728 = vpop.f32.mrf.mxu0
        %v2729 = vadd.f32 %v2481, %v2728
        %2730 = vmatmul.bf16.gmra.mxu0 %v2587
        %v2731 = vpop.f32.mrf.mxu0
        %v2732 = vadd.f32 %v2481, %v2731
        %v2733 = vpop.f32.mrf.mxu0
        %v2734 = vadd.f32 %v2481, %v2733
        %2735 = vmatmul.bf16.gmra.mxu0 %v2590
        %v2736 = vpop.f32.mrf.mxu0
        %v2737 = vadd.f32 %v2481, %v2736
        %v2738 = vpop.f32.mrf.mxu0
        %v2739 = vadd.f32 %v2481, %v2738
        %2740 = vmatmul.bf16.gmra.mxu0 %v2593
        %v2741 = vpop.f32.mrf.mxu0
        %v2742 = vadd.f32 %v2481, %v2741
        %v2743 = vpop.f32.mrf.mxu0
        %v2744 = vadd.f32 %v2481, %v2743
        %2745 = vmatmul.bf16.gmra.mxu0 %v2596
        %v2746 = vpop.f32.mrf.mxu0
        %v2747 = vadd.f32 %v2481, %v2746
        %v2748 = vpop.f32.mrf.mxu0
        %v2749 = vadd.f32 %v2481, %v2748
        %2750 = vmatmul.bf16.gmra.mxu0 %v2599
        %v2751 = vpop.f32.mrf.mxu0
        %v2752 = vadd.f32 %v2481, %v2751
        %v2753 = vpop.f32.mrf.mxu0
        %v2754 = vadd.f32 %v2481, %v2753
        %2755 = vmatmul.bf16.gmra.mxu0 %v2602
        %v2756 = vpop.f32.mrf.mxu0
        %v2757 = vadd.f32 %v2481, %v2756
        %v2758 = vpop.f32.mrf.mxu0
        %v2759 = vadd.f32 %v2481, %v2758
        %2760 = vmatmul.bf16.gmra.mxu0 %v2605
        %v2761 = vpop.f32.mrf.mxu0
        %v2762 = vadd.f32 %v2481, %v2761
        %v2763 = vpop.f32.mrf.mxu0
        %v2764 = vadd.f32 %v2481, %v2763
        %2765 = vmatmul.bf16.gmra.mxu0 %v2608
        %v2766 = vpop.f32.mrf.mxu0
        %v2767 = vadd.f32 %v2481, %v2766
        %v2768 = vpop.f32.mrf.mxu0
        %v2769 = vadd.f32 %v2481, %v2768
        %2770 = vmatmul.bf16.gmra.mxu0 %v2611
        %v2771 = vpop.f32.mrf.mxu0
        %v2772 = vadd.f32 %v2481, %v2771
        %v2773 = vpop.f32.mrf.mxu0
        %v2774 = vadd.f32 %v2481, %v2773
        %2775 = vmatmul.bf16.gmra.mxu0 %v2614
        %v2776 = vpop.f32.mrf.mxu0
        %v2777 = vadd.f32 %v2481, %v2776
        %v2778 = vpop.f32.mrf.mxu0
        %v2779 = vadd.f32 %v2481, %v2778
        %2780 = vmatmul.bf16.gmra.mxu0 %v2617
        %v2781 = vpop.f32.mrf.mxu0
        %v2782 = vadd.f32 %v2481, %v2781
        %v2783 = vpop.f32.mrf.mxu0
        %v2784 = vadd.f32 %v2481, %v2783
        %2785 = vmatmul.bf16.gmra.mxu0 %v2620
        %v2786 = vpop.f32.mrf.mxu0
        %v2787 = vadd.f32 %v2481, %v2786
        %v2788 = vpop.f32.mrf.mxu0
        %v2789 = vadd.f32 %v2481, %v2788
        %2790 = vdwg.mxu0
        %2791 = vmatpush.bf16.msra.mxu0 0
        %2792 = vmatpush.bf16.msra.mxu0 0
        %2793 = vmatpush.bf16.msra.mxu0 0
        %2794 = vmatpush.bf16.msra.mxu0 0
        %2795 = vmatpush.bf16.msra.mxu0 %v2516
        %2796 = vmatpush.bf16.msra.mxu0 %v2514
        %2797 = vmatpush.bf16.msra.mxu0 %v2512
        %2798 = vmatpush.bf16.msra.mxu0 %v2510
        %2799 = vmatmul.bf16.gmra.mxu0 %v2527
        %v2800 = vpop.f32.mrf.mxu0
        %v2801 = vadd.f32 %v2482, %v2800
        %v2802 = vpop.f32.mrf.mxu0
        %v2803 = vadd.f32 %v2482, %v2802
        %2804 = vmatmul.bf16.gmra.mxu0 %v2530
        %v2805 = vpop.f32.mrf.mxu0
        %v2806 = vadd.f32 %v2482, %v2805
        %v2807 = vpop.f32.mrf.mxu0
        %v2808 = vadd.f32 %v2482, %v2807
        %2809 = vmatmul.bf16.gmra.mxu0 %v2533
        %v2810 = vpop.f32.mrf.mxu0
        %v2811 = vadd.f32 %v2482, %v2810
        %v2812 = vpop.f32.mrf.mxu0
        %v2813 = vadd.f32 %v2482, %v2812
        %2814 = vmatmul.bf16.gmra.mxu0 %v2536
        %v2815 = vpop.f32.mrf.mxu0
        %v2816 = vadd.f32 %v2482, %v2815
        %v2817 = vpop.f32.mrf.mxu0
        %v2818 = vadd.f32 %v2482, %v2817
        %2819 = vmatmul.bf16.gmra.mxu0 %v2539
        %v2820 = vpop.f32.mrf.mxu0
        %v2821 = vadd.f32 %v2482, %v2820
        %v2822 = vpop.f32.mrf.mxu0
        %v2823 = vadd.f32 %v2482, %v2822
        %2824 = vmatmul.bf16.gmra.mxu0 %v2542
        %v2825 = vpop.f32.mrf.mxu0
        %v2826 = vadd.f32 %v2482, %v2825
        %v2827 = vpop.f32.mrf.mxu0
        %v2828 = vadd.f32 %v2482, %v2827
        %2829 = vmatmul.bf16.gmra.mxu0 %v2545
        %v2830 = vpop.f32.mrf.mxu0
        %v2831 = vadd.f32 %v2482, %v2830
        %v2832 = vpop.f32.mrf.mxu0
        %v2833 = vadd.f32 %v2482, %v2832
        %2834 = vmatmul.bf16.gmra.mxu0 %v2548
        %v2835 = vpop.f32.mrf.mxu0
        %v2836 = vadd.f32 %v2482, %v2835
        %v2837 = vpop.f32.mrf.mxu0
        %v2838 = vadd.f32 %v2482, %v2837
        %2839 = vmatmul.bf16.gmra.mxu0 %v2551
        %v2840 = vpop.f32.mrf.mxu0
        %v2841 = vadd.f32 %v2482, %v2840
        %v2842 = vpop.f32.mrf.mxu0
        %v2843 = vadd.f32 %v2482, %v2842
        %2844 = vmatmul.bf16.gmra.mxu0 %v2554
        %v2845 = vpop.f32.mrf.mxu0
        %v2846 = vadd.f32 %v2482, %v2845
        %v2847 = vpop.f32.mrf.mxu0
        %v2848 = vadd.f32 %v2482, %v2847
        %2849 = vmatmul.bf16.gmra.mxu0 %v2557
        %v2850 = vpop.f32.mrf.mxu0
        %v2851 = vadd.f32 %v2482, %v2850
        %v2852 = vpop.f32.mrf.mxu0
        %v2853 = vadd.f32 %v2482, %v2852
        %2854 = vmatmul.bf16.gmra.mxu0 %v2560
        %v2855 = vpop.f32.mrf.mxu0
        %v2856 = vadd.f32 %v2482, %v2855
        %v2857 = vpop.f32.mrf.mxu0
        %v2858 = vadd.f32 %v2482, %v2857
        %2859 = vmatmul.bf16.gmra.mxu0 %v2563
        %v2860 = vpop.f32.mrf.mxu0
        %v2861 = vadd.f32 %v2482, %v2860
        %v2862 = vpop.f32.mrf.mxu0
        %v2863 = vadd.f32 %v2482, %v2862
        %2864 = vmatmul.bf16.gmra.mxu0 %v2566
        %v2865 = vpop.f32.mrf.mxu0
        %v2866 = vadd.f32 %v2482, %v2865
        %v2867 = vpop.f32.mrf.mxu0
        %v2868 = vadd.f32 %v2482, %v2867
        %2869 = vmatmul.bf16.gmra.mxu0 %v2569
        %v2870 = vpop.f32.mrf.mxu0
        %v2871 = vadd.f32 %v2482, %v2870
        %v2872 = vpop.f32.mrf.mxu0
        %v2873 = vadd.f32 %v2482, %v2872
        %2874 = vmatmul.bf16.gmra.mxu0 %v2572
        %v2875 = vpop.f32.mrf.mxu0
        %v2876 = vadd.f32 %v2482, %v2875
        %v2877 = vpop.f32.mrf.mxu0
        %v2878 = vadd.f32 %v2482, %v2877
        %2879 = vmatmul.bf16.gmra.mxu0 %v2575
        %v2880 = vpop.f32.mrf.mxu0
        %v2881 = vadd.f32 %v2482, %v2880
        %v2882 = vpop.f32.mrf.mxu0
        %v2883 = vadd.f32 %v2482, %v2882
        %2884 = vmatmul.bf16.gmra.mxu0 %v2578
        %v2885 = vpop.f32.mrf.mxu0
        %v2886 = vadd.f32 %v2482, %v2885
        %v2887 = vpop.f32.mrf.mxu0
        %v2888 = vadd.f32 %v2482, %v2887
        %2889 = vmatmul.bf16.gmra.mxu0 %v2581
        %v2890 = vpop.f32.mrf.mxu0
        %v2891 = vadd.f32 %v2482, %v2890
        %v2892 = vpop.f32.mrf.mxu0
        %v2893 = vadd.f32 %v2482, %v2892
        %2894 = vmatmul.bf16.gmra.mxu0 %v2584
        %v2895 = vpop.f32.mrf.mxu0
        %v2896 = vadd.f32 %v2482, %v2895
        %v2897 = vpop.f32.mrf.mxu0
        %v2898 = vadd.f32 %v2482, %v2897
        %2899 = vmatmul.bf16.gmra.mxu0 %v2587
        %v2900 = vpop.f32.mrf.mxu0
        %v2901 = vadd.f32 %v2482, %v2900
        %v2902 = vpop.f32.mrf.mxu0
        %v2903 = vadd.f32 %v2482, %v2902
        %2904 = vmatmul.bf16.gmra.mxu0 %v2590
        %v2905 = vpop.f32.mrf.mxu0
        %v2906 = vadd.f32 %v2482, %v2905
        %v2907 = vpop.f32.mrf.mxu0
        %v2908 = vadd.f32 %v2482, %v2907
        %2909 = vmatmul.bf16.gmra.mxu0 %v2593
        %v2910 = vpop.f32.mrf.mxu0
        %v2911 = vadd.f32 %v2482, %v2910
        %v2912 = vpop.f32.mrf.mxu0
        %v2913 = vadd.f32 %v2482, %v2912
        %2914 = vmatmul.bf16.gmra.mxu0 %v2596
        %v2915 = vpop.f32.mrf.mxu0
        %v2916 = vadd.f32 %v2482, %v2915
        %v2917 = vpop.f32.mrf.mxu0
        %v2918 = vadd.f32 %v2482, %v2917
        %2919 = vmatmul.bf16.gmra.mxu0 %v2599
        %v2920 = vpop.f32.mrf.mxu0
        %v2921 = vadd.f32 %v2482, %v2920
        %v2922 = vpop.f32.mrf.mxu0
        %v2923 = vadd.f32 %v2482, %v2922
        %2924 = vmatmul.bf16.gmra.mxu0 %v2602
        %v2925 = vpop.f32.mrf.mxu0
        %v2926 = vadd.f32 %v2482, %v2925
        %v2927 = vpop.f32.mrf.mxu0
        %v2928 = vadd.f32 %v2482, %v2927
        %2929 = vmatmul.bf16.gmra.mxu0 %v2605
        %v2930 = vpop.f32.mrf.mxu0
        %v2931 = vadd.f32 %v2482, %v2930
        %v2932 = vpop.f32.mrf.mxu0
        %v2933 = vadd.f32 %v2482, %v2932
        %2934 = vmatmul.bf16.gmra.mxu0 %v2608
        %v2935 = vpop.f32.mrf.mxu0
        %v2936 = vadd.f32 %v2482, %v2935
        %v2937 = vpop.f32.mrf.mxu0
        %v2938 = vadd.f32 %v2482, %v2937
        %2939 = vmatmul.bf16.gmra.mxu0 %v2611
        %v2940 = vpop.f32.mrf.mxu0
        %v2941 = vadd.f32 %v2482, %v2940
        %v2942 = vpop.f32.mrf.mxu0
        %v2943 = vadd.f32 %v2482, %v2942
        %2944 = vmatmul.bf16.gmra.mxu0 %v2614
        %v2945 = vpop.f32.mrf.mxu0
        %v2946 = vadd.f32 %v2482, %v2945
        %v2947 = vpop.f32.mrf.mxu0
        %v2948 = vadd.f32 %v2482, %v2947
        %2949 = vmatmul.bf16.gmra.mxu0 %v2617
        %v2950 = vpop.f32.mrf.mxu0
        %v2951 = vadd.f32 %v2482, %v2950
        %v2952 = vpop.f32.mrf.mxu0
        %v2953 = vadd.f32 %v2482, %v2952
        %2954 = vmatmul.bf16.gmra.mxu0 %v2620
        %v2955 = vpop.f32.mrf.mxu0
        %v2956 = vadd.f32 %v2482, %v2955
        %v2957 = vpop.f32.mrf.mxu0
        %v2958 = vadd.f32 %v2482, %v2957
        %2959 = vdwg.mxu0
        %v2960 = vxor.u32 %v2632, 2147483648
        %v2961 = vxor.u32 %v2801, 2147483648
        %v2962 = vxor.u32 %v2634, 2147483648
        %v2963 = vxor.u32 %v2803, 2147483648
        %v2964 = vxor.u32 %v2637, 2147483648
        %v2965 = vxor.u32 %v2806, 2147483648
        %v2966 = vxor.u32 %v2639, 2147483648
        %v2967 = vxor.u32 %v2808, 2147483648
        %v2968 = vxor.u32 %v2642, 2147483648
        %v2969 = vxor.u32 %v2811, 2147483648
        %v2970 = vxor.u32 %v2644, 2147483648
        %v2971 = vxor.u32 %v2813, 2147483648
        %v2972 = vxor.u32 %v2647, 2147483648
        %v2973 = vxor.u32 %v2816, 2147483648
        %v2974 = vxor.u32 %v2649, 2147483648
        %v2975 = vxor.u32 %v2818, 2147483648
        %v2976 = vxor.u32 %v2652, 2147483648
        %v2977 = vxor.u32 %v2821, 2147483648
        %v2978 = vxor.u32 %v2654, 2147483648
        %v2979 = vxor.u32 %v2823, 2147483648
        %v2980 = vxor.u32 %v2657, 2147483648
        %v2981 = vxor.u32 %v2826, 2147483648
        %v2982 = vxor.u32 %v2659, 2147483648
        %v2983 = vxor.u32 %v2828, 2147483648
        %v2984 = vxor.u32 %v2662, 2147483648
        %v2985 = vxor.u32 %v2831, 2147483648
        %v2986 = vxor.u32 %v2664, 2147483648
        %v2987 = vxor.u32 %v2833, 2147483648
        %v2988 = vxor.u32 %v2667, 2147483648
        %v2989 = vxor.u32 %v2836, 2147483648
        %v2990 = vxor.u32 %v2669, 2147483648
        %v2991 = vxor.u32 %v2838, 2147483648
        %v2992 = vxor.u32 %v2672, 2147483648
        %v2993 = vxor.u32 %v2841, 2147483648
        %v2994 = vxor.u32 %v2674, 2147483648
        %v2995 = vxor.u32 %v2843, 2147483648
        %v2996 = vxor.u32 %v2677, 2147483648
        %v2997 = vxor.u32 %v2846, 2147483648
        %v2998 = vxor.u32 %v2679, 2147483648
        %v2999 = vxor.u32 %v2848, 2147483648
        %v3000 = vxor.u32 %v2682, 2147483648
        %v3001 = vxor.u32 %v2851, 2147483648
        %v3002 = vxor.u32 %v2684, 2147483648
        %v3003 = vxor.u32 %v2853, 2147483648
        %v3004 = vxor.u32 %v2687, 2147483648
        %v3005 = vxor.u32 %v2856, 2147483648
        %v3006 = vxor.u32 %v2689, 2147483648
        %v3007 = vxor.u32 %v2858, 2147483648
        %v3008 = vxor.u32 %v2692, 2147483648
        %v3009 = vxor.u32 %v2861, 2147483648
        %v3010 = vxor.u32 %v2694, 2147483648
        %v3011 = vxor.u32 %v2863, 2147483648
        %v3012 = vxor.u32 %v2697, 2147483648
        %v3013 = vxor.u32 %v2866, 2147483648
        %v3014 = vxor.u32 %v2699, 2147483648
        %v3015 = vxor.u32 %v2868, 2147483648
        %v3016 = vxor.u32 %v2702, 2147483648
        %v3017 = vxor.u32 %v2871, 2147483648
        %v3018 = vxor.u32 %v2704, 2147483648
        %v3019 = vxor.u32 %v2873, 2147483648
        %v3020 = vxor.u32 %v2707, 2147483648
        %v3021 = vxor.u32 %v2876, 2147483648
        %v3022 = vxor.u32 %v2709, 2147483648
        %v3023 = vxor.u32 %v2878, 2147483648
        %v3024 = vxor.u32 %v2712, 2147483648
        %v3025 = vxor.u32 %v2881, 2147483648
        %v3026 = vxor.u32 %v2714, 2147483648
        %v3027 = vxor.u32 %v2883, 2147483648
        %v3028 = vxor.u32 %v2717, 2147483648
        %v3029 = vxor.u32 %v2886, 2147483648
        %v3030 = vxor.u32 %v2719, 2147483648
        %v3031 = vxor.u32 %v2888, 2147483648
        %v3032 = vxor.u32 %v2722, 2147483648
        %v3033 = vxor.u32 %v2891, 2147483648
        %v3034 = vxor.u32 %v2724, 2147483648
        %v3035 = vxor.u32 %v2893, 2147483648
        %v3036 = vxor.u32 %v2727, 2147483648
        %v3037 = vxor.u32 %v2896, 2147483648
        %v3038 = vxor.u32 %v2729, 2147483648
        %v3039 = vxor.u32 %v2898, 2147483648
        %v3040 = vxor.u32 %v2732, 2147483648
        %v3041 = vxor.u32 %v2901, 2147483648
        %v3042 = vxor.u32 %v2734, 2147483648
        %v3043 = vxor.u32 %v2903, 2147483648
        %v3044 = vxor.u32 %v2737, 2147483648
        %v3045 = vxor.u32 %v2906, 2147483648
        %v3046 = vxor.u32 %v2739, 2147483648
        %v3047 = vxor.u32 %v2908, 2147483648
        %v3048 = vxor.u32 %v2742, 2147483648
        %v3049 = vxor.u32 %v2911, 2147483648
        %v3050 = vxor.u32 %v2744, 2147483648
        %v3051 = vxor.u32 %v2913, 2147483648
        %v3052 = vxor.u32 %v2747, 2147483648
        %v3053 = vxor.u32 %v2916, 2147483648
        %v3054 = vxor.u32 %v2749, 2147483648
        %v3055 = vxor.u32 %v2918, 2147483648
        %v3056 = vxor.u32 %v2752, 2147483648
        %v3057 = vxor.u32 %v2921, 2147483648
        %v3058 = vxor.u32 %v2754, 2147483648
        %v3059 = vxor.u32 %v2923, 2147483648
        %v3060 = vxor.u32 %v2757, 2147483648
        %v3061 = vxor.u32 %v2926, 2147483648
        %v3062 = vxor.u32 %v2759, 2147483648
        %v3063 = vxor.u32 %v2928, 2147483648
        %v3064 = vxor.u32 %v2762, 2147483648
        %v3065 = vxor.u32 %v2931, 2147483648
        %v3066 = vxor.u32 %v2764, 2147483648
        %v3067 = vxor.u32 %v2933, 2147483648
        %v3068 = vxor.u32 %v2767, 2147483648
        %v3069 = vxor.u32 %v2936, 2147483648
        %v3070 = vxor.u32 %v2769, 2147483648
        %v3071 = vxor.u32 %v2938, 2147483648
        %v3072 = vxor.u32 %v2772, 2147483648
        %v3073 = vxor.u32 %v2941, 2147483648
        %v3074 = vxor.u32 %v2774, 2147483648
        %v3075 = vxor.u32 %v2943, 2147483648
        %v3076 = vxor.u32 %v2777, 2147483648
        %v3077 = vxor.u32 %v2946, 2147483648
        %v3078 = vxor.u32 %v2779, 2147483648
        %v3079 = vxor.u32 %v2948, 2147483648
        %v3080 = vxor.u32 %v2782, 2147483648
        %v3081 = vxor.u32 %v2951, 2147483648
        %v3082 = vxor.u32 %v2784, 2147483648
        %v3083 = vxor.u32 %v2953, 2147483648
        %v3084 = vxor.u32 %v2787, 2147483648
        %v3085 = vxor.u32 %v2956, 2147483648
        %v3086 = vxor.u32 %v2789, 2147483648
        %v3087 = vxor.u32 %v2958, 2147483648
        %v3088 = vmul.f32 %v2960, 1.442695
        %v3089 = vpow.pop %v3088
        %v3090 = vmul.f32 %v2961, 1.442695
        %v3091 = vpow.pop %v3090
        %v3092 = vmul.f32 %v2962, 1.442695
        %v3093 = vpow.pop %v3092
        %v3094 = vmul.f32 %v2963, 1.442695
        %v3095 = vpow.pop %v3094
        %v3096 = vmul.f32 %v2964, 1.442695
        %v3097 = vpow.pop %v3096
        %v3098 = vmul.f32 %v2965, 1.442695
        %v3099 = vpow.pop %v3098
        %v3100 = vmul.f32 %v2966, 1.442695
        %v3101 = vpow.pop %v3100
        %v3102 = vmul.f32 %v2967, 1.442695
        %v3103 = vpow.pop %v3102
        %v3104 = vmul.f32 %v2968, 1.442695
        %v3105 = vpow.pop %v3104
        %v3106 = vmul.f32 %v2969, 1.442695
        %v3107 = vpow.pop %v3106
        %v3108 = vmul.f32 %v2970, 1.442695
        %v3109 = vpow.pop %v3108
        %v3110 = vmul.f32 %v2971, 1.442695
        %v3111 = vpow.pop %v3110
        %v3112 = vmul.f32 %v2972, 1.442695
        %v3113 = vpow.pop %v3112
        %v3114 = vmul.f32 %v2973, 1.442695
        %v3115 = vpow.pop %v3114
        %v3116 = vmul.f32 %v2974, 1.442695
        %v3117 = vpow.pop %v3116
        %v3118 = vmul.f32 %v2975, 1.442695
        %v3119 = vpow.pop %v3118
        %v3120 = vmul.f32 %v2976, 1.442695
        %v3121 = vpow.pop %v3120
        %v3122 = vmul.f32 %v2977, 1.442695
        %v3123 = vpow.pop %v3122
        %v3124 = vmul.f32 %v2978, 1.442695
        %v3125 = vpow.pop %v3124
        %v3126 = vmul.f32 %v2979, 1.442695
        %v3127 = vpow.pop %v3126
        %v3128 = vmul.f32 %v2980, 1.442695
        %v3129 = vpow.pop %v3128
        %v3130 = vmul.f32 %v2981, 1.442695
        %v3131 = vpow.pop %v3130
        %v3132 = vmul.f32 %v2982, 1.442695
        %v3133 = vpow.pop %v3132
        %v3134 = vmul.f32 %v2983, 1.442695
        %v3135 = vpow.pop %v3134
        %v3136 = vmul.f32 %v2984, 1.442695
        %v3137 = vpow.pop %v3136
        %v3138 = vmul.f32 %v2985, 1.442695
        %v3139 = vpow.pop %v3138
        %v3140 = vmul.f32 %v2986, 1.442695
        %v3141 = vpow.pop %v3140
        %v3142 = vmul.f32 %v2987, 1.442695
        %v3143 = vpow.pop %v3142
        %v3144 = vmul.f32 %v2988, 1.442695
        %v3145 = vpow.pop %v3144
        %v3146 = vmul.f32 %v2989, 1.442695
        %v3147 = vpow.pop %v3146
        %v3148 = vmul.f32 %v2990, 1.442695
        %v3149 = vpow.pop %v3148
        %v3150 = vmul.f32 %v2991, 1.442695
        %v3151 = vpow.pop %v3150
        %v3152 = vmul.f32 %v2992, 1.442695
        %v3153 = vpow.pop %v3152
        %v3154 = vmul.f32 %v2993, 1.442695
        %v3155 = vpow.pop %v3154
        %v3156 = vmul.f32 %v2994, 1.442695
        %v3157 = vpow.pop %v3156
        %v3158 = vmul.f32 %v2995, 1.442695
        %v3159 = vpow.pop %v3158
        %v3160 = vmul.f32 %v2996, 1.442695
        %v3161 = vpow.pop %v3160
        %v3162 = vmul.f32 %v2997, 1.442695
        %v3163 = vpow.pop %v3162
        %v3164 = vmul.f32 %v2998, 1.442695
        %v3165 = vpow.pop %v3164
        %v3166 = vmul.f32 %v2999, 1.442695
        %v3167 = vpow.pop %v3166
        %v3168 = vmul.f32 %v3000, 1.442695
        %v3169 = vpow.pop %v3168
        %v3170 = vmul.f32 %v3001, 1.442695
        %v3171 = vpow.pop %v3170
        %v3172 = vmul.f32 %v3002, 1.442695
        %v3173 = vpow.pop %v3172
        %v3174 = vmul.f32 %v3003, 1.442695
        %v3175 = vpow.pop %v3174
        %v3176 = vmul.f32 %v3004, 1.442695
        %v3177 = vpow.pop %v3176
        %v3178 = vmul.f32 %v3005, 1.442695
        %v3179 = vpow.pop %v3178
        %v3180 = vmul.f32 %v3006, 1.442695
        %v3181 = vpow.pop %v3180
        %v3182 = vmul.f32 %v3007, 1.442695
        %v3183 = vpow.pop %v3182
        %v3184 = vmul.f32 %v3008, 1.442695
        %v3185 = vpow.pop %v3184
        %v3186 = vmul.f32 %v3009, 1.442695
        %v3187 = vpow.pop %v3186
        %v3188 = vmul.f32 %v3010, 1.442695
        %v3189 = vpow.pop %v3188
        %v3190 = vmul.f32 %v3011, 1.442695
        %v3191 = vpow.pop %v3190
        %v3192 = vmul.f32 %v3012, 1.442695
        %v3193 = vpow.pop %v3192
        %v3194 = vmul.f32 %v3013, 1.442695
        %v3195 = vpow.pop %v3194
        %v3196 = vmul.f32 %v3014, 1.442695
        %v3197 = vpow.pop %v3196
        %v3198 = vmul.f32 %v3015, 1.442695
        %v3199 = vpow.pop %v3198
        %v3200 = vmul.f32 %v3016, 1.442695
        %v3201 = vpow.pop %v3200
        %v3202 = vmul.f32 %v3017, 1.442695
        %v3203 = vpow.pop %v3202
        %v3204 = vmul.f32 %v3018, 1.442695
        %v3205 = vpow.pop %v3204
        %v3206 = vmul.f32 %v3019, 1.442695
        %v3207 = vpow.pop %v3206
        %v3208 = vmul.f32 %v3020, 1.442695
        %v3209 = vpow.pop %v3208
        %v3210 = vmul.f32 %v3021, 1.442695
        %v3211 = vpow.pop %v3210
        %v3212 = vmul.f32 %v3022, 1.442695
        %v3213 = vpow.pop %v3212
        %v3214 = vmul.f32 %v3023, 1.442695
        %v3215 = vpow.pop %v3214
        %v3216 = vmul.f32 %v3024, 1.442695
        %v3217 = vpow.pop %v3216
        %v3218 = vmul.f32 %v3025, 1.442695
        %v3219 = vpow.pop %v3218
        %v3220 = vmul.f32 %v3026, 1.442695
        %v3221 = vpow.pop %v3220
        %v3222 = vmul.f32 %v3027, 1.442695
        %v3223 = vpow.pop %v3222
        %v3224 = vmul.f32 %v3028, 1.442695
        %v3225 = vpow.pop %v3224
        %v3226 = vmul.f32 %v3029, 1.442695
        %v3227 = vpow.pop %v3226
        %v3228 = vmul.f32 %v3030, 1.442695
        %v3229 = vpow.pop %v3228
        %v3230 = vmul.f32 %v3031, 1.442695
        %v3231 = vpow.pop %v3230
        %v3232 = vmul.f32 %v3032, 1.442695
        %v3233 = vpow.pop %v3232
        %v3234 = vmul.f32 %v3033, 1.442695
        %v3235 = vpow.pop %v3234
        %v3236 = vmul.f32 %v3034, 1.442695
        %v3237 = vpow.pop %v3236
        %v3238 = vmul.f32 %v3035, 1.442695
        %v3239 = vpow.pop %v3238
        %v3240 = vmul.f32 %v3036, 1.442695
        %v3241 = vpow.pop %v3240
        %v3242 = vmul.f32 %v3037, 1.442695
        %v3243 = vpow.pop %v3242
        %v3244 = vmul.f32 %v3038, 1.442695
        %v3245 = vpow.pop %v3244
        %v3246 = vmul.f32 %v3039, 1.442695
        %v3247 = vpow.pop %v3246
        %v3248 = vmul.f32 %v3040, 1.442695
        %v3249 = vpow.pop %v3248
        %v3250 = vmul.f32 %v3041, 1.442695
        %v3251 = vpow.pop %v3250
        %v3252 = vmul.f32 %v3042, 1.442695
        %v3253 = vpow.pop %v3252
        %v3254 = vmul.f32 %v3043, 1.442695
        %v3255 = vpow.pop %v3254
        %v3256 = vmul.f32 %v3044, 1.442695
        %v3257 = vpow.pop %v3256
        %v3258 = vmul.f32 %v3045, 1.442695
        %v3259 = vpow.pop %v3258
        %v3260 = vmul.f32 %v3046, 1.442695
        %v3261 = vpow.pop %v3260
        %v3262 = vmul.f32 %v3047, 1.442695
        %v3263 = vpow.pop %v3262
        %v3264 = vmul.f32 %v3048, 1.442695
        %v3265 = vpow.pop %v3264
        %v3266 = vmul.f32 %v3049, 1.442695
        %v3267 = vpow.pop %v3266
        %v3268 = vmul.f32 %v3050, 1.442695
        %v3269 = vpow.pop %v3268
        %v3270 = vmul.f32 %v3051, 1.442695
        %v3271 = vpow.pop %v3270
        %v3272 = vmul.f32 %v3052, 1.442695
        %v3273 = vpow.pop %v3272
        %v3274 = vmul.f32 %v3053, 1.442695
        %v3275 = vpow.pop %v3274
        %v3276 = vmul.f32 %v3054, 1.442695
        %v3277 = vpow.pop %v3276
        %v3278 = vmul.f32 %v3055, 1.442695
        %v3279 = vpow.pop %v3278
        %v3280 = vmul.f32 %v3056, 1.442695
        %v3281 = vpow.pop %v3280
        %v3282 = vmul.f32 %v3057, 1.442695
        %v3283 = vpow.pop %v3282
        %v3284 = vmul.f32 %v3058, 1.442695
        %v3285 = vpow.pop %v3284
        %v3286 = vmul.f32 %v3059, 1.442695
        %v3287 = vpow.pop %v3286
        %v3288 = vmul.f32 %v3060, 1.442695
        %v3289 = vpow.pop %v3288
        %v3290 = vmul.f32 %v3061, 1.442695
        %v3291 = vpow.pop %v3290
        %v3292 = vmul.f32 %v3062, 1.442695
        %v3293 = vpow.pop %v3292
        %v3294 = vmul.f32 %v3063, 1.442695
        %v3295 = vpow.pop %v3294
        %v3296 = vmul.f32 %v3064, 1.442695
        %v3297 = vpow.pop %v3296
        %v3298 = vmul.f32 %v3065, 1.442695
        %v3299 = vpow.pop %v3298
        %v3300 = vmul.f32 %v3066, 1.442695
        %v3301 = vpow.pop %v3300
        %v3302 = vmul.f32 %v3067, 1.442695
        %v3303 = vpow.pop %v3302
        %v3304 = vmul.f32 %v3068, 1.442695
        %v3305 = vpow.pop %v3304
        %v3306 = vmul.f32 %v3069, 1.442695
        %v3307 = vpow.pop %v3306
        %v3308 = vmul.f32 %v3070, 1.442695
        %v3309 = vpow.pop %v3308
        %v3310 = vmul.f32 %v3071, 1.442695
        %v3311 = vpow.pop %v3310
        %v3312 = vmul.f32 %v3072, 1.442695
        %v3313 = vpow.pop %v3312
        %v3314 = vmul.f32 %v3073, 1.442695
        %v3315 = vpow.pop %v3314
        %v3316 = vmul.f32 %v3074, 1.442695
        %v3317 = vpow.pop %v3316
        %v3318 = vmul.f32 %v3075, 1.442695
        %v3319 = vpow.pop %v3318
        %v3320 = vmul.f32 %v3076, 1.442695
        %v3321 = vpow.pop %v3320
        %v3322 = vmul.f32 %v3077, 1.442695
        %v3323 = vpow.pop %v3322
        %v3324 = vmul.f32 %v3078, 1.442695
        %v3325 = vpow.pop %v3324
        %v3326 = vmul.f32 %v3079, 1.442695
        %v3327 = vpow.pop %v3326
        %v3328 = vmul.f32 %v3080, 1.442695
        %v3329 = vpow.pop %v3328
        %v3330 = vmul.f32 %v3081, 1.442695
        %v3331 = vpow.pop %v3330
        %v3332 = vmul.f32 %v3082, 1.442695
        %v3333 = vpow.pop %v3332
        %v3334 = vmul.f32 %v3083, 1.442695
        %v3335 = vpow.pop %v3334
        %v3336 = vmul.f32 %v3084, 1.442695
        %v3337 = vpow.pop %v3336
        %v3338 = vmul.f32 %v3085, 1.442695
        %v3339 = vpow.pop %v3338
        %v3340 = vmul.f32 %v3086, 1.442695
        %v3341 = vpow.pop %v3340
        %v3342 = vmul.f32 %v3087, 1.442695
        %v3343 = vpow.pop %v3342
        %v3344 = vadd.f32 %v3089, 1.0
        %v3345 = vadd.f32 %v3091, 1.0
        %v3346 = vadd.f32 %v3093, 1.0
        %v3347 = vadd.f32 %v3095, 1.0
        %v3348 = vadd.f32 %v3097, 1.0
        %v3349 = vadd.f32 %v3099, 1.0
        %v3350 = vadd.f32 %v3101, 1.0
        %v3351 = vadd.f32 %v3103, 1.0
        %v3352 = vadd.f32 %v3105, 1.0
        %v3353 = vadd.f32 %v3107, 1.0
        %v3354 = vadd.f32 %v3109, 1.0
        %v3355 = vadd.f32 %v3111, 1.0
        %v3356 = vadd.f32 %v3113, 1.0
        %v3357 = vadd.f32 %v3115, 1.0
        %v3358 = vadd.f32 %v3117, 1.0
        %v3359 = vadd.f32 %v3119, 1.0
        %v3360 = vadd.f32 %v3121, 1.0
        %v3361 = vadd.f32 %v3123, 1.0
        %v3362 = vadd.f32 %v3125, 1.0
        %v3363 = vadd.f32 %v3127, 1.0
        %v3364 = vadd.f32 %v3129, 1.0
        %v3365 = vadd.f32 %v3131, 1.0
        %v3366 = vadd.f32 %v3133, 1.0
        %v3367 = vadd.f32 %v3135, 1.0
        %v3368 = vadd.f32 %v3137, 1.0
        %v3369 = vadd.f32 %v3139, 1.0
        %v3370 = vadd.f32 %v3141, 1.0
        %v3371 = vadd.f32 %v3143, 1.0
        %v3372 = vadd.f32 %v3145, 1.0
        %v3373 = vadd.f32 %v3147, 1.0
        %v3374 = vadd.f32 %v3149, 1.0
        %v3375 = vadd.f32 %v3151, 1.0
        %v3376 = vadd.f32 %v3153, 1.0
        %v3377 = vadd.f32 %v3155, 1.0
        %v3378 = vadd.f32 %v3157, 1.0
        %v3379 = vadd.f32 %v3159, 1.0
        %v3380 = vadd.f32 %v3161, 1.0
        %v3381 = vadd.f32 %v3163, 1.0
        %v3382 = vadd.f32 %v3165, 1.0
        %v3383 = vadd.f32 %v3167, 1.0
        %v3384 = vadd.f32 %v3169, 1.0
        %v3385 = vadd.f32 %v3171, 1.0
        %v3386 = vadd.f32 %v3173, 1.0
        %v3387 = vadd.f32 %v3175, 1.0
        %v3388 = vadd.f32 %v3177, 1.0
        %v3389 = vadd.f32 %v3179, 1.0
        %v3390 = vadd.f32 %v3181, 1.0
        %v3391 = vadd.f32 %v3183, 1.0
        %v3392 = vadd.f32 %v3185, 1.0
        %v3393 = vadd.f32 %v3187, 1.0
        %v3394 = vadd.f32 %v3189, 1.0
        %v3395 = vadd.f32 %v3191, 1.0
        %v3396 = vadd.f32 %v3193, 1.0
        %v3397 = vadd.f32 %v3195, 1.0
        %v3398 = vadd.f32 %v3197, 1.0
        %v3399 = vadd.f32 %v3199, 1.0
        %v3400 = vadd.f32 %v3201, 1.0
        %v3401 = vadd.f32 %v3203, 1.0
        %v3402 = vadd.f32 %v3205, 1.0
        %v3403 = vadd.f32 %v3207, 1.0
        %v3404 = vadd.f32 %v3209, 1.0
        %v3405 = vadd.f32 %v3211, 1.0
        %v3406 = vadd.f32 %v3213, 1.0
        %v3407 = vadd.f32 %v3215, 1.0
        %v3408 = vadd.f32 %v3217, 1.0
        %v3409 = vadd.f32 %v3219, 1.0
        %v3410 = vadd.f32 %v3221, 1.0
        %v3411 = vadd.f32 %v3223, 1.0
        %v3412 = vadd.f32 %v3225, 1.0
        %v3413 = vadd.f32 %v3227, 1.0
        %v3414 = vadd.f32 %v3229, 1.0
        %v3415 = vadd.f32 %v3231, 1.0
        %v3416 = vadd.f32 %v3233, 1.0
        %v3417 = vadd.f32 %v3235, 1.0
        %v3418 = vadd.f32 %v3237, 1.0
        %v3419 = vadd.f32 %v3239, 1.0
        %v3420 = vadd.f32 %v3241, 1.0
        %v3421 = vadd.f32 %v3243, 1.0
        %v3422 = vadd.f32 %v3245, 1.0
        %v3423 = vadd.f32 %v3247, 1.0
        %v3424 = vadd.f32 %v3249, 1.0
        %v3425 = vadd.f32 %v3251, 1.0
        %v3426 = vadd.f32 %v3253, 1.0
        %v3427 = vadd.f32 %v3255, 1.0
        %v3428 = vadd.f32 %v3257, 1.0
        %v3429 = vadd.f32 %v3259, 1.0
        %v3430 = vadd.f32 %v3261, 1.0
        %v3431 = vadd.f32 %v3263, 1.0
        %v3432 = vadd.f32 %v3265, 1.0
        %v3433 = vadd.f32 %v3267, 1.0
        %v3434 = vadd.f32 %v3269, 1.0
        %v3435 = vadd.f32 %v3271, 1.0
        %v3436 = vadd.f32 %v3273, 1.0
        %v3437 = vadd.f32 %v3275, 1.0
        %v3438 = vadd.f32 %v3277, 1.0
        %v3439 = vadd.f32 %v3279, 1.0
        %v3440 = vadd.f32 %v3281, 1.0
        %v3441 = vadd.f32 %v3283, 1.0
        %v3442 = vadd.f32 %v3285, 1.0
        %v3443 = vadd.f32 %v3287, 1.0
        %v3444 = vadd.f32 %v3289, 1.0
        %v3445 = vadd.f32 %v3291, 1.0
        %v3446 = vadd.f32 %v3293, 1.0
        %v3447 = vadd.f32 %v3295, 1.0
        %v3448 = vadd.f32 %v3297, 1.0
        %v3449 = vadd.f32 %v3299, 1.0
        %v3450 = vadd.f32 %v3301, 1.0
        %v3451 = vadd.f32 %v3303, 1.0
        %v3452 = vadd.f32 %v3305, 1.0
        %v3453 = vadd.f32 %v3307, 1.0
        %v3454 = vadd.f32 %v3309, 1.0
        %v3455 = vadd.f32 %v3311, 1.0
        %v3456 = vadd.f32 %v3313, 1.0
        %v3457 = vadd.f32 %v3315, 1.0
        %v3458 = vadd.f32 %v3317, 1.0
        %v3459 = vadd.f32 %v3319, 1.0
        %v3460 = vadd.f32 %v3321, 1.0
        %v3461 = vadd.f32 %v3323, 1.0
        %v3462 = vadd.f32 %v3325, 1.0
        %v3463 = vadd.f32 %v3327, 1.0
        %v3464 = vadd.f32 %v3329, 1.0
        %v3465 = vadd.f32 %v3331, 1.0
        %v3466 = vadd.f32 %v3333, 1.0
        %v3467 = vadd.f32 %v3335, 1.0
        %v3468 = vadd.f32 %v3337, 1.0
        %v3469 = vadd.f32 %v3339, 1.0
        %v3470 = vadd.f32 %v3341, 1.0
        %v3471 = vadd.f32 %v3343, 1.0
        %v3472 = vrcp.pop %v3344
        %v3473 = vmul.f32 %v3344, %v3472
        %v3474 = vsub.f32 1.0, %v3473
        %v3475 = vmul.f32 %v3472, %v3474
        %v3476 = vadd.f32 %v3472, %v3475
        %vm3477 = vweird.f32 %v3344
        %vm3478 = vweird.f32 %v3472
        %vm3479 = vmor %vm3477, %vm3478
        %v3480 = vsel %vm3479, %v3472, %v3476
        %v3481 = vand.u32 2147483647, %v3344
        %vm3482 = vcmp.eq.f32.partialorder %v3481, 8.507059e+37
        %v3483 = vand.u32 %v3344, 2147483648
        %v3484 = vor.u32 1.1754944e-38, %v3483
        %v3485 = vsel %vm3482, %v3484, %v3480
        %v3486 = vmul.f32 1.0, %v3485
        %v3487 = vrcp.pop %v3345
        %v3488 = vmul.f32 %v3345, %v3487
        %v3489 = vsub.f32 1.0, %v3488
        %v3490 = vmul.f32 %v3487, %v3489
        %v3491 = vadd.f32 %v3487, %v3490
        %vm3492 = vweird.f32 %v3345
        %vm3493 = vweird.f32 %v3487
        %vm3494 = vmor %vm3492, %vm3493
        %v3495 = vsel %vm3494, %v3487, %v3491
        %v3496 = vand.u32 2147483647, %v3345
        %vm3497 = vcmp.eq.f32.partialorder %v3496, 8.507059e+37
        %v3498 = vand.u32 %v3345, 2147483648
        %v3499 = vor.u32 1.1754944e-38, %v3498
        %v3500 = vsel %vm3497, %v3499, %v3495
        %v3501 = vmul.f32 1.0, %v3500
        %v3502 = vrcp.pop %v3346
        %v3503 = vmul.f32 %v3346, %v3502
        %v3504 = vsub.f32 1.0, %v3503
        %v3505 = vmul.f32 %v3502, %v3504
        %v3506 = vadd.f32 %v3502, %v3505
        %vm3507 = vweird.f32 %v3346
        %vm3508 = vweird.f32 %v3502
        %vm3509 = vmor %vm3507, %vm3508
        %v3510 = vsel %vm3509, %v3502, %v3506
        %v3511 = vand.u32 2147483647, %v3346
        %vm3512 = vcmp.eq.f32.partialorder %v3511, 8.507059e+37
        %v3513 = vand.u32 %v3346, 2147483648
        %v3514 = vor.u32 1.1754944e-38, %v3513
        %v3515 = vsel %vm3512, %v3514, %v3510
        %v3516 = vmul.f32 1.0, %v3515
        %v3517 = vrcp.pop %v3347
        %v3518 = vmul.f32 %v3347, %v3517
        %v3519 = vsub.f32 1.0, %v3518
        %v3520 = vmul.f32 %v3517, %v3519
        %v3521 = vadd.f32 %v3517, %v3520
        %vm3522 = vweird.f32 %v3347
        %vm3523 = vweird.f32 %v3517
        %vm3524 = vmor %vm3522, %vm3523
        %v3525 = vsel %vm3524, %v3517, %v3521
        %v3526 = vand.u32 2147483647, %v3347
        %vm3527 = vcmp.eq.f32.partialorder %v3526, 8.507059e+37
        %v3528 = vand.u32 %v3347, 2147483648
        %v3529 = vor.u32 1.1754944e-38, %v3528
        %v3530 = vsel %vm3527, %v3529, %v3525
        %v3531 = vmul.f32 1.0, %v3530
        %v3532 = vrcp.pop %v3348
        %v3533 = vmul.f32 %v3348, %v3532
        %v3534 = vsub.f32 1.0, %v3533
        %v3535 = vmul.f32 %v3532, %v3534
        %v3536 = vadd.f32 %v3532, %v3535
        %vm3537 = vweird.f32 %v3348
        %vm3538 = vweird.f32 %v3532
        %vm3539 = vmor %vm3537, %vm3538
        %v3540 = vsel %vm3539, %v3532, %v3536
        %v3541 = vand.u32 2147483647, %v3348
        %vm3542 = vcmp.eq.f32.partialorder %v3541, 8.507059e+37
        %v3543 = vand.u32 %v3348, 2147483648
        %v3544 = vor.u32 1.1754944e-38, %v3543
        %v3545 = vsel %vm3542, %v3544, %v3540
        %v3546 = vmul.f32 1.0, %v3545
        %v3547 = vrcp.pop %v3349
        %v3548 = vmul.f32 %v3349, %v3547
        %v3549 = vsub.f32 1.0, %v3548
        %v3550 = vmul.f32 %v3547, %v3549
        %v3551 = vadd.f32 %v3547, %v3550
        %vm3552 = vweird.f32 %v3349
        %vm3553 = vweird.f32 %v3547
        %vm3554 = vmor %vm3552, %vm3553
        %v3555 = vsel %vm3554, %v3547, %v3551
        %v3556 = vand.u32 2147483647, %v3349
        %vm3557 = vcmp.eq.f32.partialorder %v3556, 8.507059e+37
        %v3558 = vand.u32 %v3349, 2147483648
        %v3559 = vor.u32 1.1754944e-38, %v3558
        %v3560 = vsel %vm3557, %v3559, %v3555
        %v3561 = vmul.f32 1.0, %v3560
        %v3562 = vrcp.pop %v3350
        %v3563 = vmul.f32 %v3350, %v3562
        %v3564 = vsub.f32 1.0, %v3563
        %v3565 = vmul.f32 %v3562, %v3564
        %v3566 = vadd.f32 %v3562, %v3565
        %vm3567 = vweird.f32 %v3350
        %vm3568 = vweird.f32 %v3562
        %vm3569 = vmor %vm3567, %vm3568
        %v3570 = vsel %vm3569, %v3562, %v3566
        %v3571 = vand.u32 2147483647, %v3350
        %vm3572 = vcmp.eq.f32.partialorder %v3571, 8.507059e+37
        %v3573 = vand.u32 %v3350, 2147483648
        %v3574 = vor.u32 1.1754944e-38, %v3573
        %v3575 = vsel %vm3572, %v3574, %v3570
        %v3576 = vmul.f32 1.0, %v3575
        %v3577 = vrcp.pop %v3351
        %v3578 = vmul.f32 %v3351, %v3577
        %v3579 = vsub.f32 1.0, %v3578
        %v3580 = vmul.f32 %v3577, %v3579
        %v3581 = vadd.f32 %v3577, %v3580
        %vm3582 = vweird.f32 %v3351
        %vm3583 = vweird.f32 %v3577
        %vm3584 = vmor %vm3582, %vm3583
        %v3585 = vsel %vm3584, %v3577, %v3581
        %v3586 = vand.u32 2147483647, %v3351
        %vm3587 = vcmp.eq.f32.partialorder %v3586, 8.507059e+37
        %v3588 = vand.u32 %v3351, 2147483648
        %v3589 = vor.u32 1.1754944e-38, %v3588
        %v3590 = vsel %vm3587, %v3589, %v3585
        %v3591 = vmul.f32 1.0, %v3590
        %v3592 = vrcp.pop %v3352
        %v3593 = vmul.f32 %v3352, %v3592
        %v3594 = vsub.f32 1.0, %v3593
        %v3595 = vmul.f32 %v3592, %v3594
        %v3596 = vadd.f32 %v3592, %v3595
        %vm3597 = vweird.f32 %v3352
        %vm3598 = vweird.f32 %v3592
        %vm3599 = vmor %vm3597, %vm3598
        %v3600 = vsel %vm3599, %v3592, %v3596
        %v3601 = vand.u32 2147483647, %v3352
        %vm3602 = vcmp.eq.f32.partialorder %v3601, 8.507059e+37
        %v3603 = vand.u32 %v3352, 2147483648
        %v3604 = vor.u32 1.1754944e-38, %v3603
        %v3605 = vsel %vm3602, %v3604, %v3600
        %v3606 = vmul.f32 1.0, %v3605
        %v3607 = vrcp.pop %v3353
        %v3608 = vmul.f32 %v3353, %v3607
        %v3609 = vsub.f32 1.0, %v3608
        %v3610 = vmul.f32 %v3607, %v3609
        %v3611 = vadd.f32 %v3607, %v3610
        %vm3612 = vweird.f32 %v3353
        %vm3613 = vweird.f32 %v3607
        %vm3614 = vmor %vm3612, %vm3613
        %v3615 = vsel %vm3614, %v3607, %v3611
        %v3616 = vand.u32 2147483647, %v3353
        %vm3617 = vcmp.eq.f32.partialorder %v3616, 8.507059e+37
        %v3618 = vand.u32 %v3353, 2147483648
        %v3619 = vor.u32 1.1754944e-38, %v3618
        %v3620 = vsel %vm3617, %v3619, %v3615
        %v3621 = vmul.f32 1.0, %v3620
        %v3622 = vrcp.pop %v3354
        %v3623 = vmul.f32 %v3354, %v3622
        %v3624 = vsub.f32 1.0, %v3623
        %v3625 = vmul.f32 %v3622, %v3624
        %v3626 = vadd.f32 %v3622, %v3625
        %vm3627 = vweird.f32 %v3354
        %vm3628 = vweird.f32 %v3622
        %vm3629 = vmor %vm3627, %vm3628
        %v3630 = vsel %vm3629, %v3622, %v3626
        %v3631 = vand.u32 2147483647, %v3354
        %vm3632 = vcmp.eq.f32.partialorder %v3631, 8.507059e+37
        %v3633 = vand.u32 %v3354, 2147483648
        %v3634 = vor.u32 1.1754944e-38, %v3633
        %v3635 = vsel %vm3632, %v3634, %v3630
        %v3636 = vmul.f32 1.0, %v3635
        %v3637 = vrcp.pop %v3355
        %v3638 = vmul.f32 %v3355, %v3637
        %v3639 = vsub.f32 1.0, %v3638
        %v3640 = vmul.f32 %v3637, %v3639
        %v3641 = vadd.f32 %v3637, %v3640
        %vm3642 = vweird.f32 %v3355
        %vm3643 = vweird.f32 %v3637
        %vm3644 = vmor %vm3642, %vm3643
        %v3645 = vsel %vm3644, %v3637, %v3641
        %v3646 = vand.u32 2147483647, %v3355
        %vm3647 = vcmp.eq.f32.partialorder %v3646, 8.507059e+37
        %v3648 = vand.u32 %v3355, 2147483648
        %v3649 = vor.u32 1.1754944e-38, %v3648
        %v3650 = vsel %vm3647, %v3649, %v3645
        %v3651 = vmul.f32 1.0, %v3650
        %v3652 = vrcp.pop %v3356
        %v3653 = vmul.f32 %v3356, %v3652
        %v3654 = vsub.f32 1.0, %v3653
        %v3655 = vmul.f32 %v3652, %v3654
        %v3656 = vadd.f32 %v3652, %v3655
        %vm3657 = vweird.f32 %v3356
        %vm3658 = vweird.f32 %v3652
        %vm3659 = vmor %vm3657, %vm3658
        %v3660 = vsel %vm3659, %v3652, %v3656
        %v3661 = vand.u32 2147483647, %v3356
        %vm3662 = vcmp.eq.f32.partialorder %v3661, 8.507059e+37
        %v3663 = vand.u32 %v3356, 2147483648
        %v3664 = vor.u32 1.1754944e-38, %v3663
        %v3665 = vsel %vm3662, %v3664, %v3660
        %v3666 = vmul.f32 1.0, %v3665
        %v3667 = vrcp.pop %v3357
        %v3668 = vmul.f32 %v3357, %v3667
        %v3669 = vsub.f32 1.0, %v3668
        %v3670 = vmul.f32 %v3667, %v3669
        %v3671 = vadd.f32 %v3667, %v3670
        %vm3672 = vweird.f32 %v3357
        %vm3673 = vweird.f32 %v3667
        %vm3674 = vmor %vm3672, %vm3673
        %v3675 = vsel %vm3674, %v3667, %v3671
        %v3676 = vand.u32 2147483647, %v3357
        %vm3677 = vcmp.eq.f32.partialorder %v3676, 8.507059e+37
        %v3678 = vand.u32 %v3357, 2147483648
        %v3679 = vor.u32 1.1754944e-38, %v3678
        %v3680 = vsel %vm3677, %v3679, %v3675
        %v3681 = vmul.f32 1.0, %v3680
        %v3682 = vrcp.pop %v3358
        %v3683 = vmul.f32 %v3358, %v3682
        %v3684 = vsub.f32 1.0, %v3683
        %v3685 = vmul.f32 %v3682, %v3684
        %v3686 = vadd.f32 %v3682, %v3685
        %vm3687 = vweird.f32 %v3358
        %vm3688 = vweird.f32 %v3682
        %vm3689 = vmor %vm3687, %vm3688
        %v3690 = vsel %vm3689, %v3682, %v3686
        %v3691 = vand.u32 2147483647, %v3358
        %vm3692 = vcmp.eq.f32.partialorder %v3691, 8.507059e+37
        %v3693 = vand.u32 %v3358, 2147483648
        %v3694 = vor.u32 1.1754944e-38, %v3693
        %v3695 = vsel %vm3692, %v3694, %v3690
        %v3696 = vmul.f32 1.0, %v3695
        %v3697 = vrcp.pop %v3359
        %v3698 = vmul.f32 %v3359, %v3697
        %v3699 = vsub.f32 1.0, %v3698
        %v3700 = vmul.f32 %v3697, %v3699
        %v3701 = vadd.f32 %v3697, %v3700
        %vm3702 = vweird.f32 %v3359
        %vm3703 = vweird.f32 %v3697
        %vm3704 = vmor %vm3702, %vm3703
        %v3705 = vsel %vm3704, %v3697, %v3701
        %v3706 = vand.u32 2147483647, %v3359
        %vm3707 = vcmp.eq.f32.partialorder %v3706, 8.507059e+37
        %v3708 = vand.u32 %v3359, 2147483648
        %v3709 = vor.u32 1.1754944e-38, %v3708
        %v3710 = vsel %vm3707, %v3709, %v3705
        %v3711 = vmul.f32 1.0, %v3710
        %v3712 = vrcp.pop %v3360
        %v3713 = vmul.f32 %v3360, %v3712
        %v3714 = vsub.f32 1.0, %v3713
        %v3715 = vmul.f32 %v3712, %v3714
        %v3716 = vadd.f32 %v3712, %v3715
        %vm3717 = vweird.f32 %v3360
        %vm3718 = vweird.f32 %v3712
        %vm3719 = vmor %vm3717, %vm3718
        %v3720 = vsel %vm3719, %v3712, %v3716
        %v3721 = vand.u32 2147483647, %v3360
        %vm3722 = vcmp.eq.f32.partialorder %v3721, 8.507059e+37
        %v3723 = vand.u32 %v3360, 2147483648
        %v3724 = vor.u32 1.1754944e-38, %v3723
        %v3725 = vsel %vm3722, %v3724, %v3720
        %v3726 = vmul.f32 1.0, %v3725
        %v3727 = vrcp.pop %v3361
        %v3728 = vmul.f32 %v3361, %v3727
        %v3729 = vsub.f32 1.0, %v3728
        %v3730 = vmul.f32 %v3727, %v3729
        %v3731 = vadd.f32 %v3727, %v3730
        %vm3732 = vweird.f32 %v3361
        %vm3733 = vweird.f32 %v3727
        %vm3734 = vmor %vm3732, %vm3733
        %v3735 = vsel %vm3734, %v3727, %v3731
        %v3736 = vand.u32 2147483647, %v3361
        %vm3737 = vcmp.eq.f32.partialorder %v3736, 8.507059e+37
        %v3738 = vand.u32 %v3361, 2147483648
        %v3739 = vor.u32 1.1754944e-38, %v3738
        %v3740 = vsel %vm3737, %v3739, %v3735
        %v3741 = vmul.f32 1.0, %v3740
        %v3742 = vrcp.pop %v3362
        %v3743 = vmul.f32 %v3362, %v3742
        %v3744 = vsub.f32 1.0, %v3743
        %v3745 = vmul.f32 %v3742, %v3744
        %v3746 = vadd.f32 %v3742, %v3745
        %vm3747 = vweird.f32 %v3362
        %vm3748 = vweird.f32 %v3742
        %vm3749 = vmor %vm3747, %vm3748
        %v3750 = vsel %vm3749, %v3742, %v3746
        %v3751 = vand.u32 2147483647, %v3362
        %vm3752 = vcmp.eq.f32.partialorder %v3751, 8.507059e+37
        %v3753 = vand.u32 %v3362, 2147483648
        %v3754 = vor.u32 1.1754944e-38, %v3753
        %v3755 = vsel %vm3752, %v3754, %v3750
        %v3756 = vmul.f32 1.0, %v3755
        %v3757 = vrcp.pop %v3363
        %v3758 = vmul.f32 %v3363, %v3757
        %v3759 = vsub.f32 1.0, %v3758
        %v3760 = vmul.f32 %v3757, %v3759
        %v3761 = vadd.f32 %v3757, %v3760
        %vm3762 = vweird.f32 %v3363
        %vm3763 = vweird.f32 %v3757
        %vm3764 = vmor %vm3762, %vm3763
        %v3765 = vsel %vm3764, %v3757, %v3761
        %v3766 = vand.u32 2147483647, %v3363
        %vm3767 = vcmp.eq.f32.partialorder %v3766, 8.507059e+37
        %v3768 = vand.u32 %v3363, 2147483648
        %v3769 = vor.u32 1.1754944e-38, %v3768
        %v3770 = vsel %vm3767, %v3769, %v3765
        %v3771 = vmul.f32 1.0, %v3770
        %v3772 = vrcp.pop %v3364
        %v3773 = vmul.f32 %v3364, %v3772
        %v3774 = vsub.f32 1.0, %v3773
        %v3775 = vmul.f32 %v3772, %v3774
        %v3776 = vadd.f32 %v3772, %v3775
        %vm3777 = vweird.f32 %v3364
        %vm3778 = vweird.f32 %v3772
        %vm3779 = vmor %vm3777, %vm3778
        %v3780 = vsel %vm3779, %v3772, %v3776
        %v3781 = vand.u32 2147483647, %v3364
        %vm3782 = vcmp.eq.f32.partialorder %v3781, 8.507059e+37
        %v3783 = vand.u32 %v3364, 2147483648
        %v3784 = vor.u32 1.1754944e-38, %v3783
        %v3785 = vsel %vm3782, %v3784, %v3780
        %v3786 = vmul.f32 1.0, %v3785
        %v3787 = vrcp.pop %v3365
        %v3788 = vmul.f32 %v3365, %v3787
        %v3789 = vsub.f32 1.0, %v3788
        %v3790 = vmul.f32 %v3787, %v3789
        %v3791 = vadd.f32 %v3787, %v3790
        %vm3792 = vweird.f32 %v3365
        %vm3793 = vweird.f32 %v3787
        %vm3794 = vmor %vm3792, %vm3793
        %v3795 = vsel %vm3794, %v3787, %v3791
        %v3796 = vand.u32 2147483647, %v3365
        %vm3797 = vcmp.eq.f32.partialorder %v3796, 8.507059e+37
        %v3798 = vand.u32 %v3365, 2147483648
        %v3799 = vor.u32 1.1754944e-38, %v3798
        %v3800 = vsel %vm3797, %v3799, %v3795
        %v3801 = vmul.f32 1.0, %v3800
        %v3802 = vrcp.pop %v3366
        %v3803 = vmul.f32 %v3366, %v3802
        %v3804 = vsub.f32 1.0, %v3803
        %v3805 = vmul.f32 %v3802, %v3804
        %v3806 = vadd.f32 %v3802, %v3805
        %vm3807 = vweird.f32 %v3366
        %vm3808 = vweird.f32 %v3802
        %vm3809 = vmor %vm3807, %vm3808
        %v3810 = vsel %vm3809, %v3802, %v3806
        %v3811 = vand.u32 2147483647, %v3366
        %vm3812 = vcmp.eq.f32.partialorder %v3811, 8.507059e+37
        %v3813 = vand.u32 %v3366, 2147483648
        %v3814 = vor.u32 1.1754944e-38, %v3813
        %v3815 = vsel %vm3812, %v3814, %v3810
        %v3816 = vmul.f32 1.0, %v3815
        %v3817 = vrcp.pop %v3367
        %v3818 = vmul.f32 %v3367, %v3817
        %v3819 = vsub.f32 1.0, %v3818
        %v3820 = vmul.f32 %v3817, %v3819
        %v3821 = vadd.f32 %v3817, %v3820
        %vm3822 = vweird.f32 %v3367
        %vm3823 = vweird.f32 %v3817
        %vm3824 = vmor %vm3822, %vm3823
        %v3825 = vsel %vm3824, %v3817, %v3821
        %v3826 = vand.u32 2147483647, %v3367
        %vm3827 = vcmp.eq.f32.partialorder %v3826, 8.507059e+37
        %v3828 = vand.u32 %v3367, 2147483648
        %v3829 = vor.u32 1.1754944e-38, %v3828
        %v3830 = vsel %vm3827, %v3829, %v3825
        %v3831 = vmul.f32 1.0, %v3830
        %v3832 = vrcp.pop %v3368
        %v3833 = vmul.f32 %v3368, %v3832
        %v3834 = vsub.f32 1.0, %v3833
        %v3835 = vmul.f32 %v3832, %v3834
        %v3836 = vadd.f32 %v3832, %v3835
        %vm3837 = vweird.f32 %v3368
        %vm3838 = vweird.f32 %v3832
        %vm3839 = vmor %vm3837, %vm3838
        %v3840 = vsel %vm3839, %v3832, %v3836
        %v3841 = vand.u32 2147483647, %v3368
        %vm3842 = vcmp.eq.f32.partialorder %v3841, 8.507059e+37
        %v3843 = vand.u32 %v3368, 2147483648
        %v3844 = vor.u32 1.1754944e-38, %v3843
        %v3845 = vsel %vm3842, %v3844, %v3840
        %v3846 = vmul.f32 1.0, %v3845
        %v3847 = vrcp.pop %v3369
        %v3848 = vmul.f32 %v3369, %v3847
        %v3849 = vsub.f32 1.0, %v3848
        %v3850 = vmul.f32 %v3847, %v3849
        %v3851 = vadd.f32 %v3847, %v3850
        %vm3852 = vweird.f32 %v3369
        %vm3853 = vweird.f32 %v3847
        %vm3854 = vmor %vm3852, %vm3853
        %v3855 = vsel %vm3854, %v3847, %v3851
        %v3856 = vand.u32 2147483647, %v3369
        %vm3857 = vcmp.eq.f32.partialorder %v3856, 8.507059e+37
        %v3858 = vand.u32 %v3369, 2147483648
        %v3859 = vor.u32 1.1754944e-38, %v3858
        %v3860 = vsel %vm3857, %v3859, %v3855
        %v3861 = vmul.f32 1.0, %v3860
        %v3862 = vrcp.pop %v3370
        %v3863 = vmul.f32 %v3370, %v3862
        %v3864 = vsub.f32 1.0, %v3863
        %v3865 = vmul.f32 %v3862, %v3864
        %v3866 = vadd.f32 %v3862, %v3865
        %vm3867 = vweird.f32 %v3370
        %vm3868 = vweird.f32 %v3862
        %vm3869 = vmor %vm3867, %vm3868
        %v3870 = vsel %vm3869, %v3862, %v3866
        %v3871 = vand.u32 2147483647, %v3370
        %vm3872 = vcmp.eq.f32.partialorder %v3871, 8.507059e+37
        %v3873 = vand.u32 %v3370, 2147483648
        %v3874 = vor.u32 1.1754944e-38, %v3873
        %v3875 = vsel %vm3872, %v3874, %v3870
        %v3876 = vmul.f32 1.0, %v3875
        %v3877 = vrcp.pop %v3371
        %v3878 = vmul.f32 %v3371, %v3877
        %v3879 = vsub.f32 1.0, %v3878
        %v3880 = vmul.f32 %v3877, %v3879
        %v3881 = vadd.f32 %v3877, %v3880
        %vm3882 = vweird.f32 %v3371
        %vm3883 = vweird.f32 %v3877
        %vm3884 = vmor %vm3882, %vm3883
        %v3885 = vsel %vm3884, %v3877, %v3881
        %v3886 = vand.u32 2147483647, %v3371
        %vm3887 = vcmp.eq.f32.partialorder %v3886, 8.507059e+37
        %v3888 = vand.u32 %v3371, 2147483648
        %v3889 = vor.u32 1.1754944e-38, %v3888
        %v3890 = vsel %vm3887, %v3889, %v3885
        %v3891 = vmul.f32 1.0, %v3890
        %v3892 = vrcp.pop %v3372
        %v3893 = vmul.f32 %v3372, %v3892
        %v3894 = vsub.f32 1.0, %v3893
        %v3895 = vmul.f32 %v3892, %v3894
        %v3896 = vadd.f32 %v3892, %v3895
        %vm3897 = vweird.f32 %v3372
        %vm3898 = vweird.f32 %v3892
        %vm3899 = vmor %vm3897, %vm3898
        %v3900 = vsel %vm3899, %v3892, %v3896
        %v3901 = vand.u32 2147483647, %v3372
        %vm3902 = vcmp.eq.f32.partialorder %v3901, 8.507059e+37
        %v3903 = vand.u32 %v3372, 2147483648
        %v3904 = vor.u32 1.1754944e-38, %v3903
        %v3905 = vsel %vm3902, %v3904, %v3900
        %v3906 = vmul.f32 1.0, %v3905
        %v3907 = vrcp.pop %v3373
        %v3908 = vmul.f32 %v3373, %v3907
        %v3909 = vsub.f32 1.0, %v3908
        %v3910 = vmul.f32 %v3907, %v3909
        %v3911 = vadd.f32 %v3907, %v3910
        %vm3912 = vweird.f32 %v3373
        %vm3913 = vweird.f32 %v3907
        %vm3914 = vmor %vm3912, %vm3913
        %v3915 = vsel %vm3914, %v3907, %v3911
        %v3916 = vand.u32 2147483647, %v3373
        %vm3917 = vcmp.eq.f32.partialorder %v3916, 8.507059e+37
        %v3918 = vand.u32 %v3373, 2147483648
        %v3919 = vor.u32 1.1754944e-38, %v3918
        %v3920 = vsel %vm3917, %v3919, %v3915
        %v3921 = vmul.f32 1.0, %v3920
        %v3922 = vrcp.pop %v3374
        %v3923 = vmul.f32 %v3374, %v3922
        %v3924 = vsub.f32 1.0, %v3923
        %v3925 = vmul.f32 %v3922, %v3924
        %v3926 = vadd.f32 %v3922, %v3925
        %vm3927 = vweird.f32 %v3374
        %vm3928 = vweird.f32 %v3922
        %vm3929 = vmor %vm3927, %vm3928
        %v3930 = vsel %vm3929, %v3922, %v3926
        %v3931 = vand.u32 2147483647, %v3374
        %vm3932 = vcmp.eq.f32.partialorder %v3931, 8.507059e+37
        %v3933 = vand.u32 %v3374, 2147483648
        %v3934 = vor.u32 1.1754944e-38, %v3933
        %v3935 = vsel %vm3932, %v3934, %v3930
        %v3936 = vmul.f32 1.0, %v3935
        %v3937 = vrcp.pop %v3375
        %v3938 = vmul.f32 %v3375, %v3937
        %v3939 = vsub.f32 1.0, %v3938
        %v3940 = vmul.f32 %v3937, %v3939
        %v3941 = vadd.f32 %v3937, %v3940
        %vm3942 = vweird.f32 %v3375
        %vm3943 = vweird.f32 %v3937
        %vm3944 = vmor %vm3942, %vm3943
        %v3945 = vsel %vm3944, %v3937, %v3941
        %v3946 = vand.u32 2147483647, %v3375
        %vm3947 = vcmp.eq.f32.partialorder %v3946, 8.507059e+37
        %v3948 = vand.u32 %v3375, 2147483648
        %v3949 = vor.u32 1.1754944e-38, %v3948
        %v3950 = vsel %vm3947, %v3949, %v3945
        %v3951 = vmul.f32 1.0, %v3950
        %v3952 = vrcp.pop %v3376
        %v3953 = vmul.f32 %v3376, %v3952
        %v3954 = vsub.f32 1.0, %v3953
        %v3955 = vmul.f32 %v3952, %v3954
        %v3956 = vadd.f32 %v3952, %v3955
        %vm3957 = vweird.f32 %v3376
        %vm3958 = vweird.f32 %v3952
        %vm3959 = vmor %vm3957, %vm3958
        %v3960 = vsel %vm3959, %v3952, %v3956
        %v3961 = vand.u32 2147483647, %v3376
        %vm3962 = vcmp.eq.f32.partialorder %v3961, 8.507059e+37
        %v3963 = vand.u32 %v3376, 2147483648
        %v3964 = vor.u32 1.1754944e-38, %v3963
        %v3965 = vsel %vm3962, %v3964, %v3960
        %v3966 = vmul.f32 1.0, %v3965
        %v3967 = vrcp.pop %v3377
        %v3968 = vmul.f32 %v3377, %v3967
        %v3969 = vsub.f32 1.0, %v3968
        %v3970 = vmul.f32 %v3967, %v3969
        %v3971 = vadd.f32 %v3967, %v3970
        %vm3972 = vweird.f32 %v3377
        %vm3973 = vweird.f32 %v3967
        %vm3974 = vmor %vm3972, %vm3973
        %v3975 = vsel %vm3974, %v3967, %v3971
        %v3976 = vand.u32 2147483647, %v3377
        %vm3977 = vcmp.eq.f32.partialorder %v3976, 8.507059e+37
        %v3978 = vand.u32 %v3377, 2147483648
        %v3979 = vor.u32 1.1754944e-38, %v3978
        %v3980 = vsel %vm3977, %v3979, %v3975
        %v3981 = vmul.f32 1.0, %v3980
        %v3982 = vrcp.pop %v3378
        %v3983 = vmul.f32 %v3378, %v3982
        %v3984 = vsub.f32 1.0, %v3983
        %v3985 = vmul.f32 %v3982, %v3984
        %v3986 = vadd.f32 %v3982, %v3985
        %vm3987 = vweird.f32 %v3378
        %vm3988 = vweird.f32 %v3982
        %vm3989 = vmor %vm3987, %vm3988
        %v3990 = vsel %vm3989, %v3982, %v3986
        %v3991 = vand.u32 2147483647, %v3378
        %vm3992 = vcmp.eq.f32.partialorder %v3991, 8.507059e+37
        %v3993 = vand.u32 %v3378, 2147483648
        %v3994 = vor.u32 1.1754944e-38, %v3993
        %v3995 = vsel %vm3992, %v3994, %v3990
        %v3996 = vmul.f32 1.0, %v3995
        %v3997 = vrcp.pop %v3379
        %v3998 = vmul.f32 %v3379, %v3997
        %v3999 = vsub.f32 1.0, %v3998
        %v4000 = vmul.f32 %v3997, %v3999
        %v4001 = vadd.f32 %v3997, %v4000
        %vm4002 = vweird.f32 %v3379
        %vm4003 = vweird.f32 %v3997
        %vm4004 = vmor %vm4002, %vm4003
        %v4005 = vsel %vm4004, %v3997, %v4001
        %v4006 = vand.u32 2147483647, %v3379
        %vm4007 = vcmp.eq.f32.partialorder %v4006, 8.507059e+37
        %v4008 = vand.u32 %v3379, 2147483648
        %v4009 = vor.u32 1.1754944e-38, %v4008
        %v4010 = vsel %vm4007, %v4009, %v4005
        %v4011 = vmul.f32 1.0, %v4010
        %v4012 = vrcp.pop %v3380
        %v4013 = vmul.f32 %v3380, %v4012
        %v4014 = vsub.f32 1.0, %v4013
        %v4015 = vmul.f32 %v4012, %v4014
        %v4016 = vadd.f32 %v4012, %v4015
        %vm4017 = vweird.f32 %v3380
        %vm4018 = vweird.f32 %v4012
        %vm4019 = vmor %vm4017, %vm4018
        %v4020 = vsel %vm4019, %v4012, %v4016
        %v4021 = vand.u32 2147483647, %v3380
        %vm4022 = vcmp.eq.f32.partialorder %v4021, 8.507059e+37
        %v4023 = vand.u32 %v3380, 2147483648
        %v4024 = vor.u32 1.1754944e-38, %v4023
        %v4025 = vsel %vm4022, %v4024, %v4020
        %v4026 = vmul.f32 1.0, %v4025
        %v4027 = vrcp.pop %v3381
        %v4028 = vmul.f32 %v3381, %v4027
        %v4029 = vsub.f32 1.0, %v4028
        %v4030 = vmul.f32 %v4027, %v4029
        %v4031 = vadd.f32 %v4027, %v4030
        %vm4032 = vweird.f32 %v3381
        %vm4033 = vweird.f32 %v4027
        %vm4034 = vmor %vm4032, %vm4033
        %v4035 = vsel %vm4034, %v4027, %v4031
        %v4036 = vand.u32 2147483647, %v3381
        %vm4037 = vcmp.eq.f32.partialorder %v4036, 8.507059e+37
        %v4038 = vand.u32 %v3381, 2147483648
        %v4039 = vor.u32 1.1754944e-38, %v4038
        %v4040 = vsel %vm4037, %v4039, %v4035
        %v4041 = vmul.f32 1.0, %v4040
        %v4042 = vrcp.pop %v3382
        %v4043 = vmul.f32 %v3382, %v4042
        %v4044 = vsub.f32 1.0, %v4043
        %v4045 = vmul.f32 %v4042, %v4044
        %v4046 = vadd.f32 %v4042, %v4045
        %vm4047 = vweird.f32 %v3382
        %vm4048 = vweird.f32 %v4042
        %vm4049 = vmor %vm4047, %vm4048
        %v4050 = vsel %vm4049, %v4042, %v4046
        %v4051 = vand.u32 2147483647, %v3382
        %vm4052 = vcmp.eq.f32.partialorder %v4051, 8.507059e+37
        %v4053 = vand.u32 %v3382, 2147483648
        %v4054 = vor.u32 1.1754944e-38, %v4053
        %v4055 = vsel %vm4052, %v4054, %v4050
        %v4056 = vmul.f32 1.0, %v4055
        %v4057 = vrcp.pop %v3383
        %v4058 = vmul.f32 %v3383, %v4057
        %v4059 = vsub.f32 1.0, %v4058
        %v4060 = vmul.f32 %v4057, %v4059
        %v4061 = vadd.f32 %v4057, %v4060
        %vm4062 = vweird.f32 %v3383
        %vm4063 = vweird.f32 %v4057
        %vm4064 = vmor %vm4062, %vm4063
        %v4065 = vsel %vm4064, %v4057, %v4061
        %v4066 = vand.u32 2147483647, %v3383
        %vm4067 = vcmp.eq.f32.partialorder %v4066, 8.507059e+37
        %v4068 = vand.u32 %v3383, 2147483648
        %v4069 = vor.u32 1.1754944e-38, %v4068
        %v4070 = vsel %vm4067, %v4069, %v4065
        %v4071 = vmul.f32 1.0, %v4070
        %v4072 = vrcp.pop %v3384
        %v4073 = vmul.f32 %v3384, %v4072
        %v4074 = vsub.f32 1.0, %v4073
        %v4075 = vmul.f32 %v4072, %v4074
        %v4076 = vadd.f32 %v4072, %v4075
        %vm4077 = vweird.f32 %v3384
        %vm4078 = vweird.f32 %v4072
        %vm4079 = vmor %vm4077, %vm4078
        %v4080 = vsel %vm4079, %v4072, %v4076
        %v4081 = vand.u32 2147483647, %v3384
        %vm4082 = vcmp.eq.f32.partialorder %v4081, 8.507059e+37
        %v4083 = vand.u32 %v3384, 2147483648
        %v4084 = vor.u32 1.1754944e-38, %v4083
        %v4085 = vsel %vm4082, %v4084, %v4080
        %v4086 = vmul.f32 1.0, %v4085
        %v4087 = vrcp.pop %v3385
        %v4088 = vmul.f32 %v3385, %v4087
        %v4089 = vsub.f32 1.0, %v4088
        %v4090 = vmul.f32 %v4087, %v4089
        %v4091 = vadd.f32 %v4087, %v4090
        %vm4092 = vweird.f32 %v3385
        %vm4093 = vweird.f32 %v4087
        %vm4094 = vmor %vm4092, %vm4093
        %v4095 = vsel %vm4094, %v4087, %v4091
        %v4096 = vand.u32 2147483647, %v3385
        %vm4097 = vcmp.eq.f32.partialorder %v4096, 8.507059e+37
        %v4098 = vand.u32 %v3385, 2147483648
        %v4099 = vor.u32 1.1754944e-38, %v4098
        %v4100 = vsel %vm4097, %v4099, %v4095
        %v4101 = vmul.f32 1.0, %v4100
        %v4102 = vrcp.pop %v3386
        %v4103 = vmul.f32 %v3386, %v4102
        %v4104 = vsub.f32 1.0, %v4103
        %v4105 = vmul.f32 %v4102, %v4104
        %v4106 = vadd.f32 %v4102, %v4105
        %vm4107 = vweird.f32 %v3386
        %vm4108 = vweird.f32 %v4102
        %vm4109 = vmor %vm4107, %vm4108
        %v4110 = vsel %vm4109, %v4102, %v4106
        %v4111 = vand.u32 2147483647, %v3386
        %vm4112 = vcmp.eq.f32.partialorder %v4111, 8.507059e+37
        %v4113 = vand.u32 %v3386, 2147483648
        %v4114 = vor.u32 1.1754944e-38, %v4113
        %v4115 = vsel %vm4112, %v4114, %v4110
        %v4116 = vmul.f32 1.0, %v4115
        %v4117 = vrcp.pop %v3387
        %v4118 = vmul.f32 %v3387, %v4117
        %v4119 = vsub.f32 1.0, %v4118
        %v4120 = vmul.f32 %v4117, %v4119
        %v4121 = vadd.f32 %v4117, %v4120
        %vm4122 = vweird.f32 %v3387
        %vm4123 = vweird.f32 %v4117
        %vm4124 = vmor %vm4122, %vm4123
        %v4125 = vsel %vm4124, %v4117, %v4121
        %v4126 = vand.u32 2147483647, %v3387
        %vm4127 = vcmp.eq.f32.partialorder %v4126, 8.507059e+37
        %v4128 = vand.u32 %v3387, 2147483648
        %v4129 = vor.u32 1.1754944e-38, %v4128
        %v4130 = vsel %vm4127, %v4129, %v4125
        %v4131 = vmul.f32 1.0, %v4130
        %v4132 = vrcp.pop %v3388
        %v4133 = vmul.f32 %v3388, %v4132
        %v4134 = vsub.f32 1.0, %v4133
        %v4135 = vmul.f32 %v4132, %v4134
        %v4136 = vadd.f32 %v4132, %v4135
        %vm4137 = vweird.f32 %v3388
        %vm4138 = vweird.f32 %v4132
        %vm4139 = vmor %vm4137, %vm4138
        %v4140 = vsel %vm4139, %v4132, %v4136
        %v4141 = vand.u32 2147483647, %v3388
        %vm4142 = vcmp.eq.f32.partialorder %v4141, 8.507059e+37
        %v4143 = vand.u32 %v3388, 2147483648
        %v4144 = vor.u32 1.1754944e-38, %v4143
        %v4145 = vsel %vm4142, %v4144, %v4140
        %v4146 = vmul.f32 1.0, %v4145
        %v4147 = vrcp.pop %v3389
        %v4148 = vmul.f32 %v3389, %v4147
        %v4149 = vsub.f32 1.0, %v4148
        %v4150 = vmul.f32 %v4147, %v4149
        %v4151 = vadd.f32 %v4147, %v4150
        %vm4152 = vweird.f32 %v3389
        %vm4153 = vweird.f32 %v4147
        %vm4154 = vmor %vm4152, %vm4153
        %v4155 = vsel %vm4154, %v4147, %v4151
        %v4156 = vand.u32 2147483647, %v3389
        %vm4157 = vcmp.eq.f32.partialorder %v4156, 8.507059e+37
        %v4158 = vand.u32 %v3389, 2147483648
        %v4159 = vor.u32 1.1754944e-38, %v4158
        %v4160 = vsel %vm4157, %v4159, %v4155
        %v4161 = vmul.f32 1.0, %v4160
        %v4162 = vrcp.pop %v3390
        %v4163 = vmul.f32 %v3390, %v4162
        %v4164 = vsub.f32 1.0, %v4163
        %v4165 = vmul.f32 %v4162, %v4164
        %v4166 = vadd.f32 %v4162, %v4165
        %vm4167 = vweird.f32 %v3390
        %vm4168 = vweird.f32 %v4162
        %vm4169 = vmor %vm4167, %vm4168
        %v4170 = vsel %vm4169, %v4162, %v4166
        %v4171 = vand.u32 2147483647, %v3390
        %vm4172 = vcmp.eq.f32.partialorder %v4171, 8.507059e+37
        %v4173 = vand.u32 %v3390, 2147483648
        %v4174 = vor.u32 1.1754944e-38, %v4173
        %v4175 = vsel %vm4172, %v4174, %v4170
        %v4176 = vmul.f32 1.0, %v4175
        %v4177 = vrcp.pop %v3391
        %v4178 = vmul.f32 %v3391, %v4177
        %v4179 = vsub.f32 1.0, %v4178
        %v4180 = vmul.f32 %v4177, %v4179
        %v4181 = vadd.f32 %v4177, %v4180
        %vm4182 = vweird.f32 %v3391
        %vm4183 = vweird.f32 %v4177
        %vm4184 = vmor %vm4182, %vm4183
        %v4185 = vsel %vm4184, %v4177, %v4181
        %v4186 = vand.u32 2147483647, %v3391
        %vm4187 = vcmp.eq.f32.partialorder %v4186, 8.507059e+37
        %v4188 = vand.u32 %v3391, 2147483648
        %v4189 = vor.u32 1.1754944e-38, %v4188
        %v4190 = vsel %vm4187, %v4189, %v4185
        %v4191 = vmul.f32 1.0, %v4190
        %v4192 = vrcp.pop %v3392
        %v4193 = vmul.f32 %v3392, %v4192
        %v4194 = vsub.f32 1.0, %v4193
        %v4195 = vmul.f32 %v4192, %v4194
        %v4196 = vadd.f32 %v4192, %v4195
        %vm4197 = vweird.f32 %v3392
        %vm4198 = vweird.f32 %v4192
        %vm4199 = vmor %vm4197, %vm4198
        %v4200 = vsel %vm4199, %v4192, %v4196
        %v4201 = vand.u32 2147483647, %v3392
        %vm4202 = vcmp.eq.f32.partialorder %v4201, 8.507059e+37
        %v4203 = vand.u32 %v3392, 2147483648
        %v4204 = vor.u32 1.1754944e-38, %v4203
        %v4205 = vsel %vm4202, %v4204, %v4200
        %v4206 = vmul.f32 1.0, %v4205
        %v4207 = vrcp.pop %v3393
        %v4208 = vmul.f32 %v3393, %v4207
        %v4209 = vsub.f32 1.0, %v4208
        %v4210 = vmul.f32 %v4207, %v4209
        %v4211 = vadd.f32 %v4207, %v4210
        %vm4212 = vweird.f32 %v3393
        %vm4213 = vweird.f32 %v4207
        %vm4214 = vmor %vm4212, %vm4213
        %v4215 = vsel %vm4214, %v4207, %v4211
        %v4216 = vand.u32 2147483647, %v3393
        %vm4217 = vcmp.eq.f32.partialorder %v4216, 8.507059e+37
        %v4218 = vand.u32 %v3393, 2147483648
        %v4219 = vor.u32 1.1754944e-38, %v4218
        %v4220 = vsel %vm4217, %v4219, %v4215
        %v4221 = vmul.f32 1.0, %v4220
        %v4222 = vrcp.pop %v3394
        %v4223 = vmul.f32 %v3394, %v4222
        %v4224 = vsub.f32 1.0, %v4223
        %v4225 = vmul.f32 %v4222, %v4224
        %v4226 = vadd.f32 %v4222, %v4225
        %vm4227 = vweird.f32 %v3394
        %vm4228 = vweird.f32 %v4222
        %vm4229 = vmor %vm4227, %vm4228
        %v4230 = vsel %vm4229, %v4222, %v4226
        %v4231 = vand.u32 2147483647, %v3394
        %vm4232 = vcmp.eq.f32.partialorder %v4231, 8.507059e+37
        %v4233 = vand.u32 %v3394, 2147483648
        %v4234 = vor.u32 1.1754944e-38, %v4233
        %v4235 = vsel %vm4232, %v4234, %v4230
        %v4236 = vmul.f32 1.0, %v4235
        %v4237 = vrcp.pop %v3395
        %v4238 = vmul.f32 %v3395, %v4237
        %v4239 = vsub.f32 1.0, %v4238
        %v4240 = vmul.f32 %v4237, %v4239
        %v4241 = vadd.f32 %v4237, %v4240
        %vm4242 = vweird.f32 %v3395
        %vm4243 = vweird.f32 %v4237
        %vm4244 = vmor %vm4242, %vm4243
        %v4245 = vsel %vm4244, %v4237, %v4241
        %v4246 = vand.u32 2147483647, %v3395
        %vm4247 = vcmp.eq.f32.partialorder %v4246, 8.507059e+37
        %v4248 = vand.u32 %v3395, 2147483648
        %v4249 = vor.u32 1.1754944e-38, %v4248
        %v4250 = vsel %vm4247, %v4249, %v4245
        %v4251 = vmul.f32 1.0, %v4250
        %v4252 = vrcp.pop %v3396
        %v4253 = vmul.f32 %v3396, %v4252
        %v4254 = vsub.f32 1.0, %v4253
        %v4255 = vmul.f32 %v4252, %v4254
        %v4256 = vadd.f32 %v4252, %v4255
        %vm4257 = vweird.f32 %v3396
        %vm4258 = vweird.f32 %v4252
        %vm4259 = vmor %vm4257, %vm4258
        %v4260 = vsel %vm4259, %v4252, %v4256
        %v4261 = vand.u32 2147483647, %v3396
        %vm4262 = vcmp.eq.f32.partialorder %v4261, 8.507059e+37
        %v4263 = vand.u32 %v3396, 2147483648
        %v4264 = vor.u32 1.1754944e-38, %v4263
        %v4265 = vsel %vm4262, %v4264, %v4260
        %v4266 = vmul.f32 1.0, %v4265
        %v4267 = vrcp.pop %v3397
        %v4268 = vmul.f32 %v3397, %v4267
        %v4269 = vsub.f32 1.0, %v4268
        %v4270 = vmul.f32 %v4267, %v4269
        %v4271 = vadd.f32 %v4267, %v4270
        %vm4272 = vweird.f32 %v3397
        %vm4273 = vweird.f32 %v4267
        %vm4274 = vmor %vm4272, %vm4273
        %v4275 = vsel %vm4274, %v4267, %v4271
        %v4276 = vand.u32 2147483647, %v3397
        %vm4277 = vcmp.eq.f32.partialorder %v4276, 8.507059e+37
        %v4278 = vand.u32 %v3397, 2147483648
        %v4279 = vor.u32 1.1754944e-38, %v4278
        %v4280 = vsel %vm4277, %v4279, %v4275
        %v4281 = vmul.f32 1.0, %v4280
        %v4282 = vrcp.pop %v3398
        %v4283 = vmul.f32 %v3398, %v4282
        %v4284 = vsub.f32 1.0, %v4283
        %v4285 = vmul.f32 %v4282, %v4284
        %v4286 = vadd.f32 %v4282, %v4285
        %vm4287 = vweird.f32 %v3398
        %vm4288 = vweird.f32 %v4282
        %vm4289 = vmor %vm4287, %vm4288
        %v4290 = vsel %vm4289, %v4282, %v4286
        %v4291 = vand.u32 2147483647, %v3398
        %vm4292 = vcmp.eq.f32.partialorder %v4291, 8.507059e+37
        %v4293 = vand.u32 %v3398, 2147483648
        %v4294 = vor.u32 1.1754944e-38, %v4293
        %v4295 = vsel %vm4292, %v4294, %v4290
        %v4296 = vmul.f32 1.0, %v4295
        %v4297 = vrcp.pop %v3399
        %v4298 = vmul.f32 %v3399, %v4297
        %v4299 = vsub.f32 1.0, %v4298
        %v4300 = vmul.f32 %v4297, %v4299
        %v4301 = vadd.f32 %v4297, %v4300
        %vm4302 = vweird.f32 %v3399
        %vm4303 = vweird.f32 %v4297
        %vm4304 = vmor %vm4302, %vm4303
        %v4305 = vsel %vm4304, %v4297, %v4301
        %v4306 = vand.u32 2147483647, %v3399
        %vm4307 = vcmp.eq.f32.partialorder %v4306, 8.507059e+37
        %v4308 = vand.u32 %v3399, 2147483648
        %v4309 = vor.u32 1.1754944e-38, %v4308
        %v4310 = vsel %vm4307, %v4309, %v4305
        %v4311 = vmul.f32 1.0, %v4310
        %v4312 = vrcp.pop %v3400
        %v4313 = vmul.f32 %v3400, %v4312
        %v4314 = vsub.f32 1.0, %v4313
        %v4315 = vmul.f32 %v4312, %v4314
        %v4316 = vadd.f32 %v4312, %v4315
        %vm4317 = vweird.f32 %v3400
        %vm4318 = vweird.f32 %v4312
        %vm4319 = vmor %vm4317, %vm4318
        %v4320 = vsel %vm4319, %v4312, %v4316
        %v4321 = vand.u32 2147483647, %v3400
        %vm4322 = vcmp.eq.f32.partialorder %v4321, 8.507059e+37
        %v4323 = vand.u32 %v3400, 2147483648
        %v4324 = vor.u32 1.1754944e-38, %v4323
        %v4325 = vsel %vm4322, %v4324, %v4320
        %v4326 = vmul.f32 1.0, %v4325
        %v4327 = vrcp.pop %v3401
        %v4328 = vmul.f32 %v3401, %v4327
        %v4329 = vsub.f32 1.0, %v4328
        %v4330 = vmul.f32 %v4327, %v4329
        %v4331 = vadd.f32 %v4327, %v4330
        %vm4332 = vweird.f32 %v3401
        %vm4333 = vweird.f32 %v4327
        %vm4334 = vmor %vm4332, %vm4333
        %v4335 = vsel %vm4334, %v4327, %v4331
        %v4336 = vand.u32 2147483647, %v3401
        %vm4337 = vcmp.eq.f32.partialorder %v4336, 8.507059e+37
        %v4338 = vand.u32 %v3401, 2147483648
        %v4339 = vor.u32 1.1754944e-38, %v4338
        %v4340 = vsel %vm4337, %v4339, %v4335
        %v4341 = vmul.f32 1.0, %v4340
        %v4342 = vrcp.pop %v3402
        %v4343 = vmul.f32 %v3402, %v4342
        %v4344 = vsub.f32 1.0, %v4343
        %v4345 = vmul.f32 %v4342, %v4344
        %v4346 = vadd.f32 %v4342, %v4345
        %vm4347 = vweird.f32 %v3402
        %vm4348 = vweird.f32 %v4342
        %vm4349 = vmor %vm4347, %vm4348
        %v4350 = vsel %vm4349, %v4342, %v4346
        %v4351 = vand.u32 2147483647, %v3402
        %vm4352 = vcmp.eq.f32.partialorder %v4351, 8.507059e+37
        %v4353 = vand.u32 %v3402, 2147483648
        %v4354 = vor.u32 1.1754944e-38, %v4353
        %v4355 = vsel %vm4352, %v4354, %v4350
        %v4356 = vmul.f32 1.0, %v4355
        %v4357 = vrcp.pop %v3403
        %v4358 = vmul.f32 %v3403, %v4357
        %v4359 = vsub.f32 1.0, %v4358
        %v4360 = vmul.f32 %v4357, %v4359
        %v4361 = vadd.f32 %v4357, %v4360
        %vm4362 = vweird.f32 %v3403
        %vm4363 = vweird.f32 %v4357
        %vm4364 = vmor %vm4362, %vm4363
        %v4365 = vsel %vm4364, %v4357, %v4361
        %v4366 = vand.u32 2147483647, %v3403
        %vm4367 = vcmp.eq.f32.partialorder %v4366, 8.507059e+37
        %v4368 = vand.u32 %v3403, 2147483648
        %v4369 = vor.u32 1.1754944e-38, %v4368
        %v4370 = vsel %vm4367, %v4369, %v4365
        %v4371 = vmul.f32 1.0, %v4370
        %v4372 = vrcp.pop %v3404
        %v4373 = vmul.f32 %v3404, %v4372
        %v4374 = vsub.f32 1.0, %v4373
        %v4375 = vmul.f32 %v4372, %v4374
        %v4376 = vadd.f32 %v4372, %v4375
        %vm4377 = vweird.f32 %v3404
        %vm4378 = vweird.f32 %v4372
        %vm4379 = vmor %vm4377, %vm4378
        %v4380 = vsel %vm4379, %v4372, %v4376
        %v4381 = vand.u32 2147483647, %v3404
        %vm4382 = vcmp.eq.f32.partialorder %v4381, 8.507059e+37
        %v4383 = vand.u32 %v3404, 2147483648
        %v4384 = vor.u32 1.1754944e-38, %v4383
        %v4385 = vsel %vm4382, %v4384, %v4380
        %v4386 = vmul.f32 1.0, %v4385
        %v4387 = vrcp.pop %v3405
        %v4388 = vmul.f32 %v3405, %v4387
        %v4389 = vsub.f32 1.0, %v4388
        %v4390 = vmul.f32 %v4387, %v4389
        %v4391 = vadd.f32 %v4387, %v4390
        %vm4392 = vweird.f32 %v3405
        %vm4393 = vweird.f32 %v4387
        %vm4394 = vmor %vm4392, %vm4393
        %v4395 = vsel %vm4394, %v4387, %v4391
        %v4396 = vand.u32 2147483647, %v3405
        %vm4397 = vcmp.eq.f32.partialorder %v4396, 8.507059e+37
        %v4398 = vand.u32 %v3405, 2147483648
        %v4399 = vor.u32 1.1754944e-38, %v4398
        %v4400 = vsel %vm4397, %v4399, %v4395
        %v4401 = vmul.f32 1.0, %v4400
        %v4402 = vrcp.pop %v3406
        %v4403 = vmul.f32 %v3406, %v4402
        %v4404 = vsub.f32 1.0, %v4403
        %v4405 = vmul.f32 %v4402, %v4404
        %v4406 = vadd.f32 %v4402, %v4405
        %vm4407 = vweird.f32 %v3406
        %vm4408 = vweird.f32 %v4402
        %vm4409 = vmor %vm4407, %vm4408
        %v4410 = vsel %vm4409, %v4402, %v4406
        %v4411 = vand.u32 2147483647, %v3406
        %vm4412 = vcmp.eq.f32.partialorder %v4411, 8.507059e+37
        %v4413 = vand.u32 %v3406, 2147483648
        %v4414 = vor.u32 1.1754944e-38, %v4413
        %v4415 = vsel %vm4412, %v4414, %v4410
        %v4416 = vmul.f32 1.0, %v4415
        %v4417 = vrcp.pop %v3407
        %v4418 = vmul.f32 %v3407, %v4417
        %v4419 = vsub.f32 1.0, %v4418
        %v4420 = vmul.f32 %v4417, %v4419
        %v4421 = vadd.f32 %v4417, %v4420
        %vm4422 = vweird.f32 %v3407
        %vm4423 = vweird.f32 %v4417
        %vm4424 = vmor %vm4422, %vm4423
        %v4425 = vsel %vm4424, %v4417, %v4421
        %v4426 = vand.u32 2147483647, %v3407
        %vm4427 = vcmp.eq.f32.partialorder %v4426, 8.507059e+37
        %v4428 = vand.u32 %v3407, 2147483648
        %v4429 = vor.u32 1.1754944e-38, %v4428
        %v4430 = vsel %vm4427, %v4429, %v4425
        %v4431 = vmul.f32 1.0, %v4430
        %v4432 = vrcp.pop %v3408
        %v4433 = vmul.f32 %v3408, %v4432
        %v4434 = vsub.f32 1.0, %v4433
        %v4435 = vmul.f32 %v4432, %v4434
        %v4436 = vadd.f32 %v4432, %v4435
        %vm4437 = vweird.f32 %v3408
        %vm4438 = vweird.f32 %v4432
        %vm4439 = vmor %vm4437, %vm4438
        %v4440 = vsel %vm4439, %v4432, %v4436
        %v4441 = vand.u32 2147483647, %v3408
        %vm4442 = vcmp.eq.f32.partialorder %v4441, 8.507059e+37
        %v4443 = vand.u32 %v3408, 2147483648
        %v4444 = vor.u32 1.1754944e-38, %v4443
        %v4445 = vsel %vm4442, %v4444, %v4440
        %v4446 = vmul.f32 1.0, %v4445
        %v4447 = vrcp.pop %v3409
        %v4448 = vmul.f32 %v3409, %v4447
        %v4449 = vsub.f32 1.0, %v4448
        %v4450 = vmul.f32 %v4447, %v4449
        %v4451 = vadd.f32 %v4447, %v4450
        %vm4452 = vweird.f32 %v3409
        %vm4453 = vweird.f32 %v4447
        %vm4454 = vmor %vm4452, %vm4453
        %v4455 = vsel %vm4454, %v4447, %v4451
        %v4456 = vand.u32 2147483647, %v3409
        %vm4457 = vcmp.eq.f32.partialorder %v4456, 8.507059e+37
        %v4458 = vand.u32 %v3409, 2147483648
        %v4459 = vor.u32 1.1754944e-38, %v4458
        %v4460 = vsel %vm4457, %v4459, %v4455
        %v4461 = vmul.f32 1.0, %v4460
        %v4462 = vrcp.pop %v3410
        %v4463 = vmul.f32 %v3410, %v4462
        %v4464 = vsub.f32 1.0, %v4463
        %v4465 = vmul.f32 %v4462, %v4464
        %v4466 = vadd.f32 %v4462, %v4465
        %vm4467 = vweird.f32 %v3410
        %vm4468 = vweird.f32 %v4462
        %vm4469 = vmor %vm4467, %vm4468
        %v4470 = vsel %vm4469, %v4462, %v4466
        %v4471 = vand.u32 2147483647, %v3410
        %vm4472 = vcmp.eq.f32.partialorder %v4471, 8.507059e+37
        %v4473 = vand.u32 %v3410, 2147483648
        %v4474 = vor.u32 1.1754944e-38, %v4473
        %v4475 = vsel %vm4472, %v4474, %v4470
        %v4476 = vmul.f32 1.0, %v4475
        %v4477 = vrcp.pop %v3411
        %v4478 = vmul.f32 %v3411, %v4477
        %v4479 = vsub.f32 1.0, %v4478
        %v4480 = vmul.f32 %v4477, %v4479
        %v4481 = vadd.f32 %v4477, %v4480
        %vm4482 = vweird.f32 %v3411
        %vm4483 = vweird.f32 %v4477
        %vm4484 = vmor %vm4482, %vm4483
        %v4485 = vsel %vm4484, %v4477, %v4481
        %v4486 = vand.u32 2147483647, %v3411
        %vm4487 = vcmp.eq.f32.partialorder %v4486, 8.507059e+37
        %v4488 = vand.u32 %v3411, 2147483648
        %v4489 = vor.u32 1.1754944e-38, %v4488
        %v4490 = vsel %vm4487, %v4489, %v4485
        %v4491 = vmul.f32 1.0, %v4490
        %v4492 = vrcp.pop %v3412
        %v4493 = vmul.f32 %v3412, %v4492
        %v4494 = vsub.f32 1.0, %v4493
        %v4495 = vmul.f32 %v4492, %v4494
        %v4496 = vadd.f32 %v4492, %v4495
        %vm4497 = vweird.f32 %v3412
        %vm4498 = vweird.f32 %v4492
        %vm4499 = vmor %vm4497, %vm4498
        %v4500 = vsel %vm4499, %v4492, %v4496
        %v4501 = vand.u32 2147483647, %v3412
        %vm4502 = vcmp.eq.f32.partialorder %v4501, 8.507059e+37
        %v4503 = vand.u32 %v3412, 2147483648
        %v4504 = vor.u32 1.1754944e-38, %v4503
        %v4505 = vsel %vm4502, %v4504, %v4500
        %v4506 = vmul.f32 1.0, %v4505
        %v4507 = vrcp.pop %v3413
        %v4508 = vmul.f32 %v3413, %v4507
        %v4509 = vsub.f32 1.0, %v4508
        %v4510 = vmul.f32 %v4507, %v4509
        %v4511 = vadd.f32 %v4507, %v4510
        %vm4512 = vweird.f32 %v3413
        %vm4513 = vweird.f32 %v4507
        %vm4514 = vmor %vm4512, %vm4513
        %v4515 = vsel %vm4514, %v4507, %v4511
        %v4516 = vand.u32 2147483647, %v3413
        %vm4517 = vcmp.eq.f32.partialorder %v4516, 8.507059e+37
        %v4518 = vand.u32 %v3413, 2147483648
        %v4519 = vor.u32 1.1754944e-38, %v4518
        %v4520 = vsel %vm4517, %v4519, %v4515
        %v4521 = vmul.f32 1.0, %v4520
        %v4522 = vrcp.pop %v3414
        %v4523 = vmul.f32 %v3414, %v4522
        %v4524 = vsub.f32 1.0, %v4523
        %v4525 = vmul.f32 %v4522, %v4524
        %v4526 = vadd.f32 %v4522, %v4525
        %vm4527 = vweird.f32 %v3414
        %vm4528 = vweird.f32 %v4522
        %vm4529 = vmor %vm4527, %vm4528
        %v4530 = vsel %vm4529, %v4522, %v4526
        %v4531 = vand.u32 2147483647, %v3414
        %vm4532 = vcmp.eq.f32.partialorder %v4531, 8.507059e+37
        %v4533 = vand.u32 %v3414, 2147483648
        %v4534 = vor.u32 1.1754944e-38, %v4533
        %v4535 = vsel %vm4532, %v4534, %v4530
        %v4536 = vmul.f32 1.0, %v4535
        %v4537 = vrcp.pop %v3415
        %v4538 = vmul.f32 %v3415, %v4537
        %v4539 = vsub.f32 1.0, %v4538
        %v4540 = vmul.f32 %v4537, %v4539
        %v4541 = vadd.f32 %v4537, %v4540
        %vm4542 = vweird.f32 %v3415
        %vm4543 = vweird.f32 %v4537
        %vm4544 = vmor %vm4542, %vm4543
        %v4545 = vsel %vm4544, %v4537, %v4541
        %v4546 = vand.u32 2147483647, %v3415
        %vm4547 = vcmp.eq.f32.partialorder %v4546, 8.507059e+37
        %v4548 = vand.u32 %v3415, 2147483648
        %v4549 = vor.u32 1.1754944e-38, %v4548
        %v4550 = vsel %vm4547, %v4549, %v4545
        %v4551 = vmul.f32 1.0, %v4550
        %v4552 = vrcp.pop %v3416
        %v4553 = vmul.f32 %v3416, %v4552
        %v4554 = vsub.f32 1.0, %v4553
        %v4555 = vmul.f32 %v4552, %v4554
        %v4556 = vadd.f32 %v4552, %v4555
        %vm4557 = vweird.f32 %v3416
        %vm4558 = vweird.f32 %v4552
        %vm4559 = vmor %vm4557, %vm4558
        %v4560 = vsel %vm4559, %v4552, %v4556
        %v4561 = vand.u32 2147483647, %v3416
        %vm4562 = vcmp.eq.f32.partialorder %v4561, 8.507059e+37
        %v4563 = vand.u32 %v3416, 2147483648
        %v4564 = vor.u32 1.1754944e-38, %v4563
        %v4565 = vsel %vm4562, %v4564, %v4560
        %v4566 = vmul.f32 1.0, %v4565
        %v4567 = vrcp.pop %v3417
        %v4568 = vmul.f32 %v3417, %v4567
        %v4569 = vsub.f32 1.0, %v4568
        %v4570 = vmul.f32 %v4567, %v4569
        %v4571 = vadd.f32 %v4567, %v4570
        %vm4572 = vweird.f32 %v3417
        %vm4573 = vweird.f32 %v4567
        %vm4574 = vmor %vm4572, %vm4573
        %v4575 = vsel %vm4574, %v4567, %v4571
        %v4576 = vand.u32 2147483647, %v3417
        %vm4577 = vcmp.eq.f32.partialorder %v4576, 8.507059e+37
        %v4578 = vand.u32 %v3417, 2147483648
        %v4579 = vor.u32 1.1754944e-38, %v4578
        %v4580 = vsel %vm4577, %v4579, %v4575
        %v4581 = vmul.f32 1.0, %v4580
        %v4582 = vrcp.pop %v3418
        %v4583 = vmul.f32 %v3418, %v4582
        %v4584 = vsub.f32 1.0, %v4583
        %v4585 = vmul.f32 %v4582, %v4584
        %v4586 = vadd.f32 %v4582, %v4585
        %vm4587 = vweird.f32 %v3418
        %vm4588 = vweird.f32 %v4582
        %vm4589 = vmor %vm4587, %vm4588
        %v4590 = vsel %vm4589, %v4582, %v4586
        %v4591 = vand.u32 2147483647, %v3418
        %vm4592 = vcmp.eq.f32.partialorder %v4591, 8.507059e+37
        %v4593 = vand.u32 %v3418, 2147483648
        %v4594 = vor.u32 1.1754944e-38, %v4593
        %v4595 = vsel %vm4592, %v4594, %v4590
        %v4596 = vmul.f32 1.0, %v4595
        %v4597 = vrcp.pop %v3419
        %v4598 = vmul.f32 %v3419, %v4597
        %v4599 = vsub.f32 1.0, %v4598
        %v4600 = vmul.f32 %v4597, %v4599
        %v4601 = vadd.f32 %v4597, %v4600
        %vm4602 = vweird.f32 %v3419
        %vm4603 = vweird.f32 %v4597
        %vm4604 = vmor %vm4602, %vm4603
        %v4605 = vsel %vm4604, %v4597, %v4601
        %v4606 = vand.u32 2147483647, %v3419
        %vm4607 = vcmp.eq.f32.partialorder %v4606, 8.507059e+37
        %v4608 = vand.u32 %v3419, 2147483648
        %v4609 = vor.u32 1.1754944e-38, %v4608
        %v4610 = vsel %vm4607, %v4609, %v4605
        %v4611 = vmul.f32 1.0, %v4610
        %v4612 = vrcp.pop %v3420
        %v4613 = vmul.f32 %v3420, %v4612
        %v4614 = vsub.f32 1.0, %v4613
        %v4615 = vmul.f32 %v4612, %v4614
        %v4616 = vadd.f32 %v4612, %v4615
        %vm4617 = vweird.f32 %v3420
        %vm4618 = vweird.f32 %v4612
        %vm4619 = vmor %vm4617, %vm4618
        %v4620 = vsel %vm4619, %v4612, %v4616
        %v4621 = vand.u32 2147483647, %v3420
        %vm4622 = vcmp.eq.f32.partialorder %v4621, 8.507059e+37
        %v4623 = vand.u32 %v3420, 2147483648
        %v4624 = vor.u32 1.1754944e-38, %v4623
        %v4625 = vsel %vm4622, %v4624, %v4620
        %v4626 = vmul.f32 1.0, %v4625
        %v4627 = vrcp.pop %v3421
        %v4628 = vmul.f32 %v3421, %v4627
        %v4629 = vsub.f32 1.0, %v4628
        %v4630 = vmul.f32 %v4627, %v4629
        %v4631 = vadd.f32 %v4627, %v4630
        %vm4632 = vweird.f32 %v3421
        %vm4633 = vweird.f32 %v4627
        %vm4634 = vmor %vm4632, %vm4633
        %v4635 = vsel %vm4634, %v4627, %v4631
        %v4636 = vand.u32 2147483647, %v3421
        %vm4637 = vcmp.eq.f32.partialorder %v4636, 8.507059e+37
        %v4638 = vand.u32 %v3421, 2147483648
        %v4639 = vor.u32 1.1754944e-38, %v4638
        %v4640 = vsel %vm4637, %v4639, %v4635
        %v4641 = vmul.f32 1.0, %v4640
        %v4642 = vrcp.pop %v3422
        %v4643 = vmul.f32 %v3422, %v4642
        %v4644 = vsub.f32 1.0, %v4643
        %v4645 = vmul.f32 %v4642, %v4644
        %v4646 = vadd.f32 %v4642, %v4645
        %vm4647 = vweird.f32 %v3422
        %vm4648 = vweird.f32 %v4642
        %vm4649 = vmor %vm4647, %vm4648
        %v4650 = vsel %vm4649, %v4642, %v4646
        %v4651 = vand.u32 2147483647, %v3422
        %vm4652 = vcmp.eq.f32.partialorder %v4651, 8.507059e+37
        %v4653 = vand.u32 %v3422, 2147483648
        %v4654 = vor.u32 1.1754944e-38, %v4653
        %v4655 = vsel %vm4652, %v4654, %v4650
        %v4656 = vmul.f32 1.0, %v4655
        %v4657 = vrcp.pop %v3423
        %v4658 = vmul.f32 %v3423, %v4657
        %v4659 = vsub.f32 1.0, %v4658
        %v4660 = vmul.f32 %v4657, %v4659
        %v4661 = vadd.f32 %v4657, %v4660
        %vm4662 = vweird.f32 %v3423
        %vm4663 = vweird.f32 %v4657
        %vm4664 = vmor %vm4662, %vm4663
        %v4665 = vsel %vm4664, %v4657, %v4661
        %v4666 = vand.u32 2147483647, %v3423
        %vm4667 = vcmp.eq.f32.partialorder %v4666, 8.507059e+37
        %v4668 = vand.u32 %v3423, 2147483648
        %v4669 = vor.u32 1.1754944e-38, %v4668
        %v4670 = vsel %vm4667, %v4669, %v4665
        %v4671 = vmul.f32 1.0, %v4670
        %v4672 = vrcp.pop %v3424
        %v4673 = vmul.f32 %v3424, %v4672
        %v4674 = vsub.f32 1.0, %v4673
        %v4675 = vmul.f32 %v4672, %v4674
        %v4676 = vadd.f32 %v4672, %v4675
        %vm4677 = vweird.f32 %v3424
        %vm4678 = vweird.f32 %v4672
        %vm4679 = vmor %vm4677, %vm4678
        %v4680 = vsel %vm4679, %v4672, %v4676
        %v4681 = vand.u32 2147483647, %v3424
        %vm4682 = vcmp.eq.f32.partialorder %v4681, 8.507059e+37
        %v4683 = vand.u32 %v3424, 2147483648
        %v4684 = vor.u32 1.1754944e-38, %v4683
        %v4685 = vsel %vm4682, %v4684, %v4680
        %v4686 = vmul.f32 1.0, %v4685
        %v4687 = vrcp.pop %v3425
        %v4688 = vmul.f32 %v3425, %v4687
        %v4689 = vsub.f32 1.0, %v4688
        %v4690 = vmul.f32 %v4687, %v4689
        %v4691 = vadd.f32 %v4687, %v4690
        %vm4692 = vweird.f32 %v3425
        %vm4693 = vweird.f32 %v4687
        %vm4694 = vmor %vm4692, %vm4693
        %v4695 = vsel %vm4694, %v4687, %v4691
        %v4696 = vand.u32 2147483647, %v3425
        %vm4697 = vcmp.eq.f32.partialorder %v4696, 8.507059e+37
        %v4698 = vand.u32 %v3425, 2147483648
        %v4699 = vor.u32 1.1754944e-38, %v4698
        %v4700 = vsel %vm4697, %v4699, %v4695
        %v4701 = vmul.f32 1.0, %v4700
        %v4702 = vrcp.pop %v3426
        %v4703 = vmul.f32 %v3426, %v4702
        %v4704 = vsub.f32 1.0, %v4703
        %v4705 = vmul.f32 %v4702, %v4704
        %v4706 = vadd.f32 %v4702, %v4705
        %vm4707 = vweird.f32 %v3426
        %vm4708 = vweird.f32 %v4702
        %vm4709 = vmor %vm4707, %vm4708
        %v4710 = vsel %vm4709, %v4702, %v4706
        %v4711 = vand.u32 2147483647, %v3426
        %vm4712 = vcmp.eq.f32.partialorder %v4711, 8.507059e+37
        %v4713 = vand.u32 %v3426, 2147483648
        %v4714 = vor.u32 1.1754944e-38, %v4713
        %v4715 = vsel %vm4712, %v4714, %v4710
        %v4716 = vmul.f32 1.0, %v4715
        %v4717 = vrcp.pop %v3427
        %v4718 = vmul.f32 %v3427, %v4717
        %v4719 = vsub.f32 1.0, %v4718
        %v4720 = vmul.f32 %v4717, %v4719
        %v4721 = vadd.f32 %v4717, %v4720
        %vm4722 = vweird.f32 %v3427
        %vm4723 = vweird.f32 %v4717
        %vm4724 = vmor %vm4722, %vm4723
        %v4725 = vsel %vm4724, %v4717, %v4721
        %v4726 = vand.u32 2147483647, %v3427
        %vm4727 = vcmp.eq.f32.partialorder %v4726, 8.507059e+37
        %v4728 = vand.u32 %v3427, 2147483648
        %v4729 = vor.u32 1.1754944e-38, %v4728
        %v4730 = vsel %vm4727, %v4729, %v4725
        %v4731 = vmul.f32 1.0, %v4730
        %v4732 = vrcp.pop %v3428
        %v4733 = vmul.f32 %v3428, %v4732
        %v4734 = vsub.f32 1.0, %v4733
        %v4735 = vmul.f32 %v4732, %v4734
        %v4736 = vadd.f32 %v4732, %v4735
        %vm4737 = vweird.f32 %v3428
        %vm4738 = vweird.f32 %v4732
        %vm4739 = vmor %vm4737, %vm4738
        %v4740 = vsel %vm4739, %v4732, %v4736
        %v4741 = vand.u32 2147483647, %v3428
        %vm4742 = vcmp.eq.f32.partialorder %v4741, 8.507059e+37
        %v4743 = vand.u32 %v3428, 2147483648
        %v4744 = vor.u32 1.1754944e-38, %v4743
        %v4745 = vsel %vm4742, %v4744, %v4740
        %v4746 = vmul.f32 1.0, %v4745
        %v4747 = vrcp.pop %v3429
        %v4748 = vmul.f32 %v3429, %v4747
        %v4749 = vsub.f32 1.0, %v4748
        %v4750 = vmul.f32 %v4747, %v4749
        %v4751 = vadd.f32 %v4747, %v4750
        %vm4752 = vweird.f32 %v3429
        %vm4753 = vweird.f32 %v4747
        %vm4754 = vmor %vm4752, %vm4753
        %v4755 = vsel %vm4754, %v4747, %v4751
        %v4756 = vand.u32 2147483647, %v3429
        %vm4757 = vcmp.eq.f32.partialorder %v4756, 8.507059e+37
        %v4758 = vand.u32 %v3429, 2147483648
        %v4759 = vor.u32 1.1754944e-38, %v4758
        %v4760 = vsel %vm4757, %v4759, %v4755
        %v4761 = vmul.f32 1.0, %v4760
        %v4762 = vrcp.pop %v3430
        %v4763 = vmul.f32 %v3430, %v4762
        %v4764 = vsub.f32 1.0, %v4763
        %v4765 = vmul.f32 %v4762, %v4764
        %v4766 = vadd.f32 %v4762, %v4765
        %vm4767 = vweird.f32 %v3430
        %vm4768 = vweird.f32 %v4762
        %vm4769 = vmor %vm4767, %vm4768
        %v4770 = vsel %vm4769, %v4762, %v4766
        %v4771 = vand.u32 2147483647, %v3430
        %vm4772 = vcmp.eq.f32.partialorder %v4771, 8.507059e+37
        %v4773 = vand.u32 %v3430, 2147483648
        %v4774 = vor.u32 1.1754944e-38, %v4773
        %v4775 = vsel %vm4772, %v4774, %v4770
        %v4776 = vmul.f32 1.0, %v4775
        %v4777 = vrcp.pop %v3431
        %v4778 = vmul.f32 %v3431, %v4777
        %v4779 = vsub.f32 1.0, %v4778
        %v4780 = vmul.f32 %v4777, %v4779
        %v4781 = vadd.f32 %v4777, %v4780
        %vm4782 = vweird.f32 %v3431
        %vm4783 = vweird.f32 %v4777
        %vm4784 = vmor %vm4782, %vm4783
        %v4785 = vsel %vm4784, %v4777, %v4781
        %v4786 = vand.u32 2147483647, %v3431
        %vm4787 = vcmp.eq.f32.partialorder %v4786, 8.507059e+37
        %v4788 = vand.u32 %v3431, 2147483648
        %v4789 = vor.u32 1.1754944e-38, %v4788
        %v4790 = vsel %vm4787, %v4789, %v4785
        %v4791 = vmul.f32 1.0, %v4790
        %v4792 = vrcp.pop %v3432
        %v4793 = vmul.f32 %v3432, %v4792
        %v4794 = vsub.f32 1.0, %v4793
        %v4795 = vmul.f32 %v4792, %v4794
        %v4796 = vadd.f32 %v4792, %v4795
        %vm4797 = vweird.f32 %v3432
        %vm4798 = vweird.f32 %v4792
        %vm4799 = vmor %vm4797, %vm4798
        %v4800 = vsel %vm4799, %v4792, %v4796
        %v4801 = vand.u32 2147483647, %v3432
        %vm4802 = vcmp.eq.f32.partialorder %v4801, 8.507059e+37
        %v4803 = vand.u32 %v3432, 2147483648
        %v4804 = vor.u32 1.1754944e-38, %v4803
        %v4805 = vsel %vm4802, %v4804, %v4800
        %v4806 = vmul.f32 1.0, %v4805
        %v4807 = vrcp.pop %v3433
        %v4808 = vmul.f32 %v3433, %v4807
        %v4809 = vsub.f32 1.0, %v4808
        %v4810 = vmul.f32 %v4807, %v4809
        %v4811 = vadd.f32 %v4807, %v4810
        %vm4812 = vweird.f32 %v3433
        %vm4813 = vweird.f32 %v4807
        %vm4814 = vmor %vm4812, %vm4813
        %v4815 = vsel %vm4814, %v4807, %v4811
        %v4816 = vand.u32 2147483647, %v3433
        %vm4817 = vcmp.eq.f32.partialorder %v4816, 8.507059e+37
        %v4818 = vand.u32 %v3433, 2147483648
        %v4819 = vor.u32 1.1754944e-38, %v4818
        %v4820 = vsel %vm4817, %v4819, %v4815
        %v4821 = vmul.f32 1.0, %v4820
        %v4822 = vrcp.pop %v3434
        %v4823 = vmul.f32 %v3434, %v4822
        %v4824 = vsub.f32 1.0, %v4823
        %v4825 = vmul.f32 %v4822, %v4824
        %v4826 = vadd.f32 %v4822, %v4825
        %vm4827 = vweird.f32 %v3434
        %vm4828 = vweird.f32 %v4822
        %vm4829 = vmor %vm4827, %vm4828
        %v4830 = vsel %vm4829, %v4822, %v4826
        %v4831 = vand.u32 2147483647, %v3434
        %vm4832 = vcmp.eq.f32.partialorder %v4831, 8.507059e+37
        %v4833 = vand.u32 %v3434, 2147483648
        %v4834 = vor.u32 1.1754944e-38, %v4833
        %v4835 = vsel %vm4832, %v4834, %v4830
        %v4836 = vmul.f32 1.0, %v4835
        %v4837 = vrcp.pop %v3435
        %v4838 = vmul.f32 %v3435, %v4837
        %v4839 = vsub.f32 1.0, %v4838
        %v4840 = vmul.f32 %v4837, %v4839
        %v4841 = vadd.f32 %v4837, %v4840
        %vm4842 = vweird.f32 %v3435
        %vm4843 = vweird.f32 %v4837
        %vm4844 = vmor %vm4842, %vm4843
        %v4845 = vsel %vm4844, %v4837, %v4841
        %v4846 = vand.u32 2147483647, %v3435
        %vm4847 = vcmp.eq.f32.partialorder %v4846, 8.507059e+37
        %v4848 = vand.u32 %v3435, 2147483648
        %v4849 = vor.u32 1.1754944e-38, %v4848
        %v4850 = vsel %vm4847, %v4849, %v4845
        %v4851 = vmul.f32 1.0, %v4850
        %v4852 = vrcp.pop %v3436
        %v4853 = vmul.f32 %v3436, %v4852
        %v4854 = vsub.f32 1.0, %v4853
        %v4855 = vmul.f32 %v4852, %v4854
        %v4856 = vadd.f32 %v4852, %v4855
        %vm4857 = vweird.f32 %v3436
        %vm4858 = vweird.f32 %v4852
        %vm4859 = vmor %vm4857, %vm4858
        %v4860 = vsel %vm4859, %v4852, %v4856
        %v4861 = vand.u32 2147483647, %v3436
        %vm4862 = vcmp.eq.f32.partialorder %v4861, 8.507059e+37
        %v4863 = vand.u32 %v3436, 2147483648
        %v4864 = vor.u32 1.1754944e-38, %v4863
        %v4865 = vsel %vm4862, %v4864, %v4860
        %v4866 = vmul.f32 1.0, %v4865
        %v4867 = vrcp.pop %v3437
        %v4868 = vmul.f32 %v3437, %v4867
        %v4869 = vsub.f32 1.0, %v4868
        %v4870 = vmul.f32 %v4867, %v4869
        %v4871 = vadd.f32 %v4867, %v4870
        %vm4872 = vweird.f32 %v3437
        %vm4873 = vweird.f32 %v4867
        %vm4874 = vmor %vm4872, %vm4873
        %v4875 = vsel %vm4874, %v4867, %v4871
        %v4876 = vand.u32 2147483647, %v3437
        %vm4877 = vcmp.eq.f32.partialorder %v4876, 8.507059e+37
        %v4878 = vand.u32 %v3437, 2147483648
        %v4879 = vor.u32 1.1754944e-38, %v4878
        %v4880 = vsel %vm4877, %v4879, %v4875
        %v4881 = vmul.f32 1.0, %v4880
        %v4882 = vrcp.pop %v3438
        %v4883 = vmul.f32 %v3438, %v4882
        %v4884 = vsub.f32 1.0, %v4883
        %v4885 = vmul.f32 %v4882, %v4884
        %v4886 = vadd.f32 %v4882, %v4885
        %vm4887 = vweird.f32 %v3438
        %vm4888 = vweird.f32 %v4882
        %vm4889 = vmor %vm4887, %vm4888
        %v4890 = vsel %vm4889, %v4882, %v4886
        %v4891 = vand.u32 2147483647, %v3438
        %vm4892 = vcmp.eq.f32.partialorder %v4891, 8.507059e+37
        %v4893 = vand.u32 %v3438, 2147483648
        %v4894 = vor.u32 1.1754944e-38, %v4893
        %v4895 = vsel %vm4892, %v4894, %v4890
        %v4896 = vmul.f32 1.0, %v4895
        %v4897 = vrcp.pop %v3439
        %v4898 = vmul.f32 %v3439, %v4897
        %v4899 = vsub.f32 1.0, %v4898
        %v4900 = vmul.f32 %v4897, %v4899
        %v4901 = vadd.f32 %v4897, %v4900
        %vm4902 = vweird.f32 %v3439
        %vm4903 = vweird.f32 %v4897
        %vm4904 = vmor %vm4902, %vm4903
        %v4905 = vsel %vm4904, %v4897, %v4901
        %v4906 = vand.u32 2147483647, %v3439
        %vm4907 = vcmp.eq.f32.partialorder %v4906, 8.507059e+37
        %v4908 = vand.u32 %v3439, 2147483648
        %v4909 = vor.u32 1.1754944e-38, %v4908
        %v4910 = vsel %vm4907, %v4909, %v4905
        %v4911 = vmul.f32 1.0, %v4910
        %v4912 = vrcp.pop %v3440
        %v4913 = vmul.f32 %v3440, %v4912
        %v4914 = vsub.f32 1.0, %v4913
        %v4915 = vmul.f32 %v4912, %v4914
        %v4916 = vadd.f32 %v4912, %v4915
        %vm4917 = vweird.f32 %v3440
        %vm4918 = vweird.f32 %v4912
        %vm4919 = vmor %vm4917, %vm4918
        %v4920 = vsel %vm4919, %v4912, %v4916
        %v4921 = vand.u32 2147483647, %v3440
        %vm4922 = vcmp.eq.f32.partialorder %v4921, 8.507059e+37
        %v4923 = vand.u32 %v3440, 2147483648
        %v4924 = vor.u32 1.1754944e-38, %v4923
        %v4925 = vsel %vm4922, %v4924, %v4920
        %v4926 = vmul.f32 1.0, %v4925
        %v4927 = vrcp.pop %v3441
        %v4928 = vmul.f32 %v3441, %v4927
        %v4929 = vsub.f32 1.0, %v4928
        %v4930 = vmul.f32 %v4927, %v4929
        %v4931 = vadd.f32 %v4927, %v4930
        %vm4932 = vweird.f32 %v3441
        %vm4933 = vweird.f32 %v4927
        %vm4934 = vmor %vm4932, %vm4933
        %v4935 = vsel %vm4934, %v4927, %v4931
        %v4936 = vand.u32 2147483647, %v3441
        %vm4937 = vcmp.eq.f32.partialorder %v4936, 8.507059e+37
        %v4938 = vand.u32 %v3441, 2147483648
        %v4939 = vor.u32 1.1754944e-38, %v4938
        %v4940 = vsel %vm4937, %v4939, %v4935
        %v4941 = vmul.f32 1.0, %v4940
        %v4942 = vrcp.pop %v3442
        %v4943 = vmul.f32 %v3442, %v4942
        %v4944 = vsub.f32 1.0, %v4943
        %v4945 = vmul.f32 %v4942, %v4944
        %v4946 = vadd.f32 %v4942, %v4945
        %vm4947 = vweird.f32 %v3442
        %vm4948 = vweird.f32 %v4942
        %vm4949 = vmor %vm4947, %vm4948
        %v4950 = vsel %vm4949, %v4942, %v4946
        %v4951 = vand.u32 2147483647, %v3442
        %vm4952 = vcmp.eq.f32.partialorder %v4951, 8.507059e+37
        %v4953 = vand.u32 %v3442, 2147483648
        %v4954 = vor.u32 1.1754944e-38, %v4953
        %v4955 = vsel %vm4952, %v4954, %v4950
        %v4956 = vmul.f32 1.0, %v4955
        %v4957 = vrcp.pop %v3443
        %v4958 = vmul.f32 %v3443, %v4957
        %v4959 = vsub.f32 1.0, %v4958
        %v4960 = vmul.f32 %v4957, %v4959
        %v4961 = vadd.f32 %v4957, %v4960
        %vm4962 = vweird.f32 %v3443
        %vm4963 = vweird.f32 %v4957
        %vm4964 = vmor %vm4962, %vm4963
        %v4965 = vsel %vm4964, %v4957, %v4961
        %v4966 = vand.u32 2147483647, %v3443
        %vm4967 = vcmp.eq.f32.partialorder %v4966, 8.507059e+37
        %v4968 = vand.u32 %v3443, 2147483648
        %v4969 = vor.u32 1.1754944e-38, %v4968
        %v4970 = vsel %vm4967, %v4969, %v4965
        %v4971 = vmul.f32 1.0, %v4970
        %v4972 = vrcp.pop %v3444
        %v4973 = vmul.f32 %v3444, %v4972
        %v4974 = vsub.f32 1.0, %v4973
        %v4975 = vmul.f32 %v4972, %v4974
        %v4976 = vadd.f32 %v4972, %v4975
        %vm4977 = vweird.f32 %v3444
        %vm4978 = vweird.f32 %v4972
        %vm4979 = vmor %vm4977, %vm4978
        %v4980 = vsel %vm4979, %v4972, %v4976
        %v4981 = vand.u32 2147483647, %v3444
        %vm4982 = vcmp.eq.f32.partialorder %v4981, 8.507059e+37
        %v4983 = vand.u32 %v3444, 2147483648
        %v4984 = vor.u32 1.1754944e-38, %v4983
        %v4985 = vsel %vm4982, %v4984, %v4980
        %v4986 = vmul.f32 1.0, %v4985
        %v4987 = vrcp.pop %v3445
        %v4988 = vmul.f32 %v3445, %v4987
        %v4989 = vsub.f32 1.0, %v4988
        %v4990 = vmul.f32 %v4987, %v4989
        %v4991 = vadd.f32 %v4987, %v4990
        %vm4992 = vweird.f32 %v3445
        %vm4993 = vweird.f32 %v4987
        %vm4994 = vmor %vm4992, %vm4993
        %v4995 = vsel %vm4994, %v4987, %v4991
        %v4996 = vand.u32 2147483647, %v3445
        %vm4997 = vcmp.eq.f32.partialorder %v4996, 8.507059e+37
        %v4998 = vand.u32 %v3445, 2147483648
        %v4999 = vor.u32 1.1754944e-38, %v4998
        %v5000 = vsel %vm4997, %v4999, %v4995
        %v5001 = vmul.f32 1.0, %v5000
        %v5002 = vrcp.pop %v3446
        %v5003 = vmul.f32 %v3446, %v5002
        %v5004 = vsub.f32 1.0, %v5003
        %v5005 = vmul.f32 %v5002, %v5004
        %v5006 = vadd.f32 %v5002, %v5005
        %vm5007 = vweird.f32 %v3446
        %vm5008 = vweird.f32 %v5002
        %vm5009 = vmor %vm5007, %vm5008
        %v5010 = vsel %vm5009, %v5002, %v5006
        %v5011 = vand.u32 2147483647, %v3446
        %vm5012 = vcmp.eq.f32.partialorder %v5011, 8.507059e+37
        %v5013 = vand.u32 %v3446, 2147483648
        %v5014 = vor.u32 1.1754944e-38, %v5013
        %v5015 = vsel %vm5012, %v5014, %v5010
        %v5016 = vmul.f32 1.0, %v5015
        %v5017 = vrcp.pop %v3447
        %v5018 = vmul.f32 %v3447, %v5017
        %v5019 = vsub.f32 1.0, %v5018
        %v5020 = vmul.f32 %v5017, %v5019
        %v5021 = vadd.f32 %v5017, %v5020
        %vm5022 = vweird.f32 %v3447
        %vm5023 = vweird.f32 %v5017
        %vm5024 = vmor %vm5022, %vm5023
        %v5025 = vsel %vm5024, %v5017, %v5021
        %v5026 = vand.u32 2147483647, %v3447
        %vm5027 = vcmp.eq.f32.partialorder %v5026, 8.507059e+37
        %v5028 = vand.u32 %v3447, 2147483648
        %v5029 = vor.u32 1.1754944e-38, %v5028
        %v5030 = vsel %vm5027, %v5029, %v5025
        %v5031 = vmul.f32 1.0, %v5030
        %v5032 = vrcp.pop %v3448
        %v5033 = vmul.f32 %v3448, %v5032
        %v5034 = vsub.f32 1.0, %v5033
        %v5035 = vmul.f32 %v5032, %v5034
        %v5036 = vadd.f32 %v5032, %v5035
        %vm5037 = vweird.f32 %v3448
        %vm5038 = vweird.f32 %v5032
        %vm5039 = vmor %vm5037, %vm5038
        %v5040 = vsel %vm5039, %v5032, %v5036
        %v5041 = vand.u32 2147483647, %v3448
        %vm5042 = vcmp.eq.f32.partialorder %v5041, 8.507059e+37
        %v5043 = vand.u32 %v3448, 2147483648
        %v5044 = vor.u32 1.1754944e-38, %v5043
        %v5045 = vsel %vm5042, %v5044, %v5040
        %v5046 = vmul.f32 1.0, %v5045
        %v5047 = vrcp.pop %v3449
        %v5048 = vmul.f32 %v3449, %v5047
        %v5049 = vsub.f32 1.0, %v5048
        %v5050 = vmul.f32 %v5047, %v5049
        %v5051 = vadd.f32 %v5047, %v5050
        %vm5052 = vweird.f32 %v3449
        %vm5053 = vweird.f32 %v5047
        %vm5054 = vmor %vm5052, %vm5053
        %v5055 = vsel %vm5054, %v5047, %v5051
        %v5056 = vand.u32 2147483647, %v3449
        %vm5057 = vcmp.eq.f32.partialorder %v5056, 8.507059e+37
        %v5058 = vand.u32 %v3449, 2147483648
        %v5059 = vor.u32 1.1754944e-38, %v5058
        %v5060 = vsel %vm5057, %v5059, %v5055
        %v5061 = vmul.f32 1.0, %v5060
        %v5062 = vrcp.pop %v3450
        %v5063 = vmul.f32 %v3450, %v5062
        %v5064 = vsub.f32 1.0, %v5063
        %v5065 = vmul.f32 %v5062, %v5064
        %v5066 = vadd.f32 %v5062, %v5065
        %vm5067 = vweird.f32 %v3450
        %vm5068 = vweird.f32 %v5062
        %vm5069 = vmor %vm5067, %vm5068
        %v5070 = vsel %vm5069, %v5062, %v5066
        %v5071 = vand.u32 2147483647, %v3450
        %vm5072 = vcmp.eq.f32.partialorder %v5071, 8.507059e+37
        %v5073 = vand.u32 %v3450, 2147483648
        %v5074 = vor.u32 1.1754944e-38, %v5073
        %v5075 = vsel %vm5072, %v5074, %v5070
        %v5076 = vmul.f32 1.0, %v5075
        %v5077 = vrcp.pop %v3451
        %v5078 = vmul.f32 %v3451, %v5077
        %v5079 = vsub.f32 1.0, %v5078
        %v5080 = vmul.f32 %v5077, %v5079
        %v5081 = vadd.f32 %v5077, %v5080
        %vm5082 = vweird.f32 %v3451
        %vm5083 = vweird.f32 %v5077
        %vm5084 = vmor %vm5082, %vm5083
        %v5085 = vsel %vm5084, %v5077, %v5081
        %v5086 = vand.u32 2147483647, %v3451
        %vm5087 = vcmp.eq.f32.partialorder %v5086, 8.507059e+37
        %v5088 = vand.u32 %v3451, 2147483648
        %v5089 = vor.u32 1.1754944e-38, %v5088
        %v5090 = vsel %vm5087, %v5089, %v5085
        %v5091 = vmul.f32 1.0, %v5090
        %v5092 = vrcp.pop %v3452
        %v5093 = vmul.f32 %v3452, %v5092
        %v5094 = vsub.f32 1.0, %v5093
        %v5095 = vmul.f32 %v5092, %v5094
        %v5096 = vadd.f32 %v5092, %v5095
        %vm5097 = vweird.f32 %v3452
        %vm5098 = vweird.f32 %v5092
        %vm5099 = vmor %vm5097, %vm5098
        %v5100 = vsel %vm5099, %v5092, %v5096
        %v5101 = vand.u32 2147483647, %v3452
        %vm5102 = vcmp.eq.f32.partialorder %v5101, 8.507059e+37
        %v5103 = vand.u32 %v3452, 2147483648
        %v5104 = vor.u32 1.1754944e-38, %v5103
        %v5105 = vsel %vm5102, %v5104, %v5100
        %v5106 = vmul.f32 1.0, %v5105
        %v5107 = vrcp.pop %v3453
        %v5108 = vmul.f32 %v3453, %v5107
        %v5109 = vsub.f32 1.0, %v5108
        %v5110 = vmul.f32 %v5107, %v5109
        %v5111 = vadd.f32 %v5107, %v5110
        %vm5112 = vweird.f32 %v3453
        %vm5113 = vweird.f32 %v5107
        %vm5114 = vmor %vm5112, %vm5113
        %v5115 = vsel %vm5114, %v5107, %v5111
        %v5116 = vand.u32 2147483647, %v3453
        %vm5117 = vcmp.eq.f32.partialorder %v5116, 8.507059e+37
        %v5118 = vand.u32 %v3453, 2147483648
        %v5119 = vor.u32 1.1754944e-38, %v5118
        %v5120 = vsel %vm5117, %v5119, %v5115
        %v5121 = vmul.f32 1.0, %v5120
        %v5122 = vrcp.pop %v3454
        %v5123 = vmul.f32 %v3454, %v5122
        %v5124 = vsub.f32 1.0, %v5123
        %v5125 = vmul.f32 %v5122, %v5124
        %v5126 = vadd.f32 %v5122, %v5125
        %vm5127 = vweird.f32 %v3454
        %vm5128 = vweird.f32 %v5122
        %vm5129 = vmor %vm5127, %vm5128
        %v5130 = vsel %vm5129, %v5122, %v5126
        %v5131 = vand.u32 2147483647, %v3454
        %vm5132 = vcmp.eq.f32.partialorder %v5131, 8.507059e+37
        %v5133 = vand.u32 %v3454, 2147483648
        %v5134 = vor.u32 1.1754944e-38, %v5133
        %v5135 = vsel %vm5132, %v5134, %v5130
        %v5136 = vmul.f32 1.0, %v5135
        %v5137 = vrcp.pop %v3455
        %v5138 = vmul.f32 %v3455, %v5137
        %v5139 = vsub.f32 1.0, %v5138
        %v5140 = vmul.f32 %v5137, %v5139
        %v5141 = vadd.f32 %v5137, %v5140
        %vm5142 = vweird.f32 %v3455
        %vm5143 = vweird.f32 %v5137
        %vm5144 = vmor %vm5142, %vm5143
        %v5145 = vsel %vm5144, %v5137, %v5141
        %v5146 = vand.u32 2147483647, %v3455
        %vm5147 = vcmp.eq.f32.partialorder %v5146, 8.507059e+37
        %v5148 = vand.u32 %v3455, 2147483648
        %v5149 = vor.u32 1.1754944e-38, %v5148
        %v5150 = vsel %vm5147, %v5149, %v5145
        %v5151 = vmul.f32 1.0, %v5150
        %v5152 = vrcp.pop %v3456
        %v5153 = vmul.f32 %v3456, %v5152
        %v5154 = vsub.f32 1.0, %v5153
        %v5155 = vmul.f32 %v5152, %v5154
        %v5156 = vadd.f32 %v5152, %v5155
        %vm5157 = vweird.f32 %v3456
        %vm5158 = vweird.f32 %v5152
        %vm5159 = vmor %vm5157, %vm5158
        %v5160 = vsel %vm5159, %v5152, %v5156
        %v5161 = vand.u32 2147483647, %v3456
        %vm5162 = vcmp.eq.f32.partialorder %v5161, 8.507059e+37
        %v5163 = vand.u32 %v3456, 2147483648
        %v5164 = vor.u32 1.1754944e-38, %v5163
        %v5165 = vsel %vm5162, %v5164, %v5160
        %v5166 = vmul.f32 1.0, %v5165
        %v5167 = vrcp.pop %v3457
        %v5168 = vmul.f32 %v3457, %v5167
        %v5169 = vsub.f32 1.0, %v5168
        %v5170 = vmul.f32 %v5167, %v5169
        %v5171 = vadd.f32 %v5167, %v5170
        %vm5172 = vweird.f32 %v3457
        %vm5173 = vweird.f32 %v5167
        %vm5174 = vmor %vm5172, %vm5173
        %v5175 = vsel %vm5174, %v5167, %v5171
        %v5176 = vand.u32 2147483647, %v3457
        %vm5177 = vcmp.eq.f32.partialorder %v5176, 8.507059e+37
        %v5178 = vand.u32 %v3457, 2147483648
        %v5179 = vor.u32 1.1754944e-38, %v5178
        %v5180 = vsel %vm5177, %v5179, %v5175
        %v5181 = vmul.f32 1.0, %v5180
        %v5182 = vrcp.pop %v3458
        %v5183 = vmul.f32 %v3458, %v5182
        %v5184 = vsub.f32 1.0, %v5183
        %v5185 = vmul.f32 %v5182, %v5184
        %v5186 = vadd.f32 %v5182, %v5185
        %vm5187 = vweird.f32 %v3458
        %vm5188 = vweird.f32 %v5182
        %vm5189 = vmor %vm5187, %vm5188
        %v5190 = vsel %vm5189, %v5182, %v5186
        %v5191 = vand.u32 2147483647, %v3458
        %vm5192 = vcmp.eq.f32.partialorder %v5191, 8.507059e+37
        %v5193 = vand.u32 %v3458, 2147483648
        %v5194 = vor.u32 1.1754944e-38, %v5193
        %v5195 = vsel %vm5192, %v5194, %v5190
        %v5196 = vmul.f32 1.0, %v5195
        %v5197 = vrcp.pop %v3459
        %v5198 = vmul.f32 %v3459, %v5197
        %v5199 = vsub.f32 1.0, %v5198
        %v5200 = vmul.f32 %v5197, %v5199
        %v5201 = vadd.f32 %v5197, %v5200
        %vm5202 = vweird.f32 %v3459
        %vm5203 = vweird.f32 %v5197
        %vm5204 = vmor %vm5202, %vm5203
        %v5205 = vsel %vm5204, %v5197, %v5201
        %v5206 = vand.u32 2147483647, %v3459
        %vm5207 = vcmp.eq.f32.partialorder %v5206, 8.507059e+37
        %v5208 = vand.u32 %v3459, 2147483648
        %v5209 = vor.u32 1.1754944e-38, %v5208
        %v5210 = vsel %vm5207, %v5209, %v5205
        %v5211 = vmul.f32 1.0, %v5210
        %v5212 = vrcp.pop %v3460
        %v5213 = vmul.f32 %v3460, %v5212
        %v5214 = vsub.f32 1.0, %v5213
        %v5215 = vmul.f32 %v5212, %v5214
        %v5216 = vadd.f32 %v5212, %v5215
        %vm5217 = vweird.f32 %v3460
        %vm5218 = vweird.f32 %v5212
        %vm5219 = vmor %vm5217, %vm5218
        %v5220 = vsel %vm5219, %v5212, %v5216
        %v5221 = vand.u32 2147483647, %v3460
        %vm5222 = vcmp.eq.f32.partialorder %v5221, 8.507059e+37
        %v5223 = vand.u32 %v3460, 2147483648
        %v5224 = vor.u32 1.1754944e-38, %v5223
        %v5225 = vsel %vm5222, %v5224, %v5220
        %v5226 = vmul.f32 1.0, %v5225
        %v5227 = vrcp.pop %v3461
        %v5228 = vmul.f32 %v3461, %v5227
        %v5229 = vsub.f32 1.0, %v5228
        %v5230 = vmul.f32 %v5227, %v5229
        %v5231 = vadd.f32 %v5227, %v5230
        %vm5232 = vweird.f32 %v3461
        %vm5233 = vweird.f32 %v5227
        %vm5234 = vmor %vm5232, %vm5233
        %v5235 = vsel %vm5234, %v5227, %v5231
        %v5236 = vand.u32 2147483647, %v3461
        %vm5237 = vcmp.eq.f32.partialorder %v5236, 8.507059e+37
        %v5238 = vand.u32 %v3461, 2147483648
        %v5239 = vor.u32 1.1754944e-38, %v5238
        %v5240 = vsel %vm5237, %v5239, %v5235
        %v5241 = vmul.f32 1.0, %v5240
        %v5242 = vrcp.pop %v3462
        %v5243 = vmul.f32 %v3462, %v5242
        %v5244 = vsub.f32 1.0, %v5243
        %v5245 = vmul.f32 %v5242, %v5244
        %v5246 = vadd.f32 %v5242, %v5245
        %vm5247 = vweird.f32 %v3462
        %vm5248 = vweird.f32 %v5242
        %vm5249 = vmor %vm5247, %vm5248
        %v5250 = vsel %vm5249, %v5242, %v5246
        %v5251 = vand.u32 2147483647, %v3462
        %vm5252 = vcmp.eq.f32.partialorder %v5251, 8.507059e+37
        %v5253 = vand.u32 %v3462, 2147483648
        %v5254 = vor.u32 1.1754944e-38, %v5253
        %v5255 = vsel %vm5252, %v5254, %v5250
        %v5256 = vmul.f32 1.0, %v5255
        %v5257 = vrcp.pop %v3463
        %v5258 = vmul.f32 %v3463, %v5257
        %v5259 = vsub.f32 1.0, %v5258
        %v5260 = vmul.f32 %v5257, %v5259
        %v5261 = vadd.f32 %v5257, %v5260
        %vm5262 = vweird.f32 %v3463
        %vm5263 = vweird.f32 %v5257
        %vm5264 = vmor %vm5262, %vm5263
        %v5265 = vsel %vm5264, %v5257, %v5261
        %v5266 = vand.u32 2147483647, %v3463
        %vm5267 = vcmp.eq.f32.partialorder %v5266, 8.507059e+37
        %v5268 = vand.u32 %v3463, 2147483648
        %v5269 = vor.u32 1.1754944e-38, %v5268
        %v5270 = vsel %vm5267, %v5269, %v5265
        %v5271 = vmul.f32 1.0, %v5270
        %v5272 = vrcp.pop %v3464
        %v5273 = vmul.f32 %v3464, %v5272
        %v5274 = vsub.f32 1.0, %v5273
        %v5275 = vmul.f32 %v5272, %v5274
        %v5276 = vadd.f32 %v5272, %v5275
        %vm5277 = vweird.f32 %v3464
        %vm5278 = vweird.f32 %v5272
        %vm5279 = vmor %vm5277, %vm5278
        %v5280 = vsel %vm5279, %v5272, %v5276
        %v5281 = vand.u32 2147483647, %v3464
        %vm5282 = vcmp.eq.f32.partialorder %v5281, 8.507059e+37
        %v5283 = vand.u32 %v3464, 2147483648
        %v5284 = vor.u32 1.1754944e-38, %v5283
        %v5285 = vsel %vm5282, %v5284, %v5280
        %v5286 = vmul.f32 1.0, %v5285
        %v5287 = vrcp.pop %v3465
        %v5288 = vmul.f32 %v3465, %v5287
        %v5289 = vsub.f32 1.0, %v5288
        %v5290 = vmul.f32 %v5287, %v5289
        %v5291 = vadd.f32 %v5287, %v5290
        %vm5292 = vweird.f32 %v3465
        %vm5293 = vweird.f32 %v5287
        %vm5294 = vmor %vm5292, %vm5293
        %v5295 = vsel %vm5294, %v5287, %v5291
        %v5296 = vand.u32 2147483647, %v3465
        %vm5297 = vcmp.eq.f32.partialorder %v5296, 8.507059e+37
        %v5298 = vand.u32 %v3465, 2147483648
        %v5299 = vor.u32 1.1754944e-38, %v5298
        %v5300 = vsel %vm5297, %v5299, %v5295
        %v5301 = vmul.f32 1.0, %v5300
        %v5302 = vrcp.pop %v3466
        %v5303 = vmul.f32 %v3466, %v5302
        %v5304 = vsub.f32 1.0, %v5303
        %v5305 = vmul.f32 %v5302, %v5304
        %v5306 = vadd.f32 %v5302, %v5305
        %vm5307 = vweird.f32 %v3466
        %vm5308 = vweird.f32 %v5302
        %vm5309 = vmor %vm5307, %vm5308
        %v5310 = vsel %vm5309, %v5302, %v5306
        %v5311 = vand.u32 2147483647, %v3466
        %vm5312 = vcmp.eq.f32.partialorder %v5311, 8.507059e+37
        %v5313 = vand.u32 %v3466, 2147483648
        %v5314 = vor.u32 1.1754944e-38, %v5313
        %v5315 = vsel %vm5312, %v5314, %v5310
        %v5316 = vmul.f32 1.0, %v5315
        %v5317 = vrcp.pop %v3467
        %v5318 = vmul.f32 %v3467, %v5317
        %v5319 = vsub.f32 1.0, %v5318
        %v5320 = vmul.f32 %v5317, %v5319
        %v5321 = vadd.f32 %v5317, %v5320
        %vm5322 = vweird.f32 %v3467
        %vm5323 = vweird.f32 %v5317
        %vm5324 = vmor %vm5322, %vm5323
        %v5325 = vsel %vm5324, %v5317, %v5321
        %v5326 = vand.u32 2147483647, %v3467
        %vm5327 = vcmp.eq.f32.partialorder %v5326, 8.507059e+37
        %v5328 = vand.u32 %v3467, 2147483648
        %v5329 = vor.u32 1.1754944e-38, %v5328
        %v5330 = vsel %vm5327, %v5329, %v5325
        %v5331 = vmul.f32 1.0, %v5330
        %v5332 = vrcp.pop %v3468
        %v5333 = vmul.f32 %v3468, %v5332
        %v5334 = vsub.f32 1.0, %v5333
        %v5335 = vmul.f32 %v5332, %v5334
        %v5336 = vadd.f32 %v5332, %v5335
        %vm5337 = vweird.f32 %v3468
        %vm5338 = vweird.f32 %v5332
        %vm5339 = vmor %vm5337, %vm5338
        %v5340 = vsel %vm5339, %v5332, %v5336
        %v5341 = vand.u32 2147483647, %v3468
        %vm5342 = vcmp.eq.f32.partialorder %v5341, 8.507059e+37
        %v5343 = vand.u32 %v3468, 2147483648
        %v5344 = vor.u32 1.1754944e-38, %v5343
        %v5345 = vsel %vm5342, %v5344, %v5340
        %v5346 = vmul.f32 1.0, %v5345
        %v5347 = vrcp.pop %v3469
        %v5348 = vmul.f32 %v3469, %v5347
        %v5349 = vsub.f32 1.0, %v5348
        %v5350 = vmul.f32 %v5347, %v5349
        %v5351 = vadd.f32 %v5347, %v5350
        %vm5352 = vweird.f32 %v3469
        %vm5353 = vweird.f32 %v5347
        %vm5354 = vmor %vm5352, %vm5353
        %v5355 = vsel %vm5354, %v5347, %v5351
        %v5356 = vand.u32 2147483647, %v3469
        %vm5357 = vcmp.eq.f32.partialorder %v5356, 8.507059e+37
        %v5358 = vand.u32 %v3469, 2147483648
        %v5359 = vor.u32 1.1754944e-38, %v5358
        %v5360 = vsel %vm5357, %v5359, %v5355
        %v5361 = vmul.f32 1.0, %v5360
        %v5362 = vrcp.pop %v3470
        %v5363 = vmul.f32 %v3470, %v5362
        %v5364 = vsub.f32 1.0, %v5363
        %v5365 = vmul.f32 %v5362, %v5364
        %v5366 = vadd.f32 %v5362, %v5365
        %vm5367 = vweird.f32 %v3470
        %vm5368 = vweird.f32 %v5362
        %vm5369 = vmor %vm5367, %vm5368
        %v5370 = vsel %vm5369, %v5362, %v5366
        %v5371 = vand.u32 2147483647, %v3470
        %vm5372 = vcmp.eq.f32.partialorder %v5371, 8.507059e+37
        %v5373 = vand.u32 %v3470, 2147483648
        %v5374 = vor.u32 1.1754944e-38, %v5373
        %v5375 = vsel %vm5372, %v5374, %v5370
        %v5376 = vmul.f32 1.0, %v5375
        %v5377 = vrcp.pop %v3471
        %v5378 = vmul.f32 %v3471, %v5377
        %v5379 = vsub.f32 1.0, %v5378
        %v5380 = vmul.f32 %v5377, %v5379
        %v5381 = vadd.f32 %v5377, %v5380
        %vm5382 = vweird.f32 %v3471
        %vm5383 = vweird.f32 %v5377
        %vm5384 = vmor %vm5382, %vm5383
        %v5385 = vsel %vm5384, %v5377, %v5381
        %v5386 = vand.u32 2147483647, %v3471
        %vm5387 = vcmp.eq.f32.partialorder %v5386, 8.507059e+37
        %v5388 = vand.u32 %v3471, 2147483648
        %v5389 = vor.u32 1.1754944e-38, %v5388
        %v5390 = vsel %vm5387, %v5389, %v5385
        %v5391 = vmul.f32 1.0, %v5390
        %v5392 = vpack.c.bf16 %v3501, %v3486
        %v5393 = vpack.c.bf16 %v3531, %v3516
        %v5394 = vpack.c.bf16 %v3561, %v3546
        %v5395 = vpack.c.bf16 %v3591, %v3576
        %v5396 = vpack.c.bf16 %v3621, %v3606
        %v5397 = vpack.c.bf16 %v3651, %v3636
        %v5398 = vpack.c.bf16 %v3681, %v3666
        %v5399 = vpack.c.bf16 %v3711, %v3696
        %v5400 = vpack.c.bf16 %v3741, %v3726
        %v5401 = vpack.c.bf16 %v3771, %v3756
        %v5402 = vpack.c.bf16 %v3801, %v3786
        %v5403 = vpack.c.bf16 %v3831, %v3816
        %v5404 = vpack.c.bf16 %v3861, %v3846
        %v5405 = vpack.c.bf16 %v3891, %v3876
        %v5406 = vpack.c.bf16 %v3921, %v3906
        %v5407 = vpack.c.bf16 %v3951, %v3936
        %v5408 = vpack.c.bf16 %v3981, %v3966
        %v5409 = vpack.c.bf16 %v4011, %v3996
        %v5410 = vpack.c.bf16 %v4041, %v4026
        %v5411 = vpack.c.bf16 %v4071, %v4056
        %v5412 = vpack.c.bf16 %v4101, %v4086
        %v5413 = vpack.c.bf16 %v4131, %v4116
        %v5414 = vpack.c.bf16 %v4161, %v4146
        %v5415 = vpack.c.bf16 %v4191, %v4176
        %v5416 = vpack.c.bf16 %v4221, %v4206
        %v5417 = vpack.c.bf16 %v4251, %v4236
        %v5418 = vpack.c.bf16 %v4281, %v4266
        %v5419 = vpack.c.bf16 %v4311, %v4296
        %v5420 = vpack.c.bf16 %v4341, %v4326
        %v5421 = vpack.c.bf16 %v4371, %v4356
        %v5422 = vpack.c.bf16 %v4401, %v4386
        %v5423 = vpack.c.bf16 %v4431, %v4416
        %v5424 = vpack.c.bf16 %v4461, %v4446
        %v5425 = vpack.c.bf16 %v4491, %v4476
        %v5426 = vpack.c.bf16 %v4521, %v4506
        %v5427 = vpack.c.bf16 %v4551, %v4536
        %v5428 = vpack.c.bf16 %v4581, %v4566
        %v5429 = vpack.c.bf16 %v4611, %v4596
        %v5430 = vpack.c.bf16 %v4641, %v4626
        %v5431 = vpack.c.bf16 %v4671, %v4656
        %v5432 = vpack.c.bf16 %v4701, %v4686
        %v5433 = vpack.c.bf16 %v4731, %v4716
        %v5434 = vpack.c.bf16 %v4761, %v4746
        %v5435 = vpack.c.bf16 %v4791, %v4776
        %v5436 = vpack.c.bf16 %v4821, %v4806
        %v5437 = vpack.c.bf16 %v4851, %v4836
        %v5438 = vpack.c.bf16 %v4881, %v4866
        %v5439 = vpack.c.bf16 %v4911, %v4896
        %v5440 = vpack.c.bf16 %v4941, %v4926
        %v5441 = vpack.c.bf16 %v4971, %v4956
        %v5442 = vpack.c.bf16 %v5001, %v4986
        %v5443 = vpack.c.bf16 %v5031, %v5016
        %v5444 = vpack.c.bf16 %v5061, %v5046
        %v5445 = vpack.c.bf16 %v5091, %v5076
        %v5446 = vpack.c.bf16 %v5121, %v5106
        %v5447 = vpack.c.bf16 %v5151, %v5136
        %v5448 = vpack.c.bf16 %v5181, %v5166
        %v5449 = vpack.c.bf16 %v5211, %v5196
        %v5450 = vpack.c.bf16 %v5241, %v5226
        %v5451 = vpack.c.bf16 %v5271, %v5256
        %v5452 = vpack.c.bf16 %v5301, %v5286
        %v5453 = vpack.c.bf16 %v5331, %v5316
        %v5454 = vpack.c.bf16 %v5361, %v5346
        %v5455 = vpack.c.bf16 %v5391, %v5376
        %5456 = vst [vmem:[%s466] sm:$0xff] %v5392
        %5457 = vst [vmem:[%s466 + $0x8] sm:$0xff] %v5393
        %5458 = vst [vmem:[%s466 + $0x10] sm:$0xff] %v5394
        %5459 = vst [vmem:[%s466 + $0x18] sm:$0xff] %v5395
        %5460 = vst [vmem:[%s466 + $0x20] sm:$0xff] %v5396
        %5461 = vst [vmem:[%s466 + $0x28] sm:$0xff] %v5397
        %5462 = vst [vmem:[%s466 + $0x30] sm:$0xff] %v5398
        %5463 = vst [vmem:[%s466 + $0x38] sm:$0xff] %v5399
        %5464 = vst [vmem:[%s466 + $0x40] sm:$0xff] %v5400
        %5465 = vst [vmem:[%s466 + $0x48] sm:$0xff] %v5401
        %5466 = vst [vmem:[%s466 + $0x50] sm:$0xff] %v5402
        %5467 = vst [vmem:[%s466 + $0x58] sm:$0xff] %v5403
        %5468 = vst [vmem:[%s466 + $0x60] sm:$0xff] %v5404
        %5469 = vst [vmem:[%s466 + $0x68] sm:$0xff] %v5405
        %5470 = vst [vmem:[%s466 + $0x70] sm:$0xff] %v5406
        %5471 = vst [vmem:[%s466 + $0x78] sm:$0xff] %v5407
        %5472 = vst [vmem:[%s466 + $0x80] sm:$0xff] %v5408
        %5473 = vst [vmem:[%s466 + $0x88] sm:$0xff] %v5409
        %5474 = vst [vmem:[%s466 + $0x90] sm:$0xff] %v5410
        %5475 = vst [vmem:[%s466 + $0x98] sm:$0xff] %v5411
        %5476 = vst [vmem:[%s466 + $0xa0] sm:$0xff] %v5412
        %5477 = vst [vmem:[%s466 + $0xa8] sm:$0xff] %v5413
        %5478 = vst [vmem:[%s466 + $0xb0] sm:$0xff] %v5414
        %5479 = vst [vmem:[%s466 + $0xb8] sm:$0xff] %v5415
        %5480 = vst [vmem:[%s466 + $0xc0] sm:$0xff] %v5416
        %5481 = vst [vmem:[%s466 + $0xc8] sm:$0xff] %v5417
        %5482 = vst [vmem:[%s466 + $0xd0] sm:$0xff] %v5418
        %5483 = vst [vmem:[%s466 + $0xd8] sm:$0xff] %v5419
        %5484 = vst [vmem:[%s466 + $0xe0] sm:$0xff] %v5420
        %5485 = vst [vmem:[%s466 + $0xe8] sm:$0xff] %v5421
        %5486 = vst [vmem:[%s466 + $0xf0] sm:$0xff] %v5422
        %5487 = vst [vmem:[%s466 + $0xf8] sm:$0xff] %v5423
        %5488 = vst [vmem:[%s466 + $0x100] sm:$0xff] %v5424
        %5489 = vst [vmem:[%s466 + $0x108] sm:$0xff] %v5425
        %5490 = vst [vmem:[%s466 + $0x110] sm:$0xff] %v5426
        %5491 = vst [vmem:[%s466 + $0x118] sm:$0xff] %v5427
        %5492 = vst [vmem:[%s466 + $0x120] sm:$0xff] %v5428
        %5493 = vst [vmem:[%s466 + $0x128] sm:$0xff] %v5429
        %5494 = vst [vmem:[%s466 + $0x130] sm:$0xff] %v5430
        %5495 = vst [vmem:[%s466 + $0x138] sm:$0xff] %v5431
        %5496 = vst [vmem:[%s466 + $0x140] sm:$0xff] %v5432
        %5497 = vst [vmem:[%s466 + $0x148] sm:$0xff] %v5433
        %5498 = vst [vmem:[%s466 + $0x150] sm:$0xff] %v5434
        %5499 = vst [vmem:[%s466 + $0x158] sm:$0xff] %v5435
        %5500 = vst [vmem:[%s466 + $0x160] sm:$0xff] %v5436
        %5501 = vst [vmem:[%s466 + $0x168] sm:$0xff] %v5437
        %5502 = vst [vmem:[%s466 + $0x170] sm:$0xff] %v5438
        %5503 = vst [vmem:[%s466 + $0x178] sm:$0xff] %v5439
        %5504 = vst [vmem:[%s466 + $0x180] sm:$0xff] %v5440
        %5505 = vst [vmem:[%s466 + $0x188] sm:$0xff] %v5441
        %5506 = vst [vmem:[%s466 + $0x190] sm:$0xff] %v5442
        %5507 = vst [vmem:[%s466 + $0x198] sm:$0xff] %v5443
        %5508 = vst [vmem:[%s466 + $0x1a0] sm:$0xff] %v5444
        %5509 = vst [vmem:[%s466 + $0x1a8] sm:$0xff] %v5445
        %5510 = vst [vmem:[%s466 + $0x1b0] sm:$0xff] %v5446
        %5511 = vst [vmem:[%s466 + $0x1b8] sm:$0xff] %v5447
        %5512 = vst [vmem:[%s466 + $0x1c0] sm:$0xff] %v5448
        %5513 = vst [vmem:[%s466 + $0x1c8] sm:$0xff] %v5449
        %5514 = vst [vmem:[%s466 + $0x1d0] sm:$0xff] %v5450
        %5515 = vst [vmem:[%s466 + $0x1d8] sm:$0xff] %v5451
        %5516 = vst [vmem:[%s466 + $0x1e0] sm:$0xff] %v5452
        %5517 = vst [vmem:[%s466 + $0x1e8] sm:$0xff] %v5453
        %5518 = vst [vmem:[%s466 + $0x1f0] sm:$0xff] %v5454
        %5519 = vst [vmem:[%s466 + $0x1f8] sm:$0xff] %v5455
        %5520 = vst [vmem:[%s473] sm:$0xff] %v1512
        %5521 = vst [vmem:[%s473 + $0x8] sm:$0xff] %v1514
        %5522 = vst [vmem:[%s473 + $0x10] sm:$0xff] %v1517
        %5523 = vst [vmem:[%s473 + $0x18] sm:$0xff] %v1519
        %5524 = vst [vmem:[%s473 + $0x20] sm:$0xff] %v1522
        %5525 = vst [vmem:[%s473 + $0x28] sm:$0xff] %v1524
        %5526 = vst [vmem:[%s473 + $0x30] sm:$0xff] %v1527
        %5527 = vst [vmem:[%s473 + $0x38] sm:$0xff] %v1529
        %5528 = vst [vmem:[%s473 + $0x40] sm:$0xff] %v1532
        %5529 = vst [vmem:[%s473 + $0x48] sm:$0xff] %v1534
        %5530 = vst [vmem:[%s473 + $0x50] sm:$0xff] %v1537
        %5531 = vst [vmem:[%s473 + $0x58] sm:$0xff] %v1539
        %5532 = vst [vmem:[%s473 + $0x60] sm:$0xff] %v1542
        %5533 = vst [vmem:[%s473 + $0x68] sm:$0xff] %v1544
        %5534 = vst [vmem:[%s473 + $0x70] sm:$0xff] %v1547
        %5535 = vst [vmem:[%s473 + $0x78] sm:$0xff] %v1549
        %5536 = vst [vmem:[%s473 + $0x80] sm:$0xff] %v1552
        %5537 = vst [vmem:[%s473 + $0x88] sm:$0xff] %v1554
        %5538 = vst [vmem:[%s473 + $0x90] sm:$0xff] %v1557
        %5539 = vst [vmem:[%s473 + $0x98] sm:$0xff] %v1559
        %5540 = vst [vmem:[%s473 + $0xa0] sm:$0xff] %v1562
        %5541 = vst [vmem:[%s473 + $0xa8] sm:$0xff] %v1564
        %5542 = vst [vmem:[%s473 + $0xb0] sm:$0xff] %v1567
        %5543 = vst [vmem:[%s473 + $0xb8] sm:$0xff] %v1569
        %5544 = vst [vmem:[%s473 + $0xc0] sm:$0xff] %v1572
        %5545 = vst [vmem:[%s473 + $0xc8] sm:$0xff] %v1574
        %5546 = vst [vmem:[%s473 + $0xd0] sm:$0xff] %v1577
        %5547 = vst [vmem:[%s473 + $0xd8] sm:$0xff] %v1579
        %5548 = vst [vmem:[%s473 + $0xe0] sm:$0xff] %v1582
        %5549 = vst [vmem:[%s473 + $0xe8] sm:$0xff] %v1584
        %5550 = vst [vmem:[%s473 + $0xf0] sm:$0xff] %v1587
        %5551 = vst [vmem:[%s473 + $0xf8] sm:$0xff] %v1589
        %5552 = vst [vmem:[%s473 + $0x100] sm:$0xff] %v1592
        %5553 = vst [vmem:[%s473 + $0x108] sm:$0xff] %v1594
        %5554 = vst [vmem:[%s473 + $0x110] sm:$0xff] %v1597
        %5555 = vst [vmem:[%s473 + $0x118] sm:$0xff] %v1599
        %5556 = vst [vmem:[%s473 + $0x120] sm:$0xff] %v1602
        %5557 = vst [vmem:[%s473 + $0x128] sm:$0xff] %v1604
        %5558 = vst [vmem:[%s473 + $0x130] sm:$0xff] %v1607
        %5559 = vst [vmem:[%s473 + $0x138] sm:$0xff] %v1609
        %5560 = vst [vmem:[%s473 + $0x140] sm:$0xff] %v1612
        %5561 = vst [vmem:[%s473 + $0x148] sm:$0xff] %v1614
        %5562 = vst [vmem:[%s473 + $0x150] sm:$0xff] %v1617
        %5563 = vst [vmem:[%s473 + $0x158] sm:$0xff] %v1619
        %5564 = vst [vmem:[%s473 + $0x160] sm:$0xff] %v1622
        %5565 = vst [vmem:[%s473 + $0x168] sm:$0xff] %v1624
        %5566 = vst [vmem:[%s473 + $0x170] sm:$0xff] %v1627
        %5567 = vst [vmem:[%s473 + $0x178] sm:$0xff] %v1629
        %5568 = vst [vmem:[%s473 + $0x180] sm:$0xff] %v1632
        %5569 = vst [vmem:[%s473 + $0x188] sm:$0xff] %v1634
        %5570 = vst [vmem:[%s473 + $0x190] sm:$0xff] %v1637
        %5571 = vst [vmem:[%s473 + $0x198] sm:$0xff] %v1639
        %5572 = vst [vmem:[%s473 + $0x1a0] sm:$0xff] %v1642
        %5573 = vst [vmem:[%s473 + $0x1a8] sm:$0xff] %v1644
        %5574 = vst [vmem:[%s473 + $0x1b0] sm:$0xff] %v1647
        %5575 = vst [vmem:[%s473 + $0x1b8] sm:$0xff] %v1649
        %5576 = vst [vmem:[%s473 + $0x1c0] sm:$0xff] %v1652
        %5577 = vst [vmem:[%s473 + $0x1c8] sm:$0xff] %v1654
        %5578 = vst [vmem:[%s473 + $0x1d0] sm:$0xff] %v1657
        %5579 = vst [vmem:[%s473 + $0x1d8] sm:$0xff] %v1659
        %5580 = vst [vmem:[%s473 + $0x1e0] sm:$0xff] %v1662
        %5581 = vst [vmem:[%s473 + $0x1e8] sm:$0xff] %v1664
        %5582 = vst [vmem:[%s473 + $0x1f0] sm:$0xff] %v1667
        %5583 = vst [vmem:[%s473 + $0x1f8] sm:$0xff] %v1669
        %s5584 = sand.u32 %s219, 1
        %s5585 = scalar_lea.sflag [#allocation4], %s5584
        %s5586 = sand.u32 %s219, 1
        %s5587 = smul.addr %s5586, 512
        %s5588 = scalar_lea.vmem [#allocation14], %s5587
        %s5589 = sand.u32 %s245, 1
        %s5590 = scalar_lea.sflag [#allocation16], %s5589
        %s5591 = sand.u32 %s245, 1
        %s5592 = smul.addr %s5591, 512
        %s5593 = scalar_lea.vmem [#allocation15], %s5592
        // Predicated region
        $region81: #{tpu_custom_call.1} parent=51 // pred_check
          %p5594 = pneg %p229
        $region82: #{tpu_custom_call.1} parent=51 // pred_check_branch
          %5596 = sbr.rel (%p5594) target = $region84
        $region83: #{tpu_custom_call.1} parent=51 // pred_region
          %s5597 = smul.u32 64, %s33
          %5599 = vsyncadd %s5585, 0
          %s5600 = smul.addr %s5597, 2
          %s5601 = smul.addr %s5600, 4
          %s5602 = scalar_lea.hbm %s8, %s5601
          %s5603 = sshll.u32 %s5588, 4
          %s5604 = int_to_ptr.vmem [resolvable:$true] %s5603
          %s5605 = sshll.u32 %s5602, 4
          %s5606 = int_to_ptr.hbm [resolvable:$true] %s5605
          %5611 = dma.vmem_to_hbm [thread:$0]  %s5604, 8192, %s5606, %s5585, 128, 128, 8
        $region84: #{tpu_custom_call.1} parent=51 // pred_fallthru
          _
        // Predicated region
        $region85: #{tpu_custom_call.1} parent=51 // pred_check
          %p5612 = pneg %p255
        $region86: #{tpu_custom_call.1} parent=51 // pred_check_branch
          %5614 = sbr.rel (%p5612) target = $region88
        $region87: #{tpu_custom_call.1} parent=51 // pred_region
          %s5615 = smul.u32 64, %s33
          %5617 = vsyncadd %s5590, 0
          %s5618 = smul.addr %s5615, 8
          %s5619 = scalar_lea.hbm %s9, %s5618
          %s5620 = sshll.u32 %s5593, 4
          %s5621 = int_to_ptr.vmem [resolvable:$true] %s5620
          %s5622 = sshll.u32 %s5619, 4
          %s5623 = int_to_ptr.hbm [resolvable:$true] %s5622
          %5628 = dma.vmem_to_hbm [thread:$0]  %s5621, 8192, %s5623, %s5590, 128, 128, 8
        $region88: #{tpu_custom_call.1} parent=51 // pred_fallthru
          _
      $region52: #{tpu_custom_call.1} parent=5 // pred_fallthru
        _
      %p5629 = scmp.le.s32.totalorder 2, %s28
      // Predicated region
      $region89: #{tpu_custom_call.1} parent=5 // pred_check
        %p5630 = pneg %p5629
      $region90: #{tpu_custom_call.1} parent=5 // pred_check_branch
        %5632 = sbr.rel (%p5630) target = $region92
      $region91: #{tpu_custom_call.1} parent=5 // pred_region
        %s5633 = ssub.s32 %s28, 2
        // Predicated region
        $region93: #{tpu_custom_call.1} parent=91 // pred_check
          %p5634 = pneg %p235
        $region94: #{tpu_custom_call.1} parent=91 // pred_check_branch
          %5636 = sbr.rel (%p5634) target = $region96
        $region95: #{tpu_custom_call.1} parent=91 // pred_region
          %s5637 = sand.u32 %s220, 1
          %s5638 = scalar_lea.sflag [#allocation4], %s5637
          %s5639 = sand.u32 %s220, 1
          %s5640 = smul.addr %s5639, 512
          %s5641 = scalar_lea.vmem [#allocation14], %s5640
          %5643 = dma.done %s5638, 8192
        $region96: #{tpu_custom_call.1} parent=91 // pred_fallthru
          _
        // Predicated region
        $region97: #{tpu_custom_call.1} parent=91 // pred_check
          %p5644 = pneg %p261
        $region98: #{tpu_custom_call.1} parent=91 // pred_check_branch
          %5646 = sbr.rel (%p5644) target = $region100
        $region99: #{tpu_custom_call.1} parent=91 // pred_region
          %s5647 = sand.u32 %s246, 1
          %s5648 = scalar_lea.sflag [#allocation16], %s5647
          %s5649 = sand.u32 %s246, 1
          %s5650 = smul.addr %s5649, 512
          %s5651 = scalar_lea.vmem [#allocation15], %s5650
          %5653 = dma.done %s5648, 8192
        $region100: #{tpu_custom_call.1} parent=91 // pred_fallthru
          _
      $region92: #{tpu_custom_call.1} parent=5 // pred_fallthru
        _
    $region6: #{tpu_custom_call.1} parent=1 // loop_footer
      %s32 = sadd.s32 1, %s28
    $region7: #{tpu_custom_call.1} parent=1 // loop_footer_branch
      %27 = sbr.rel target = $region3
    $region8: #{tpu_custom_call.1} parent=1 // loop_exit
      _
    %5654 = vsyncpa [#allocation3], 1
    %s5655 = scalar_lea.sflag [#allocation3], 1
    %5656 = vsyncpa %s5655, 1
    %5657 = vsyncpa [#allocation6], 1
    %5658 = vsyncpa [#allocation9], 1
    %5659 = vsyncpa [#allocation12], 1
    %5660 = vsyncpa [#allocation4], 1
    %s5661 = scalar_lea.sflag [#allocation4], 1
    %5662 = vsyncpa %s5661, 1
    %5663 = vsyncpa [#allocation16], 1
    %s5664 = scalar_lea.sflag [#allocation16], 1
    %5665 = vsyncpa %s5664, 1

</llo_original>
